<compile_context>
chip_gen: v6e
topology: v6e:2x2x1
jax: 0.10.0
libtpu: 0.0.40
codegen_flags: <defaults>
</compile_context>

<pallas_src>
import numpy as np
import jax
import jax.numpy as jnp
from jax import lax
from jax.experimental import pallas as pl
from jax.experimental.pallas import tpu as pltpu

# ---------------- problem sizes / hyper-parameters (module defaults) --------
H, W = 16, 16
HW = H * W
LANES = 128          # lane width used for the scalar-terms output slab

ALPHA = 1.0
BETA = 1.0
GAMMA = 1.0
DELTA = 1.0
ENTROPY_WEIGHT = 1.0
MASK_COST = 1.0
FB_THRESH = 0.01
NSAMPLES = 1         # Nsamples = 1 (module default)
EPS = 1e-5


# ---------------- dense conv matrices (the registered buffer kernels) -------
def _dx_matrix(h, w):
    """F.conv2d(flow, kernel_dx) followed by F.pad(.., (0,1,0,0)):
    out[y,x] = flow[y,x+1] - flow[y,x] for x < w-1, else 0 (per channel)."""
    m = np.zeros((h * w, h * w), np.float32)   # m[q, p]: input q -> output p
    for y in range(h):
        for x in range(w - 1):
            p = y * w + x
            m[p, p] += -1.0
            m[p + 1, p] += 1.0
    return m


def _dy_matrix(h, w):
    m = np.zeros((h * w, h * w), np.float32)
    for y in range(h - 1):
        for x in range(w):
            p = y * w + x
            m[p, p] += -1.0
            m[p + w, p] += 1.0
    return m


# cross-correlation taps of kernel_gx / kernel_gy (per-channel, zero padded)
_G_TAPS = {-2: -1.0 / 12.0, -1: 2.0 / 3.0, 0: 0.0, 1: -2.0 / 3.0, 2: 1.0 / 12.0}


def _gx_matrix(h, w):
    m = np.zeros((h * w, h * w), np.float32)
    for y in range(h):
        for x in range(w):
            p = y * w + x
            for off, c in _G_TAPS.items():
                xs = x + off
                if 0 <= xs < w:
                    m[y * w + xs, p] += c
    return m


def _gy_matrix(h, w):
    m = np.zeros((h * w, h * w), np.float32)
    for y in range(h):
        for x in range(w):
            p = y * w + x
            for off, c in _G_TAPS.items():
                ys = y + off
                if 0 <= ys < h:
                    m[ys * w + x, p] += c
    return m


# ---------------- the Pallas kernel ------------------------------------------
def _elbo_fb_kernel(meanf_ref, logvf_ref, epsf_ref,
                    meanb_ref, logvb_ref, epsb_ref,
                    img1_ref, img2_ref, target_ref,
                    x_ref, y_ref,
                    dT_ref, gT_ref,
                    terms_ref, maskf_ref, maskb_ref):
    meanf = meanf_ref[0]                              # (2, HW)
    logvf = logvf_ref[0]
    flowf = meanf + jnp.exp(0.5 * logvf) * epsf_ref[0]   # reparam sample
    meanb = meanb_ref[0]
    logvb = logvb_ref[0]
    flowb = meanb + jnp.exp(0.5 * logvb) * epsb_ref[0]

    img1 = img1_ref[0]                                # (3, HW)
    img2 = img2_ref[0]
    target = target_ref[0]                            # (2, HW)
    xg = x_ref[...]                                   # (1, HW)  pixel x coord
    yg = y_ref[...]                                   # (1, HW)  pixel y coord
    dT = dT_ref[...]                                  # (HW, 2*HW) bf16 [dx|dy]
    gT = gT_ref[...]                                  # (HW, 2*HW) bf16 [gx|gy]

    # candidate source x / y coordinate per row (small: (16, HW))
    col_x = lax.broadcasted_iota(jnp.int32, (W, HW), 0)
    col_y = lax.broadcasted_iota(jnp.int32, (H, HW), 0)

    def penalty(x):
        return jnp.sqrt(x + EPS)

    def warp_matrix(flow):
        """Dense bilinear sampling matrix S[q, p]: weight of source pixel q
        for target pixel p when sampling at (x_p + u_p, y_p + v_p).  Built
        from separable (W,HW)/(H,HW) weight factors; out-of-image corners
        never match an iota row, which reproduces zero padding exactly."""
        xp = xg + flow[0:1, :]
        yp = yg + flow[1:2, :]
        x0 = jnp.floor(xp)
        y0 = jnp.floor(yp)
        fx = xp - x0
        fy = yp - y0
        x0i = x0.astype(jnp.int32)
        y0i = y0.astype(jnp.int32)

        wx = (jnp.where(col_x == x0i, 1.0 - fx, 0.0)
              + jnp.where(col_x == x0i + 1, fx, 0.0))          # (W, HW)
        wy = (jnp.where(col_y == y0i, 1.0 - fy, 0.0)
              + jnp.where(col_y == y0i + 1, fy, 0.0))          # (H, HW)

        # S[yq*W + xq, p] = wy[yq, p] * wx[xq, p], built in 16-row slabs
        # (16 is a multiple of the bf16 sublane tile, so the concat is aligned).
        chunks = [(wy[i:i + 1, :] * wx).astype(jnp.bfloat16) for i in range(H)]
        return jnp.concatenate(chunks, axis=0)                 # (HW, HW) bf16

    def warp(arr, s):                                  # arr: (C, HW) f32
        return jnp.dot(arr.astype(jnp.bfloat16), s,
                       preferred_element_type=jnp.float32)

    def border_mask(flow):
        xp = xg + flow[0:1, :]
        yp = yg + flow[1:2, :]
        mx = jax.nn.sigmoid(xp + 0.5) * (1.0 - jax.nn.sigmoid(xp - (W - 0.5)))
        my = jax.nn.sigmoid(yp + 0.5) * (1.0 - jax.nn.sigmoid(yp - (H - 0.5)))
        return mx * my                                 # (1, HW)

    def one_direction(flow_a, flow_b, im_a, im_b):
        """One pass (forward or backward): flow_a is the flow of this
        direction, im_b is warped by flow_a towards im_a."""
        s = warp_matrix(flow_a)
        mask = border_mask(flow_a)
        flow_b_warp = warp(flow_b, s)                  # (2, HW) f32
        im_b_warp = warp(im_b, s)                      # (3, HW) f32

        mag = jnp.sum(flow_a * flow_a + flow_b_warp * flow_b_warp,
                      axis=0, keepdims=True)
        fdiff = flow_a + flow_b_warp
        dsq = jnp.sum(fdiff * fdiff, axis=0, keepdims=True)
        occ = 1.0 - jax.nn.sigmoid(dsq - (FB_THRESH * mag + 0.5))
        mask = mask * occ

        dimg = im_a - im_b_warp                        # reused for data + grad
        a = jnp.sum(dimg * dimg, axis=0, keepdims=True)
        data_s = jnp.sum(penalty(a) * mask)

        # smoothness: one matmul against [dxT | dyT]
        d = jnp.dot(flow_a.astype(jnp.bfloat16), dT,
                    preferred_element_type=jnp.float32)          # (2, 2*HW)
        dsum = jnp.sum(d * d, axis=0, keepdims=True)             # (1, 2*HW)
        bsq = dsum[:, :HW] + dsum[:, HW:]
        smooth_s = jnp.sum(penalty(bsq))

        # gradient constancy: conv is linear, so conv(im_a) - conv(im_b_warp)
        # == conv(im_a - im_b_warp); one matmul against [gxT | gyT].
        g = jnp.dot(dimg.astype(jnp.bfloat16), gT,
                    preferred_element_type=jnp.float32)          # (3, 2*HW)
        csum = jnp.sum(g * g, axis=0, keepdims=True)
        c = csum[:, :HW] + csum[:, HW:]
        grad_s = jnp.sum(penalty(c) * mask)

        mask_s = jnp.sum(1.0 - mask)
        fb_s = jnp.sum(penalty(dsq) * mask)
        return mask, mask_s, data_s, smooth_s, grad_s, fb_s

    maskf, mask_sf, data_sf, smooth_sf, grad_sf, fb_sf = one_direction(
        flowf, flowb, img1, img2)
    maskb, mask_sb, data_sb, smooth_sb, grad_sb, fb_sb = one_direction(
        flowb, flowf, img2, img1)

    entropy_s = 0.5 * jnp.sum(logvf) + 0.5 * jnp.sum(logvb)
    tdiff = meanf - target
    epe_s = jnp.sum(jnp.sqrt(jnp.sum(tdiff * tdiff, axis=0, keepdims=True)))

    vals = (mask_sf + mask_sb,
            data_sf + data_sb,
            smooth_sf + smooth_sb,
            grad_sf + grad_sb,
            fb_sf + fb_sb,
            entropy_s,
            epe_s)
    lane = lax.broadcasted_iota(jnp.int32, (1, LANES), 1)
    out = jnp.zeros((1, LANES), jnp.float32)
    for i, v in enumerate(vals):
        out = jnp.where(lane == i, v, out)
    terms_ref[0] = out
    maskf_ref[0] = maskf
    maskb_ref[0] = maskb


# ---------------- wrapper -----------------------------------------------------
def elbo_fb_forward(meanf, log_varf, meanb, log_varb,
                    img1, img2, target, epsf, epsb):
    b = meanf.shape[0]
    flat = lambda a: a.reshape(a.shape[0], a.shape[1], HW)

    xs = np.arange(W, dtype=np.float32)
    ys = np.arange(H, dtype=np.float32)
    xg = jnp.asarray(np.tile(xs[None, :], (H, 1)).reshape(1, HW))
    yg = jnp.asarray(np.tile(ys[:, None], (1, W)).reshape(1, HW))
    # host-concatenated derivative matrices, stored bf16 for the MXU
    DT = jnp.asarray(np.concatenate([_dx_matrix(H, W), _dy_matrix(H, W)], axis=1),
                     dtype=jnp.bfloat16)                       # (HW, 2*HW)
    GT = jnp.asarray(np.concatenate([_gx_matrix(H, W), _gy_matrix(H, W)], axis=1),
                     dtype=jnp.bfloat16)                       # (HW, 2*HW)

    spec_flow = pl.BlockSpec((1, 2, HW), lambda i: (i, 0, 0))
    spec_img = pl.BlockSpec((1, 3, HW), lambda i: (i, 0, 0))
    spec_vec = pl.BlockSpec((1, HW), lambda i: (0, 0))
    spec_mat = pl.BlockSpec((HW, 2 * HW), lambda i: (0, 0))

    out_shapes = (
        jax.ShapeDtypeStruct((b, 1, LANES), jnp.float32),
        jax.ShapeDtypeStruct((b, 1, HW), jnp.float32),
        jax.ShapeDtypeStruct((b, 1, HW), jnp.float32),
    )
    out_specs = (
        pl.BlockSpec((1, 1, LANES), lambda i: (i, 0, 0)),
        pl.BlockSpec((1, 1, HW), lambda i: (i, 0, 0)),
        pl.BlockSpec((1, 1, HW), lambda i: (i, 0, 0)),
    )

    terms, maskf, maskb = pl.pallas_call(
        _elbo_fb_kernel,
        out_shape=out_shapes,
        grid_spec=pltpu.PrefetchScalarGridSpec(
            num_scalar_prefetch=0,
            grid=(b,),
            in_specs=[spec_flow, spec_flow, spec_flow,
                      spec_flow, spec_flow, spec_flow,
                      spec_img, spec_img, spec_flow,
                      spec_vec, spec_vec,
                      spec_mat, spec_mat],
            out_specs=out_specs),
        compiler_params=pltpu.CompilerParams(
            dimension_semantics=("parallel",),       # independent batch blocks
            vmem_limit_bytes=8 * 1024 * 1024),
    )(flat(meanf), flat(log_varf), flat(epsf),
      flat(meanb), flat(log_varb), flat(epsb),
      flat(img1), flat(img2), flat(target),
      xg, yg, DT, GT)

    # plain-JAX glue: means over the (Nsamples * B) sample batch
    mask_term = MASK_COST * jnp.mean(terms[:, 0, 0])
    data_term = ALPHA * jnp.mean(terms[:, 0, 1])
    smooth_term = BETA * jnp.mean(terms[:, 0, 2])
    gradient_term = GAMMA * jnp.mean(terms[:, 0, 3])
    fb_term = DELTA * jnp.mean(terms[:, 0, 4])
    energy = data_term + smooth_term + gradient_term + mask_term + fb_term
    entropy = -ENTROPY_WEIGHT * jnp.mean(terms[:, 0, 5])
    epe = jnp.sum(terms[:, 0, 6]) / (b * H * W)

    loss_dict = {
        'elbo': energy + entropy,
        'epe': epe,
        'mask_term': mask_term,
        'data_term': data_term,
        'smooth_term': smooth_term,
        'gradient_term': gradient_term,
        'fb_term': fb_term,
        'energy': energy,
        'entropy': entropy,
    }
    return loss_dict, maskf.reshape(b, H, W), maskb.reshape(b, H, W)


# ---------------- main --------------------------------------------------------
if __name__ == "__main__":
    key = jax.random.PRNGKey(0)
    keys = jax.random.split(key, 9)
    B = 2

    meanf = 2.0 * jax.random.normal(keys[0], (B, 2, H, W), jnp.float32)
    log_varf = 0.1 * jax.random.normal(keys[1], (B, 2, H, W), jnp.float32) - 2.0
    meanb = 2.0 * jax.random.normal(keys[2], (B, 2, H, W), jnp.float32)
    log_varb = 0.1 * jax.random.normal(keys[3], (B, 2, H, W), jnp.float32) - 2.0
    img1 = jax.random.uniform(keys[4], (B, 3, H, W), jnp.float32)
    img2 = jax.random.uniform(keys[5], (B, 3, H, W), jnp.float32)
    target = jax.random.normal(keys[6], (B, 2, H, W), jnp.float32)
    # Nsamples = 1: one deterministic reparameterization noise draw per flow.
    epsf = jax.random.normal(keys[7], (B, 2, H, W), jnp.float32)
    epsb = jax.random.normal(keys[8], (B, 2, H, W), jnp.float32)

    run = jax.jit(elbo_fb_forward)
    loss_dict, maskf, maskb = run(meanf, log_varf, meanb, log_varb,
                                  img1, img2, target, epsf, epsb)
    jax.block_until_ready(loss_dict['elbo'])
    jax.block_until_ready(loss_dict['epe'])
    jax.block_until_ready(maskf)
    jax.block_until_ready(maskb)

    assert bool(jnp.isfinite(loss_dict['elbo']))
    assert bool(jnp.isfinite(loss_dict['epe']))
    print("KERNEL_OK")
</pallas_src>

<mosaic_0001>
module attributes {stable_mosaic.version = 11 : i64} {
  func.func @_elbo_fb_kernel(%arg0: i32, %arg1: memref<1x2x256xf32, #tpu.memory_space<vmem>>, %arg2: memref<1x2x256xf32, #tpu.memory_space<vmem>>, %arg3: memref<1x2x256xf32, #tpu.memory_space<vmem>>, %arg4: memref<1x2x256xf32, #tpu.memory_space<vmem>>, %arg5: memref<1x2x256xf32, #tpu.memory_space<vmem>>, %arg6: memref<1x2x256xf32, #tpu.memory_space<vmem>>, %arg7: memref<1x3x256xf32, #tpu.memory_space<vmem>>, %arg8: memref<1x3x256xf32, #tpu.memory_space<vmem>>, %arg9: memref<1x2x256xf32, #tpu.memory_space<vmem>>, %arg10: memref<1x256xf32, #tpu.memory_space<vmem>>, %arg11: memref<1x256xf32, #tpu.memory_space<vmem>>, %arg12: memref<256x512xbf16, #tpu.memory_space<vmem>>, %arg13: memref<256x512xbf16, #tpu.memory_space<vmem>>, %arg14: memref<1x1x128xf32, #tpu.memory_space<vmem>>, %arg15: memref<1x1x256xf32, #tpu.memory_space<vmem>>, %arg16: memref<1x1x256xf32, #tpu.memory_space<vmem>>) attributes {dimension_semantics = [#tpu.dimension_semantics<parallel>], iteration_bounds = array<i64: 2>, scalar_prefetch = 0 : i64, scratch_operands = 0 : i64, tpu.core_type = #tpu.core_type<tc>, window_params = [{transform_indices = @transform_0, window_bounds = array<i64: 1, 2, 256>}, {transform_indices = @transform_1, window_bounds = array<i64: 1, 2, 256>}, {transform_indices = @transform_2, window_bounds = array<i64: 1, 2, 256>}, {transform_indices = @transform_3, window_bounds = array<i64: 1, 2, 256>}, {transform_indices = @transform_4, window_bounds = array<i64: 1, 2, 256>}, {transform_indices = @transform_5, window_bounds = array<i64: 1, 2, 256>}, {transform_indices = @transform_6, window_bounds = array<i64: 1, 3, 256>}, {transform_indices = @transform_7, window_bounds = array<i64: 1, 3, 256>}, {transform_indices = @transform_8, window_bounds = array<i64: 1, 2, 256>}, {pipeline_mode = #tpu.pipeline_mode<synchronous>, transform_indices = @transform_9, window_bounds = array<i64: 1, 256>}, {pipeline_mode = #tpu.pipeline_mode<synchronous>, transform_indices = @transform_10, window_bounds = array<i64: 1, 256>}, {pipeline_mode = #tpu.pipeline_mode<synchronous>, transform_indices = @transform_11, window_bounds = array<i64: 256, 512>}, {pipeline_mode = #tpu.pipeline_mode<synchronous>, transform_indices = @transform_12, window_bounds = array<i64: 256, 512>}, {transform_indices = @transform_13, window_bounds = array<i64: 1, 1, 128>}, {transform_indices = @transform_14, window_bounds = array<i64: 1, 1, 256>}, {transform_indices = @transform_15, window_bounds = array<i64: 1, 1, 256>}]} {
    %c0 = arith.constant 0 : index
    %c0_0 = arith.constant 0 : index
    %c0_1 = arith.constant 0 : index
    %0 = vector.load %arg1[%c0, %c0_0, %c0_1] : memref<1x2x256xf32, #tpu.memory_space<vmem>>, vector<1x2x256xf32>
    %1 = vector.shape_cast %0 : vector<1x2x256xf32> to vector<2x256xf32>
    %c0_2 = arith.constant 0 : index
    %c0_3 = arith.constant 0 : index
    %c0_4 = arith.constant 0 : index
    %2 = vector.load %arg2[%c0_2, %c0_3, %c0_4] : memref<1x2x256xf32, #tpu.memory_space<vmem>>, vector<1x2x256xf32>
    %3 = vector.shape_cast %2 : vector<1x2x256xf32> to vector<2x256xf32>
    %cst = arith.constant 5.000000e-01 : f32
    %4 = vector.broadcast %cst : f32 to vector<2x256xf32>
    %5 = arith.mulf %4, %3 : vector<2x256xf32>
    %6 = math.exp %5 : vector<2x256xf32>
    %c0_5 = arith.constant 0 : index
    %c0_6 = arith.constant 0 : index
    %c0_7 = arith.constant 0 : index
    %7 = vector.load %arg3[%c0_5, %c0_6, %c0_7] : memref<1x2x256xf32, #tpu.memory_space<vmem>>, vector<1x2x256xf32>
    %8 = vector.shape_cast %7 : vector<1x2x256xf32> to vector<2x256xf32>
    %9 = arith.mulf %6, %8 : vector<2x256xf32>
    %10 = arith.addf %1, %9 : vector<2x256xf32>
    %c0_8 = arith.constant 0 : index
    %c0_9 = arith.constant 0 : index
    %c0_10 = arith.constant 0 : index
    %11 = vector.load %arg4[%c0_8, %c0_9, %c0_10] : memref<1x2x256xf32, #tpu.memory_space<vmem>>, vector<1x2x256xf32>
    %12 = vector.shape_cast %11 : vector<1x2x256xf32> to vector<2x256xf32>
    %c0_11 = arith.constant 0 : index
    %c0_12 = arith.constant 0 : index
    %c0_13 = arith.constant 0 : index
    %13 = vector.load %arg5[%c0_11, %c0_12, %c0_13] : memref<1x2x256xf32, #tpu.memory_space<vmem>>, vector<1x2x256xf32>
    %14 = vector.shape_cast %13 : vector<1x2x256xf32> to vector<2x256xf32>
    %cst_14 = arith.constant 5.000000e-01 : f32
    %15 = vector.broadcast %cst_14 : f32 to vector<2x256xf32>
    %16 = arith.mulf %15, %14 : vector<2x256xf32>
    %17 = math.exp %16 : vector<2x256xf32>
    %c0_15 = arith.constant 0 : index
    %c0_16 = arith.constant 0 : index
    %c0_17 = arith.constant 0 : index
    %18 = vector.load %arg6[%c0_15, %c0_16, %c0_17] : memref<1x2x256xf32, #tpu.memory_space<vmem>>, vector<1x2x256xf32>
    %19 = vector.shape_cast %18 : vector<1x2x256xf32> to vector<2x256xf32>
    %20 = arith.mulf %17, %19 : vector<2x256xf32>
    %21 = arith.addf %12, %20 : vector<2x256xf32>
    %c0_18 = arith.constant 0 : index
    %c0_19 = arith.constant 0 : index
    %c0_20 = arith.constant 0 : index
    %22 = vector.load %arg7[%c0_18, %c0_19, %c0_20] : memref<1x3x256xf32, #tpu.memory_space<vmem>>, vector<1x3x256xf32>
    %23 = vector.shape_cast %22 : vector<1x3x256xf32> to vector<3x256xf32>
    %c0_21 = arith.constant 0 : index
    %c0_22 = arith.constant 0 : index
    %c0_23 = arith.constant 0 : index
    %24 = vector.load %arg8[%c0_21, %c0_22, %c0_23] : memref<1x3x256xf32, #tpu.memory_space<vmem>>, vector<1x3x256xf32>
    %25 = vector.shape_cast %24 : vector<1x3x256xf32> to vector<3x256xf32>
    %c0_24 = arith.constant 0 : index
    %c0_25 = arith.constant 0 : index
    %c0_26 = arith.constant 0 : index
    %26 = vector.load %arg9[%c0_24, %c0_25, %c0_26] : memref<1x2x256xf32, #tpu.memory_space<vmem>>, vector<1x2x256xf32>
    %27 = vector.shape_cast %26 : vector<1x2x256xf32> to vector<2x256xf32>
    %c0_27 = arith.constant 0 : index
    %c0_28 = arith.constant 0 : index
    %28 = vector.load %arg10[%c0_27, %c0_28] : memref<1x256xf32, #tpu.memory_space<vmem>>, vector<1x256xf32>
    %c0_29 = arith.constant 0 : index
    %c0_30 = arith.constant 0 : index
    %29 = vector.load %arg11[%c0_29, %c0_30] : memref<1x256xf32, #tpu.memory_space<vmem>>, vector<1x256xf32>
    %c0_31 = arith.constant 0 : index
    %c0_32 = arith.constant 0 : index
    %30 = vector.load %arg12[%c0_31, %c0_32] : memref<256x512xbf16, #tpu.memory_space<vmem>>, vector<256x512xbf16>
    %c0_33 = arith.constant 0 : index
    %c0_34 = arith.constant 0 : index
    %31 = vector.load %arg13[%c0_33, %c0_34] : memref<256x512xbf16, #tpu.memory_space<vmem>>, vector<256x512xbf16>
    %32 = tpu.iota {dimensions = array<i32: 0>} : vector<16x256xi32>
    %33 = tpu.iota {dimensions = array<i32: 0>} : vector<16x256xi32>
    %34 = vector.extract_strided_slice %10 {offsets = [0, 0], sizes = [1, 256], strides = [1, 1]} : vector<2x256xf32> to vector<1x256xf32>
    %35 = arith.addf %28, %34 : vector<1x256xf32>
    %36 = vector.extract_strided_slice %10 {offsets = [1, 0], sizes = [1, 256], strides = [1, 1]} : vector<2x256xf32> to vector<1x256xf32>
    %37 = arith.addf %29, %36 : vector<1x256xf32>
    %38 = math.floor %35 : vector<1x256xf32>
    %39 = math.floor %37 : vector<1x256xf32>
    %40 = arith.subf %35, %38 : vector<1x256xf32>
    %41 = arith.subf %37, %39 : vector<1x256xf32>
    %42 = arith.fptosi %38 : vector<1x256xf32> to vector<1x256xi32>
    %43 = arith.fptosi %39 : vector<1x256xf32> to vector<1x256xi32>
    %44 = vector.broadcast %42 : vector<1x256xi32> to vector<16x256xi32>
    %45 = arith.cmpi eq, %32, %44 : vector<16x256xi32>
    %cst_35 = arith.constant 1.000000e+00 : f32
    %46 = vector.broadcast %cst_35 : f32 to vector<1x256xf32>
    %47 = arith.subf %46, %40 : vector<1x256xf32>
    %cst_36 = arith.constant 0.000000e+00 : f32
    %48 = vector.shape_cast %47 : vector<1x256xf32> to vector<1x256xf32>
    %49 = vector.broadcast %48 : vector<1x256xf32> to vector<16x256xf32>
    %50 = vector.broadcast %cst_36 : f32 to vector<16x256xf32>
    %51 = arith.select %45, %49, %50 : vector<16x256xi1>, vector<16x256xf32>
    %c1_i32 = arith.constant 1 : i32
    %52 = vector.broadcast %c1_i32 : i32 to vector<1x256xi32>
    %53 = arith.addi %42, %52 : vector<1x256xi32>
    %54 = vector.broadcast %53 : vector<1x256xi32> to vector<16x256xi32>
    %55 = arith.cmpi eq, %32, %54 : vector<16x256xi32>
    %cst_37 = arith.constant 0.000000e+00 : f32
    %56 = vector.shape_cast %40 : vector<1x256xf32> to vector<1x256xf32>
    %57 = vector.broadcast %56 : vector<1x256xf32> to vector<16x256xf32>
    %58 = vector.broadcast %cst_37 : f32 to vector<16x256xf32>
    %59 = arith.select %55, %57, %58 : vector<16x256xi1>, vector<16x256xf32>
    %60 = arith.addf %51, %59 : vector<16x256xf32>
    %61 = vector.broadcast %43 : vector<1x256xi32> to vector<16x256xi32>
    %62 = arith.cmpi eq, %33, %61 : vector<16x256xi32>
    %cst_38 = arith.constant 1.000000e+00 : f32
    %63 = vector.broadcast %cst_38 : f32 to vector<1x256xf32>
    %64 = arith.subf %63, %41 : vector<1x256xf32>
    %cst_39 = arith.constant 0.000000e+00 : f32
    %65 = vector.shape_cast %64 : vector<1x256xf32> to vector<1x256xf32>
    %66 = vector.broadcast %65 : vector<1x256xf32> to vector<16x256xf32>
    %67 = vector.broadcast %cst_39 : f32 to vector<16x256xf32>
    %68 = arith.select %62, %66, %67 : vector<16x256xi1>, vector<16x256xf32>
    %c1_i32_40 = arith.constant 1 : i32
    %69 = vector.broadcast %c1_i32_40 : i32 to vector<1x256xi32>
    %70 = arith.addi %43, %69 : vector<1x256xi32>
    %71 = vector.broadcast %70 : vector<1x256xi32> to vector<16x256xi32>
    %72 = arith.cmpi eq, %33, %71 : vector<16x256xi32>
    %cst_41 = arith.constant 0.000000e+00 : f32
    %73 = vector.shape_cast %41 : vector<1x256xf32> to vector<1x256xf32>
    %74 = vector.broadcast %73 : vector<1x256xf32> to vector<16x256xf32>
    %75 = vector.broadcast %cst_41 : f32 to vector<16x256xf32>
    %76 = arith.select %72, %74, %75 : vector<16x256xi1>, vector<16x256xf32>
    %77 = arith.addf %68, %76 : vector<16x256xf32>
    %78 = vector.extract_strided_slice %77 {offsets = [0, 0], sizes = [1, 256], strides = [1, 1]} : vector<16x256xf32> to vector<1x256xf32>
    %79 = vector.broadcast %78 : vector<1x256xf32> to vector<16x256xf32>
    %80 = arith.mulf %79, %60 : vector<16x256xf32>
    %81 = arith.truncf %80 : vector<16x256xf32> to vector<16x256xbf16>
    %82 = vector.extract_strided_slice %77 {offsets = [1, 0], sizes = [1, 256], strides = [1, 1]} : vector<16x256xf32> to vector<1x256xf32>
    %83 = vector.broadcast %82 : vector<1x256xf32> to vector<16x256xf32>
    %84 = arith.mulf %83, %60 : vector<16x256xf32>
    %85 = arith.truncf %84 : vector<16x256xf32> to vector<16x256xbf16>
    %86 = vector.extract_strided_slice %77 {offsets = [2, 0], sizes = [1, 256], strides = [1, 1]} : vector<16x256xf32> to vector<1x256xf32>
    %87 = vector.broadcast %86 : vector<1x256xf32> to vector<16x256xf32>
    %88 = arith.mulf %87, %60 : vector<16x256xf32>
    %89 = arith.truncf %88 : vector<16x256xf32> to vector<16x256xbf16>
    %90 = vector.extract_strided_slice %77 {offsets = [3, 0], sizes = [1, 256], strides = [1, 1]} : vector<16x256xf32> to vector<1x256xf32>
    %91 = vector.broadcast %90 : vector<1x256xf32> to vector<16x256xf32>
    %92 = arith.mulf %91, %60 : vector<16x256xf32>
    %93 = arith.truncf %92 : vector<16x256xf32> to vector<16x256xbf16>
    %94 = vector.extract_strided_slice %77 {offsets = [4, 0], sizes = [1, 256], strides = [1, 1]} : vector<16x256xf32> to vector<1x256xf32>
    %95 = vector.broadcast %94 : vector<1x256xf32> to vector<16x256xf32>
    %96 = arith.mulf %95, %60 : vector<16x256xf32>
    %97 = arith.truncf %96 : vector<16x256xf32> to vector<16x256xbf16>
    %98 = vector.extract_strided_slice %77 {offsets = [5, 0], sizes = [1, 256], strides = [1, 1]} : vector<16x256xf32> to vector<1x256xf32>
    %99 = vector.broadcast %98 : vector<1x256xf32> to vector<16x256xf32>
    %100 = arith.mulf %99, %60 : vector<16x256xf32>
    %101 = arith.truncf %100 : vector<16x256xf32> to vector<16x256xbf16>
    %102 = vector.extract_strided_slice %77 {offsets = [6, 0], sizes = [1, 256], strides = [1, 1]} : vector<16x256xf32> to vector<1x256xf32>
    %103 = vector.broadcast %102 : vector<1x256xf32> to vector<16x256xf32>
    %104 = arith.mulf %103, %60 : vector<16x256xf32>
    %105 = arith.truncf %104 : vector<16x256xf32> to vector<16x256xbf16>
    %106 = vector.extract_strided_slice %77 {offsets = [7, 0], sizes = [1, 256], strides = [1, 1]} : vector<16x256xf32> to vector<1x256xf32>
    %107 = vector.broadcast %106 : vector<1x256xf32> to vector<16x256xf32>
    %108 = arith.mulf %107, %60 : vector<16x256xf32>
    %109 = arith.truncf %108 : vector<16x256xf32> to vector<16x256xbf16>
    %110 = vector.extract_strided_slice %77 {offsets = [8, 0], sizes = [1, 256], strides = [1, 1]} : vector<16x256xf32> to vector<1x256xf32>
    %111 = vector.broadcast %110 : vector<1x256xf32> to vector<16x256xf32>
    %112 = arith.mulf %111, %60 : vector<16x256xf32>
    %113 = arith.truncf %112 : vector<16x256xf32> to vector<16x256xbf16>
    %114 = vector.extract_strided_slice %77 {offsets = [9, 0], sizes = [1, 256], strides = [1, 1]} : vector<16x256xf32> to vector<1x256xf32>
    %115 = vector.broadcast %114 : vector<1x256xf32> to vector<16x256xf32>
    %116 = arith.mulf %115, %60 : vector<16x256xf32>
    %117 = arith.truncf %116 : vector<16x256xf32> to vector<16x256xbf16>
    %118 = vector.extract_strided_slice %77 {offsets = [10, 0], sizes = [1, 256], strides = [1, 1]} : vector<16x256xf32> to vector<1x256xf32>
    %119 = vector.broadcast %118 : vector<1x256xf32> to vector<16x256xf32>
    %120 = arith.mulf %119, %60 : vector<16x256xf32>
    %121 = arith.truncf %120 : vector<16x256xf32> to vector<16x256xbf16>
    %122 = vector.extract_strided_slice %77 {offsets = [11, 0], sizes = [1, 256], strides = [1, 1]} : vector<16x256xf32> to vector<1x256xf32>
    %123 = vector.broadcast %122 : vector<1x256xf32> to vector<16x256xf32>
    %124 = arith.mulf %123, %60 : vector<16x256xf32>
    %125 = arith.truncf %124 : vector<16x256xf32> to vector<16x256xbf16>
    %126 = vector.extract_strided_slice %77 {offsets = [12, 0], sizes = [1, 256], strides = [1, 1]} : vector<16x256xf32> to vector<1x256xf32>
    %127 = vector.broadcast %126 : vector<1x256xf32> to vector<16x256xf32>
    %128 = arith.mulf %127, %60 : vector<16x256xf32>
    %129 = arith.truncf %128 : vector<16x256xf32> to vector<16x256xbf16>
    %130 = vector.extract_strided_slice %77 {offsets = [13, 0], sizes = [1, 256], strides = [1, 1]} : vector<16x256xf32> to vector<1x256xf32>
    %131 = vector.broadcast %130 : vector<1x256xf32> to vector<16x256xf32>
    %132 = arith.mulf %131, %60 : vector<16x256xf32>
    %133 = arith.truncf %132 : vector<16x256xf32> to vector<16x256xbf16>
    %134 = vector.extract_strided_slice %77 {offsets = [14, 0], sizes = [1, 256], strides = [1, 1]} : vector<16x256xf32> to vector<1x256xf32>
    %135 = vector.broadcast %134 : vector<1x256xf32> to vector<16x256xf32>
    %136 = arith.mulf %135, %60 : vector<16x256xf32>
    %137 = arith.truncf %136 : vector<16x256xf32> to vector<16x256xbf16>
    %138 = vector.extract_strided_slice %77 {offsets = [15, 0], sizes = [1, 256], strides = [1, 1]} : vector<16x256xf32> to vector<1x256xf32>
    %139 = vector.broadcast %138 : vector<1x256xf32> to vector<16x256xf32>
    %140 = arith.mulf %139, %60 : vector<16x256xf32>
    %141 = arith.truncf %140 : vector<16x256xf32> to vector<16x256xbf16>
    %142 = tpu.concatenate %81, %85, %89, %93, %97, %101, %105, %109, %113, %117, %121, %125, %129, %133, %137, %141 in 0 : vector<16x256xbf16>, vector<16x256xbf16>, vector<16x256xbf16>, vector<16x256xbf16>, vector<16x256xbf16>, vector<16x256xbf16>, vector<16x256xbf16>, vector<16x256xbf16>, vector<16x256xbf16>, vector<16x256xbf16>, vector<16x256xbf16>, vector<16x256xbf16>, vector<16x256xbf16>, vector<16x256xbf16>, vector<16x256xbf16>, vector<16x256xbf16> -> vector<256x256xbf16>
    %143 = vector.extract_strided_slice %10 {offsets = [0, 0], sizes = [1, 256], strides = [1, 1]} : vector<2x256xf32> to vector<1x256xf32>
    %144 = arith.addf %28, %143 : vector<1x256xf32>
    %145 = vector.extract_strided_slice %10 {offsets = [1, 0], sizes = [1, 256], strides = [1, 1]} : vector<2x256xf32> to vector<1x256xf32>
    %146 = arith.addf %29, %145 : vector<1x256xf32>
    %cst_42 = arith.constant 5.000000e-01 : f32
    %147 = vector.broadcast %cst_42 : f32 to vector<1x256xf32>
    %148 = arith.addf %144, %147 : vector<1x256xf32>
    %149 = arith.negf %148 : vector<1x256xf32>
    %150 = math.exp %149 : vector<1x256xf32>
    %cst_43 = arith.constant 1.000000e+00 : f32
    %151 = vector.broadcast %cst_43 : f32 to vector<1x256xf32>
    %152 = arith.addf %151, %150 : vector<1x256xf32>
    %153 = arith.divf %151, %152 : vector<1x256xf32>
    %cst_44 = arith.constant 1.550000e+01 : f32
    %154 = vector.broadcast %cst_44 : f32 to vector<1x256xf32>
    %155 = arith.subf %144, %154 : vector<1x256xf32>
    %156 = arith.negf %155 : vector<1x256xf32>
    %157 = math.exp %156 : vector<1x256xf32>
    %cst_45 = arith.constant 1.000000e+00 : f32
    %158 = vector.broadcast %cst_45 : f32 to vector<1x256xf32>
    %159 = arith.addf %158, %157 : vector<1x256xf32>
    %160 = arith.divf %158, %159 : vector<1x256xf32>
    %cst_46 = arith.constant 1.000000e+00 : f32
    %161 = vector.broadcast %cst_46 : f32 to vector<1x256xf32>
    %162 = arith.subf %161, %160 : vector<1x256xf32>
    %163 = arith.mulf %153, %162 : vector<1x256xf32>
    %cst_47 = arith.constant 5.000000e-01 : f32
    %164 = vector.broadcast %cst_47 : f32 to vector<1x256xf32>
    %165 = arith.addf %146, %164 : vector<1x256xf32>
    %166 = arith.negf %165 : vector<1x256xf32>
    %167 = math.exp %166 : vector<1x256xf32>
    %cst_48 = arith.constant 1.000000e+00 : f32
    %168 = vector.broadcast %cst_48 : f32 to vector<1x256xf32>
    %169 = arith.addf %168, %167 : vector<1x256xf32>
    %170 = arith.divf %168, %169 : vector<1x256xf32>
    %cst_49 = arith.constant 1.550000e+01 : f32
    %171 = vector.broadcast %cst_49 : f32 to vector<1x256xf32>
    %172 = arith.subf %146, %171 : vector<1x256xf32>
    %173 = arith.negf %172 : vector<1x256xf32>
    %174 = math.exp %173 : vector<1x256xf32>
    %cst_50 = arith.constant 1.000000e+00 : f32
    %175 = vector.broadcast %cst_50 : f32 to vector<1x256xf32>
    %176 = arith.addf %175, %174 : vector<1x256xf32>
    %177 = arith.divf %175, %176 : vector<1x256xf32>
    %cst_51 = arith.constant 1.000000e+00 : f32
    %178 = vector.broadcast %cst_51 : f32 to vector<1x256xf32>
    %179 = arith.subf %178, %177 : vector<1x256xf32>
    %180 = arith.mulf %170, %179 : vector<1x256xf32>
    %181 = arith.mulf %163, %180 : vector<1x256xf32>
    %182 = arith.truncf %21 : vector<2x256xf32> to vector<2x256xbf16>
    %cst_52 = arith.constant dense<0.000000e+00> : vector<2x256xf32>
    %183 = tpu.matmul %182, %142, %cst_52 {dimension_numbers = #tpu.dot_dimension_numbers<[1], [0], [0], [1], [0, 0, 1, 1], [], []>} : vector<2x256xbf16>, vector<256x256xbf16>, vector<2x256xf32> -> vector<2x256xf32>
    %184 = arith.truncf %25 : vector<3x256xf32> to vector<3x256xbf16>
    %cst_53 = arith.constant dense<0.000000e+00> : vector<3x256xf32>
    %185 = tpu.matmul %184, %142, %cst_53 {dimension_numbers = #tpu.dot_dimension_numbers<[1], [0], [0], [1], [0, 0, 1, 1], [], []>} : vector<3x256xbf16>, vector<256x256xbf16>, vector<3x256xf32> -> vector<3x256xf32>
    %186 = arith.mulf %10, %10 : vector<2x256xf32>
    %187 = arith.mulf %183, %183 : vector<2x256xf32>
    %188 = arith.addf %186, %187 : vector<2x256xf32>
    %cst_54 = arith.constant dense<0.000000e+00> : vector<256xf32>
    %189 = vector.multi_reduction <add>, %188, %cst_54 [0] : vector<2x256xf32> to vector<256xf32>
    %190 = vector.shape_cast %189 : vector<256xf32> to vector<1x256xf32>
    %191 = arith.addf %10, %183 : vector<2x256xf32>
    %192 = arith.mulf %191, %191 : vector<2x256xf32>
    %cst_55 = arith.constant dense<0.000000e+00> : vector<256xf32>
    %193 = vector.multi_reduction <add>, %192, %cst_55 [0] : vector<2x256xf32> to vector<256xf32>
    %194 = vector.shape_cast %193 : vector<256xf32> to vector<1x256xf32>
    %cst_56 = arith.constant 0.00999999977 : f32
    %195 = vector.broadcast %cst_56 : f32 to vector<1x256xf32>
    %196 = arith.mulf %195, %190 : vector<1x256xf32>
    %cst_57 = arith.constant 5.000000e-01 : f32
    %197 = vector.broadcast %cst_57 : f32 to vector<1x256xf32>
    %198 = arith.addf %196, %197 : vector<1x256xf32>
    %199 = arith.subf %194, %198 : vector<1x256xf32>
    %200 = arith.negf %199 : vector<1x256xf32>
    %201 = math.exp %200 : vector<1x256xf32>
    %cst_58 = arith.constant 1.000000e+00 : f32
    %202 = vector.broadcast %cst_58 : f32 to vector<1x256xf32>
    %203 = arith.addf %202, %201 : vector<1x256xf32>
    %204 = arith.divf %202, %203 : vector<1x256xf32>
    %cst_59 = arith.constant 1.000000e+00 : f32
    %205 = vector.broadcast %cst_59 : f32 to vector<1x256xf32>
    %206 = arith.subf %205, %204 : vector<1x256xf32>
    %207 = arith.mulf %181, %206 : vector<1x256xf32>
    %208 = arith.subf %23, %185 : vector<3x256xf32>
    %209 = arith.mulf %208, %208 : vector<3x256xf32>
    %cst_60 = arith.constant dense<0.000000e+00> : vector<256xf32>
    %210 = vector.multi_reduction <add>, %209, %cst_60 [0] : vector<3x256xf32> to vector<256xf32>
    %211 = vector.shape_cast %210 : vector<256xf32> to vector<1x256xf32>
    %cst_61 = arith.constant 9.99999974E-6 : f32
    %212 = vector.broadcast %cst_61 : f32 to vector<1x256xf32>
    %213 = arith.addf %211, %212 : vector<1x256xf32>
    %214 = math.sqrt %213 : vector<1x256xf32>
    %215 = arith.mulf %214, %207 : vector<1x256xf32>
    %216 = vector.shape_cast %215 : vector<1x256xf32> to vector<1x1x256xf32>
    %cst_62 = arith.constant dense<0.000000e+00> : vector<1xf32>
    %217 = vector.multi_reduction <add>, %216, %cst_62 [1, 2] : vector<1x1x256xf32> to vector<1xf32>
    %218 = vector.shape_cast %217 : vector<1xf32> to vector<1x1x1xf32>
    %219 = vector.extract %218[0, 0, 0] : f32 from vector<1x1x1xf32>
    %220 = arith.truncf %10 : vector<2x256xf32> to vector<2x256xbf16>
    %cst_63 = arith.constant dense<0.000000e+00> : vector<2x512xf32>
    %221 = tpu.matmul %220, %30, %cst_63 {dimension_numbers = #tpu.dot_dimension_numbers<[1], [0], [0], [1], [0, 0, 1, 1], [], []>} : vector<2x256xbf16>, vector<256x512xbf16>, vector<2x512xf32> -> vector<2x512xf32>
    %222 = arith.mulf %221, %221 : vector<2x512xf32>
    %cst_64 = arith.constant dense<0.000000e+00> : vector<512xf32>
    %223 = vector.multi_reduction <add>, %222, %cst_64 [0] : vector<2x512xf32> to vector<512xf32>
    %224 = vector.shape_cast %223 : vector<512xf32> to vector<1x512xf32>
    %225 = vector.extract_strided_slice %224 {offsets = [0, 0], sizes = [1, 256], strides = [1, 1]} : vector<1x512xf32> to vector<1x256xf32>
    %226 = vector.extract_strided_slice %224 {offsets = [0, 256], sizes = [1, 256], strides = [1, 1]} : vector<1x512xf32> to vector<1x256xf32>
    %227 = arith.addf %225, %226 : vector<1x256xf32>
    %cst_65 = arith.constant 9.99999974E-6 : f32
    %228 = vector.broadcast %cst_65 : f32 to vector<1x256xf32>
    %229 = arith.addf %227, %228 : vector<1x256xf32>
    %230 = math.sqrt %229 : vector<1x256xf32>
    %231 = vector.shape_cast %230 : vector<1x256xf32> to vector<1x1x256xf32>
    %cst_66 = arith.constant dense<0.000000e+00> : vector<1xf32>
    %232 = vector.multi_reduction <add>, %231, %cst_66 [1, 2] : vector<1x1x256xf32> to vector<1xf32>
    %233 = vector.shape_cast %232 : vector<1xf32> to vector<1x1x1xf32>
    %234 = vector.extract %233[0, 0, 0] : f32 from vector<1x1x1xf32>
    %235 = arith.truncf %208 : vector<3x256xf32> to vector<3x256xbf16>
    %cst_67 = arith.constant dense<0.000000e+00> : vector<3x512xf32>
    %236 = tpu.matmul %235, %31, %cst_67 {dimension_numbers = #tpu.dot_dimension_numbers<[1], [0], [0], [1], [0, 0, 1, 1], [], []>} : vector<3x256xbf16>, vector<256x512xbf16>, vector<3x512xf32> -> vector<3x512xf32>
    %237 = arith.mulf %236, %236 : vector<3x512xf32>
    %cst_68 = arith.constant dense<0.000000e+00> : vector<512xf32>
    %238 = vector.multi_reduction <add>, %237, %cst_68 [0] : vector<3x512xf32> to vector<512xf32>
    %239 = vector.shape_cast %238 : vector<512xf32> to vector<1x512xf32>
    %240 = vector.extract_strided_slice %239 {offsets = [0, 0], sizes = [1, 256], strides = [1, 1]} : vector<1x512xf32> to vector<1x256xf32>
    %241 = vector.extract_strided_slice %239 {offsets = [0, 256], sizes = [1, 256], strides = [1, 1]} : vector<1x512xf32> to vector<1x256xf32>
    %242 = arith.addf %240, %241 : vector<1x256xf32>
    %cst_69 = arith.constant 9.99999974E-6 : f32
    %243 = vector.broadcast %cst_69 : f32 to vector<1x256xf32>
    %244 = arith.addf %242, %243 : vector<1x256xf32>
    %245 = math.sqrt %244 : vector<1x256xf32>
    %246 = arith.mulf %245, %207 : vector<1x256xf32>
    %247 = vector.shape_cast %246 : vector<1x256xf32> to vector<1x1x256xf32>
    %cst_70 = arith.constant dense<0.000000e+00> : vector<1xf32>
    %248 = vector.multi_reduction <add>, %247, %cst_70 [1, 2] : vector<1x1x256xf32> to vector<1xf32>
    %249 = vector.shape_cast %248 : vector<1xf32> to vector<1x1x1xf32>
    %250 = vector.extract %249[0, 0, 0] : f32 from vector<1x1x1xf32>
    %cst_71 = arith.constant 1.000000e+00 : f32
    %251 = vector.broadcast %cst_71 : f32 to vector<1x256xf32>
    %252 = arith.subf %251, %207 : vector<1x256xf32>
    %253 = vector.shape_cast %252 : vector<1x256xf32> to vector<1x1x256xf32>
    %cst_72 = arith.constant dense<0.000000e+00> : vector<1xf32>
    %254 = vector.multi_reduction <add>, %253, %cst_72 [1, 2] : vector<1x1x256xf32> to vector<1xf32>
    %255 = vector.shape_cast %254 : vector<1xf32> to vector<1x1x1xf32>
    %256 = vector.extract %255[0, 0, 0] : f32 from vector<1x1x1xf32>
    %cst_73 = arith.constant 9.99999974E-6 : f32
    %257 = vector.broadcast %cst_73 : f32 to vector<1x256xf32>
    %258 = arith.addf %194, %257 : vector<1x256xf32>
    %259 = math.sqrt %258 : vector<1x256xf32>
    %260 = arith.mulf %259, %207 : vector<1x256xf32>
    %261 = vector.shape_cast %260 : vector<1x256xf32> to vector<1x1x256xf32>
    %cst_74 = arith.constant dense<0.000000e+00> : vector<1xf32>
    %262 = vector.multi_reduction <add>, %261, %cst_74 [1, 2] : vector<1x1x256xf32> to vector<1xf32>
    %263 = vector.shape_cast %262 : vector<1xf32> to vector<1x1x1xf32>
    %264 = vector.extract %263[0, 0, 0] : f32 from vector<1x1x1xf32>
    %265 = vector.extract_strided_slice %21 {offsets = [0, 0], sizes = [1, 256], strides = [1, 1]} : vector<2x256xf32> to vector<1x256xf32>
    %266 = arith.addf %28, %265 : vector<1x256xf32>
    %267 = vector.extract_strided_slice %21 {offsets = [1, 0], sizes = [1, 256], strides = [1, 1]} : vector<2x256xf32> to vector<1x256xf32>
    %268 = arith.addf %29, %267 : vector<1x256xf32>
    %269 = math.floor %266 : vector<1x256xf32>
    %270 = math.floor %268 : vector<1x256xf32>
    %271 = arith.subf %266, %269 : vector<1x256xf32>
    %272 = arith.subf %268, %270 : vector<1x256xf32>
    %273 = arith.fptosi %269 : vector<1x256xf32> to vector<1x256xi32>
    %274 = arith.fptosi %270 : vector<1x256xf32> to vector<1x256xi32>
    %275 = vector.broadcast %273 : vector<1x256xi32> to vector<16x256xi32>
    %276 = arith.cmpi eq, %32, %275 : vector<16x256xi32>
    %cst_75 = arith.constant 1.000000e+00 : f32
    %277 = vector.broadcast %cst_75 : f32 to vector<1x256xf32>
    %278 = arith.subf %277, %271 : vector<1x256xf32>
    %cst_76 = arith.constant 0.000000e+00 : f32
    %279 = vector.shape_cast %278 : vector<1x256xf32> to vector<1x256xf32>
    %280 = vector.broadcast %279 : vector<1x256xf32> to vector<16x256xf32>
    %281 = vector.broadcast %cst_76 : f32 to vector<16x256xf32>
    %282 = arith.select %276, %280, %281 : vector<16x256xi1>, vector<16x256xf32>
    %c1_i32_77 = arith.constant 1 : i32
    %283 = vector.broadcast %c1_i32_77 : i32 to vector<1x256xi32>
    %284 = arith.addi %273, %283 : vector<1x256xi32>
    %285 = vector.broadcast %284 : vector<1x256xi32> to vector<16x256xi32>
    %286 = arith.cmpi eq, %32, %285 : vector<16x256xi32>
    %cst_78 = arith.constant 0.000000e+00 : f32
    %287 = vector.shape_cast %271 : vector<1x256xf32> to vector<1x256xf32>
    %288 = vector.broadcast %287 : vector<1x256xf32> to vector<16x256xf32>
    %289 = vector.broadcast %cst_78 : f32 to vector<16x256xf32>
    %290 = arith.select %286, %288, %289 : vector<16x256xi1>, vector<16x256xf32>
    %291 = arith.addf %282, %290 : vector<16x256xf32>
    %292 = vector.broadcast %274 : vector<1x256xi32> to vector<16x256xi32>
    %293 = arith.cmpi eq, %33, %292 : vector<16x256xi32>
    %cst_79 = arith.constant 1.000000e+00 : f32
    %294 = vector.broadcast %cst_79 : f32 to vector<1x256xf32>
    %295 = arith.subf %294, %272 : vector<1x256xf32>
    %cst_80 = arith.constant 0.000000e+00 : f32
    %296 = vector.shape_cast %295 : vector<1x256xf32> to vector<1x256xf32>
    %297 = vector.broadcast %296 : vector<1x256xf32> to vector<16x256xf32>
    %298 = vector.broadcast %cst_80 : f32 to vector<16x256xf32>
    %299 = arith.select %293, %297, %298 : vector<16x256xi1>, vector<16x256xf32>
    %c1_i32_81 = arith.constant 1 : i32
    %300 = vector.broadcast %c1_i32_81 : i32 to vector<1x256xi32>
    %301 = arith.addi %274, %300 : vector<1x256xi32>
    %302 = vector.broadcast %301 : vector<1x256xi32> to vector<16x256xi32>
    %303 = arith.cmpi eq, %33, %302 : vector<16x256xi32>
    %cst_82 = arith.constant 0.000000e+00 : f32
    %304 = vector.shape_cast %272 : vector<1x256xf32> to vector<1x256xf32>
    %305 = vector.broadcast %304 : vector<1x256xf32> to vector<16x256xf32>
    %306 = vector.broadcast %cst_82 : f32 to vector<16x256xf32>
    %307 = arith.select %303, %305, %306 : vector<16x256xi1>, vector<16x256xf32>
    %308 = arith.addf %299, %307 : vector<16x256xf32>
    %309 = vector.extract_strided_slice %308 {offsets = [0, 0], sizes = [1, 256], strides = [1, 1]} : vector<16x256xf32> to vector<1x256xf32>
    %310 = vector.broadcast %309 : vector<1x256xf32> to vector<16x256xf32>
    %311 = arith.mulf %310, %291 : vector<16x256xf32>
    %312 = arith.truncf %311 : vector<16x256xf32> to vector<16x256xbf16>
    %313 = vector.extract_strided_slice %308 {offsets = [1, 0], sizes = [1, 256], strides = [1, 1]} : vector<16x256xf32> to vector<1x256xf32>
    %314 = vector.broadcast %313 : vector<1x256xf32> to vector<16x256xf32>
    %315 = arith.mulf %314, %291 : vector<16x256xf32>
    %316 = arith.truncf %315 : vector<16x256xf32> to vector<16x256xbf16>
    %317 = vector.extract_strided_slice %308 {offsets = [2, 0], sizes = [1, 256], strides = [1, 1]} : vector<16x256xf32> to vector<1x256xf32>
    %318 = vector.broadcast %317 : vector<1x256xf32> to vector<16x256xf32>
    %319 = arith.mulf %318, %291 : vector<16x256xf32>
    %320 = arith.truncf %319 : vector<16x256xf32> to vector<16x256xbf16>
    %321 = vector.extract_strided_slice %308 {offsets = [3, 0], sizes = [1, 256], strides = [1, 1]} : vector<16x256xf32> to vector<1x256xf32>
    %322 = vector.broadcast %321 : vector<1x256xf32> to vector<16x256xf32>
    %323 = arith.mulf %322, %291 : vector<16x256xf32>
    %324 = arith.truncf %323 : vector<16x256xf32> to vector<16x256xbf16>
    %325 = vector.extract_strided_slice %308 {offsets = [4, 0], sizes = [1, 256], strides = [1, 1]} : vector<16x256xf32> to vector<1x256xf32>
    %326 = vector.broadcast %325 : vector<1x256xf32> to vector<16x256xf32>
    %327 = arith.mulf %326, %291 : vector<16x256xf32>
    %328 = arith.truncf %327 : vector<16x256xf32> to vector<16x256xbf16>
    %329 = vector.extract_strided_slice %308 {offsets = [5, 0], sizes = [1, 256], strides = [1, 1]} : vector<16x256xf32> to vector<1x256xf32>
    %330 = vector.broadcast %329 : vector<1x256xf32> to vector<16x256xf32>
    %331 = arith.mulf %330, %291 : vector<16x256xf32>
    %332 = arith.truncf %331 : vector<16x256xf32> to vector<16x256xbf16>
    %333 = vector.extract_strided_slice %308 {offsets = [6, 0], sizes = [1, 256], strides = [1, 1]} : vector<16x256xf32> to vector<1x256xf32>
    %334 = vector.broadcast %333 : vector<1x256xf32> to vector<16x256xf32>
    %335 = arith.mulf %334, %291 : vector<16x256xf32>
    %336 = arith.truncf %335 : vector<16x256xf32> to vector<16x256xbf16>
    %337 = vector.extract_strided_slice %308 {offsets = [7, 0], sizes = [1, 256], strides = [1, 1]} : vector<16x256xf32> to vector<1x256xf32>
    %338 = vector.broadcast %337 : vector<1x256xf32> to vector<16x256xf32>
    %339 = arith.mulf %338, %291 : vector<16x256xf32>
    %340 = arith.truncf %339 : vector<16x256xf32> to vector<16x256xbf16>
    %341 = vector.extract_strided_slice %308 {offsets = [8, 0], sizes = [1, 256], strides = [1, 1]} : vector<16x256xf32> to vector<1x256xf32>
    %342 = vector.broadcast %341 : vector<1x256xf32> to vector<16x256xf32>
    %343 = arith.mulf %342, %291 : vector<16x256xf32>
    %344 = arith.truncf %343 : vector<16x256xf32> to vector<16x256xbf16>
    %345 = vector.extract_strided_slice %308 {offsets = [9, 0], sizes = [1, 256], strides = [1, 1]} : vector<16x256xf32> to vector<1x256xf32>
    %346 = vector.broadcast %345 : vector<1x256xf32> to vector<16x256xf32>
    %347 = arith.mulf %346, %291 : vector<16x256xf32>
    %348 = arith.truncf %347 : vector<16x256xf32> to vector<16x256xbf16>
    %349 = vector.extract_strided_slice %308 {offsets = [10, 0], sizes = [1, 256], strides = [1, 1]} : vector<16x256xf32> to vector<1x256xf32>
    %350 = vector.broadcast %349 : vector<1x256xf32> to vector<16x256xf32>
    %351 = arith.mulf %350, %291 : vector<16x256xf32>
    %352 = arith.truncf %351 : vector<16x256xf32> to vector<16x256xbf16>
    %353 = vector.extract_strided_slice %308 {offsets = [11, 0], sizes = [1, 256], strides = [1, 1]} : vector<16x256xf32> to vector<1x256xf32>
    %354 = vector.broadcast %353 : vector<1x256xf32> to vector<16x256xf32>
    %355 = arith.mulf %354, %291 : vector<16x256xf32>
    %356 = arith.truncf %355 : vector<16x256xf32> to vector<16x256xbf16>
    %357 = vector.extract_strided_slice %308 {offsets = [12, 0], sizes = [1, 256], strides = [1, 1]} : vector<16x256xf32> to vector<1x256xf32>
    %358 = vector.broadcast %357 : vector<1x256xf32> to vector<16x256xf32>
    %359 = arith.mulf %358, %291 : vector<16x256xf32>
    %360 = arith.truncf %359 : vector<16x256xf32> to vector<16x256xbf16>
    %361 = vector.extract_strided_slice %308 {offsets = [13, 0], sizes = [1, 256], strides = [1, 1]} : vector<16x256xf32> to vector<1x256xf32>
    %362 = vector.broadcast %361 : vector<1x256xf32> to vector<16x256xf32>
    %363 = arith.mulf %362, %291 : vector<16x256xf32>
    %364 = arith.truncf %363 : vector<16x256xf32> to vector<16x256xbf16>
    %365 = vector.extract_strided_slice %308 {offsets = [14, 0], sizes = [1, 256], strides = [1, 1]} : vector<16x256xf32> to vector<1x256xf32>
    %366 = vector.broadcast %365 : vector<1x256xf32> to vector<16x256xf32>
    %367 = arith.mulf %366, %291 : vector<16x256xf32>
    %368 = arith.truncf %367 : vector<16x256xf32> to vector<16x256xbf16>
    %369 = vector.extract_strided_slice %308 {offsets = [15, 0], sizes = [1, 256], strides = [1, 1]} : vector<16x256xf32> to vector<1x256xf32>
    %370 = vector.broadcast %369 : vector<1x256xf32> to vector<16x256xf32>
    %371 = arith.mulf %370, %291 : vector<16x256xf32>
    %372 = arith.truncf %371 : vector<16x256xf32> to vector<16x256xbf16>
    %373 = tpu.concatenate %312, %316, %320, %324, %328, %332, %336, %340, %344, %348, %352, %356, %360, %364, %368, %372 in 0 : vector<16x256xbf16>, vector<16x256xbf16>, vector<16x256xbf16>, vector<16x256xbf16>, vector<16x256xbf16>, vector<16x256xbf16>, vector<16x256xbf16>, vector<16x256xbf16>, vector<16x256xbf16>, vector<16x256xbf16>, vector<16x256xbf16>, vector<16x256xbf16>, vector<16x256xbf16>, vector<16x256xbf16>, vector<16x256xbf16>, vector<16x256xbf16> -> vector<256x256xbf16>
    %374 = vector.extract_strided_slice %21 {offsets = [0, 0], sizes = [1, 256], strides = [1, 1]} : vector<2x256xf32> to vector<1x256xf32>
    %375 = arith.addf %28, %374 : vector<1x256xf32>
    %376 = vector.extract_strided_slice %21 {offsets = [1, 0], sizes = [1, 256], strides = [1, 1]} : vector<2x256xf32> to vector<1x256xf32>
    %377 = arith.addf %29, %376 : vector<1x256xf32>
    %cst_83 = arith.constant 5.000000e-01 : f32
    %378 = vector.broadcast %cst_83 : f32 to vector<1x256xf32>
    %379 = arith.addf %375, %378 : vector<1x256xf32>
    %380 = arith.negf %379 : vector<1x256xf32>
    %381 = math.exp %380 : vector<1x256xf32>
    %cst_84 = arith.constant 1.000000e+00 : f32
    %382 = vector.broadcast %cst_84 : f32 to vector<1x256xf32>
    %383 = arith.addf %382, %381 : vector<1x256xf32>
    %384 = arith.divf %382, %383 : vector<1x256xf32>
    %cst_85 = arith.constant 1.550000e+01 : f32
    %385 = vector.broadcast %cst_85 : f32 to vector<1x256xf32>
    %386 = arith.subf %375, %385 : vector<1x256xf32>
    %387 = arith.negf %386 : vector<1x256xf32>
    %388 = math.exp %387 : vector<1x256xf32>
    %cst_86 = arith.constant 1.000000e+00 : f32
    %389 = vector.broadcast %cst_86 : f32 to vector<1x256xf32>
    %390 = arith.addf %389, %388 : vector<1x256xf32>
    %391 = arith.divf %389, %390 : vector<1x256xf32>
    %cst_87 = arith.constant 1.000000e+00 : f32
    %392 = vector.broadcast %cst_87 : f32 to vector<1x256xf32>
    %393 = arith.subf %392, %391 : vector<1x256xf32>
    %394 = arith.mulf %384, %393 : vector<1x256xf32>
    %cst_88 = arith.constant 5.000000e-01 : f32
    %395 = vector.broadcast %cst_88 : f32 to vector<1x256xf32>
    %396 = arith.addf %377, %395 : vector<1x256xf32>
    %397 = arith.negf %396 : vector<1x256xf32>
    %398 = math.exp %397 : vector<1x256xf32>
    %cst_89 = arith.constant 1.000000e+00 : f32
    %399 = vector.broadcast %cst_89 : f32 to vector<1x256xf32>
    %400 = arith.addf %399, %398 : vector<1x256xf32>
    %401 = arith.divf %399, %400 : vector<1x256xf32>
    %cst_90 = arith.constant 1.550000e+01 : f32
    %402 = vector.broadcast %cst_90 : f32 to vector<1x256xf32>
    %403 = arith.subf %377, %402 : vector<1x256xf32>
    %404 = arith.negf %403 : vector<1x256xf32>
    %405 = math.exp %404 : vector<1x256xf32>
    %cst_91 = arith.constant 1.000000e+00 : f32
    %406 = vector.broadcast %cst_91 : f32 to vector<1x256xf32>
    %407 = arith.addf %406, %405 : vector<1x256xf32>
    %408 = arith.divf %406, %407 : vector<1x256xf32>
    %cst_92 = arith.constant 1.000000e+00 : f32
    %409 = vector.broadcast %cst_92 : f32 to vector<1x256xf32>
    %410 = arith.subf %409, %408 : vector<1x256xf32>
    %411 = arith.mulf %401, %410 : vector<1x256xf32>
    %412 = arith.mulf %394, %411 : vector<1x256xf32>
    %413 = arith.truncf %10 : vector<2x256xf32> to vector<2x256xbf16>
    %cst_93 = arith.constant dense<0.000000e+00> : vector<2x256xf32>
    %414 = tpu.matmul %413, %373, %cst_93 {dimension_numbers = #tpu.dot_dimension_numbers<[1], [0], [0], [1], [0, 0, 1, 1], [], []>} : vector<2x256xbf16>, vector<256x256xbf16>, vector<2x256xf32> -> vector<2x256xf32>
    %415 = arith.truncf %23 : vector<3x256xf32> to vector<3x256xbf16>
    %cst_94 = arith.constant dense<0.000000e+00> : vector<3x256xf32>
    %416 = tpu.matmul %415, %373, %cst_94 {dimension_numbers = #tpu.dot_dimension_numbers<[1], [0], [0], [1], [0, 0, 1, 1], [], []>} : vector<3x256xbf16>, vector<256x256xbf16>, vector<3x256xf32> -> vector<3x256xf32>
    %417 = arith.mulf %21, %21 : vector<2x256xf32>
    %418 = arith.mulf %414, %414 : vector<2x256xf32>
    %419 = arith.addf %417, %418 : vector<2x256xf32>
    %cst_95 = arith.constant dense<0.000000e+00> : vector<256xf32>
    %420 = vector.multi_reduction <add>, %419, %cst_95 [0] : vector<2x256xf32> to vector<256xf32>
    %421 = vector.shape_cast %420 : vector<256xf32> to vector<1x256xf32>
    %422 = arith.addf %21, %414 : vector<2x256xf32>
    %423 = arith.mulf %422, %422 : vector<2x256xf32>
    %cst_96 = arith.constant dense<0.000000e+00> : vector<256xf32>
    %424 = vector.multi_reduction <add>, %423, %cst_96 [0] : vector<2x256xf32> to vector<256xf32>
    %425 = vector.shape_cast %424 : vector<256xf32> to vector<1x256xf32>
    %cst_97 = arith.constant 0.00999999977 : f32
    %426 = vector.broadcast %cst_97 : f32 to vector<1x256xf32>
    %427 = arith.mulf %426, %421 : vector<1x256xf32>
    %cst_98 = arith.constant 5.000000e-01 : f32
    %428 = vector.broadcast %cst_98 : f32 to vector<1x256xf32>
    %429 = arith.addf %427, %428 : vector<1x256xf32>
    %430 = arith.subf %425, %429 : vector<1x256xf32>
    %431 = arith.negf %430 : vector<1x256xf32>
    %432 = math.exp %431 : vector<1x256xf32>
    %cst_99 = arith.constant 1.000000e+00 : f32
    %433 = vector.broadcast %cst_99 : f32 to vector<1x256xf32>
    %434 = arith.addf %433, %432 : vector<1x256xf32>
    %435 = arith.divf %433, %434 : vector<1x256xf32>
    %cst_100 = arith.constant 1.000000e+00 : f32
    %436 = vector.broadcast %cst_100 : f32 to vector<1x256xf32>
    %437 = arith.subf %436, %435 : vector<1x256xf32>
    %438 = arith.mulf %412, %437 : vector<1x256xf32>
    %439 = arith.subf %25, %416 : vector<3x256xf32>
    %440 = arith.mulf %439, %439 : vector<3x256xf32>
    %cst_101 = arith.constant dense<0.000000e+00> : vector<256xf32>
    %441 = vector.multi_reduction <add>, %440, %cst_101 [0] : vector<3x256xf32> to vector<256xf32>
    %442 = vector.shape_cast %441 : vector<256xf32> to vector<1x256xf32>
    %cst_102 = arith.constant 9.99999974E-6 : f32
    %443 = vector.broadcast %cst_102 : f32 to vector<1x256xf32>
    %444 = arith.addf %442, %443 : vector<1x256xf32>
    %445 = math.sqrt %444 : vector<1x256xf32>
    %446 = arith.mulf %445, %438 : vector<1x256xf32>
    %447 = vector.shape_cast %446 : vector<1x256xf32> to vector<1x1x256xf32>
    %cst_103 = arith.constant dense<0.000000e+00> : vector<1xf32>
    %448 = vector.multi_reduction <add>, %447, %cst_103 [1, 2] : vector<1x1x256xf32> to vector<1xf32>
    %449 = vector.shape_cast %448 : vector<1xf32> to vector<1x1x1xf32>
    %450 = vector.extract %449[0, 0, 0] : f32 from vector<1x1x1xf32>
    %451 = arith.truncf %21 : vector<2x256xf32> to vector<2x256xbf16>
    %cst_104 = arith.constant dense<0.000000e+00> : vector<2x512xf32>
    %452 = tpu.matmul %451, %30, %cst_104 {dimension_numbers = #tpu.dot_dimension_numbers<[1], [0], [0], [1], [0, 0, 1, 1], [], []>} : vector<2x256xbf16>, vector<256x512xbf16>, vector<2x512xf32> -> vector<2x512xf32>
    %453 = arith.mulf %452, %452 : vector<2x512xf32>
    %cst_105 = arith.constant dense<0.000000e+00> : vector<512xf32>
    %454 = vector.multi_reduction <add>, %453, %cst_105 [0] : vector<2x512xf32> to vector<512xf32>
    %455 = vector.shape_cast %454 : vector<512xf32> to vector<1x512xf32>
    %456 = vector.extract_strided_slice %455 {offsets = [0, 0], sizes = [1, 256], strides = [1, 1]} : vector<1x512xf32> to vector<1x256xf32>
    %457 = vector.extract_strided_slice %455 {offsets = [0, 256], sizes = [1, 256], strides = [1, 1]} : vector<1x512xf32> to vector<1x256xf32>
    %458 = arith.addf %456, %457 : vector<1x256xf32>
    %cst_106 = arith.constant 9.99999974E-6 : f32
    %459 = vector.broadcast %cst_106 : f32 to vector<1x256xf32>
    %460 = arith.addf %458, %459 : vector<1x256xf32>
    %461 = math.sqrt %460 : vector<1x256xf32>
    %462 = vector.shape_cast %461 : vector<1x256xf32> to vector<1x1x256xf32>
    %cst_107 = arith.constant dense<0.000000e+00> : vector<1xf32>
    %463 = vector.multi_reduction <add>, %462, %cst_107 [1, 2] : vector<1x1x256xf32> to vector<1xf32>
    %464 = vector.shape_cast %463 : vector<1xf32> to vector<1x1x1xf32>
    %465 = vector.extract %464[0, 0, 0] : f32 from vector<1x1x1xf32>
    %466 = arith.truncf %439 : vector<3x256xf32> to vector<3x256xbf16>
    %cst_108 = arith.constant dense<0.000000e+00> : vector<3x512xf32>
    %467 = tpu.matmul %466, %31, %cst_108 {dimension_numbers = #tpu.dot_dimension_numbers<[1], [0], [0], [1], [0, 0, 1, 1], [], []>} : vector<3x256xbf16>, vector<256x512xbf16>, vector<3x512xf32> -> vector<3x512xf32>
    %468 = arith.mulf %467, %467 : vector<3x512xf32>
    %cst_109 = arith.constant dense<0.000000e+00> : vector<512xf32>
    %469 = vector.multi_reduction <add>, %468, %cst_109 [0] : vector<3x512xf32> to vector<512xf32>
    %470 = vector.shape_cast %469 : vector<512xf32> to vector<1x512xf32>
    %471 = vector.extract_strided_slice %470 {offsets = [0, 0], sizes = [1, 256], strides = [1, 1]} : vector<1x512xf32> to vector<1x256xf32>
    %472 = vector.extract_strided_slice %470 {offsets = [0, 256], sizes = [1, 256], strides = [1, 1]} : vector<1x512xf32> to vector<1x256xf32>
    %473 = arith.addf %471, %472 : vector<1x256xf32>
    %cst_110 = arith.constant 9.99999974E-6 : f32
    %474 = vector.broadcast %cst_110 : f32 to vector<1x256xf32>
    %475 = arith.addf %473, %474 : vector<1x256xf32>
    %476 = math.sqrt %475 : vector<1x256xf32>
    %477 = arith.mulf %476, %438 : vector<1x256xf32>
    %478 = vector.shape_cast %477 : vector<1x256xf32> to vector<1x1x256xf32>
    %cst_111 = arith.constant dense<0.000000e+00> : vector<1xf32>
    %479 = vector.multi_reduction <add>, %478, %cst_111 [1, 2] : vector<1x1x256xf32> to vector<1xf32>
    %480 = vector.shape_cast %479 : vector<1xf32> to vector<1x1x1xf32>
    %481 = vector.extract %480[0, 0, 0] : f32 from vector<1x1x1xf32>
    %cst_112 = arith.constant 1.000000e+00 : f32
    %482 = vector.broadcast %cst_112 : f32 to vector<1x256xf32>
    %483 = arith.subf %482, %438 : vector<1x256xf32>
    %484 = vector.shape_cast %483 : vector<1x256xf32> to vector<1x1x256xf32>
    %cst_113 = arith.constant dense<0.000000e+00> : vector<1xf32>
    %485 = vector.multi_reduction <add>, %484, %cst_113 [1, 2] : vector<1x1x256xf32> to vector<1xf32>
    %486 = vector.shape_cast %485 : vector<1xf32> to vector<1x1x1xf32>
    %487 = vector.extract %486[0, 0, 0] : f32 from vector<1x1x1xf32>
    %cst_114 = arith.constant 9.99999974E-6 : f32
    %488 = vector.broadcast %cst_114 : f32 to vector<1x256xf32>
    %489 = arith.addf %425, %488 : vector<1x256xf32>
    %490 = math.sqrt %489 : vector<1x256xf32>
    %491 = arith.mulf %490, %438 : vector<1x256xf32>
    %492 = vector.shape_cast %491 : vector<1x256xf32> to vector<1x1x256xf32>
    %cst_115 = arith.constant dense<0.000000e+00> : vector<1xf32>
    %493 = vector.multi_reduction <add>, %492, %cst_115 [1, 2] : vector<1x1x256xf32> to vector<1xf32>
    %494 = vector.shape_cast %493 : vector<1xf32> to vector<1x1x1xf32>
    %495 = vector.extract %494[0, 0, 0] : f32 from vector<1x1x1xf32>
    %496 = vector.shape_cast %3 : vector<2x256xf32> to vector<1x2x256xf32>
    %cst_116 = arith.constant dense<0.000000e+00> : vector<1xf32>
    %497 = vector.multi_reduction <add>, %496, %cst_116 [1, 2] : vector<1x2x256xf32> to vector<1xf32>
    %498 = vector.shape_cast %497 : vector<1xf32> to vector<1x1x1xf32>
    %499 = vector.extract %498[0, 0, 0] : f32 from vector<1x1x1xf32>
    %cst_117 = arith.constant 5.000000e-01 : f32
    %500 = arith.mulf %cst_117, %499 : f32
    %501 = vector.shape_cast %14 : vector<2x256xf32> to vector<1x2x256xf32>
    %cst_118 = arith.constant dense<0.000000e+00> : vector<1xf32>
    %502 = vector.multi_reduction <add>, %501, %cst_118 [1, 2] : vector<1x2x256xf32> to vector<1xf32>
    %503 = vector.shape_cast %502 : vector<1xf32> to vector<1x1x1xf32>
    %504 = vector.extract %503[0, 0, 0] : f32 from vector<1x1x1xf32>
    %cst_119 = arith.constant 5.000000e-01 : f32
    %505 = arith.mulf %cst_119, %504 : f32
    %506 = arith.addf %500, %505 : f32
    %507 = arith.subf %1, %27 : vector<2x256xf32>
    %508 = arith.mulf %507, %507 : vector<2x256xf32>
    %cst_120 = arith.constant dense<0.000000e+00> : vector<256xf32>
    %509 = vector.multi_reduction <add>, %508, %cst_120 [0] : vector<2x256xf32> to vector<256xf32>
    %510 = vector.shape_cast %509 : vector<256xf32> to vector<1x256xf32>
    %511 = math.sqrt %510 : vector<1x256xf32>
    %512 = vector.shape_cast %511 : vector<1x256xf32> to vector<1x1x256xf32>
    %cst_121 = arith.constant dense<0.000000e+00> : vector<1xf32>
    %513 = vector.multi_reduction <add>, %512, %cst_121 [1, 2] : vector<1x1x256xf32> to vector<1xf32>
    %514 = vector.shape_cast %513 : vector<1xf32> to vector<1x1x1xf32>
    %515 = vector.extract %514[0, 0, 0] : f32 from vector<1x1x1xf32>
    %516 = arith.addf %256, %487 : f32
    %517 = arith.addf %219, %450 : f32
    %518 = arith.addf %234, %465 : f32
    %519 = arith.addf %250, %481 : f32
    %520 = arith.addf %264, %495 : f32
    %521 = tpu.iota {dimensions = array<i32: 1>} : vector<1x128xi32>
    %cst_122 = arith.constant 0.000000e+00 : f32
    %522 = vector.broadcast %cst_122 : f32 to vector<1x128xf32>
    %c0_i32 = arith.constant 0 : i32
    %523 = vector.broadcast %c0_i32 : i32 to vector<1x128xi32>
    %524 = arith.cmpi eq, %521, %523 : vector<1x128xi32>
    %525 = vector.broadcast %516 : f32 to vector<1x128xf32>
    %526 = arith.select %524, %525, %522 : vector<1x128xi1>, vector<1x128xf32>
    %c1_i32_123 = arith.constant 1 : i32
    %527 = vector.broadcast %c1_i32_123 : i32 to vector<1x128xi32>
    %528 = arith.cmpi eq, %521, %527 : vector<1x128xi32>
    %529 = vector.broadcast %517 : f32 to vector<1x128xf32>
    %530 = arith.select %528, %529, %526 : vector<1x128xi1>, vector<1x128xf32>
    %c2_i32 = arith.constant 2 : i32
    %531 = vector.broadcast %c2_i32 : i32 to vector<1x128xi32>
    %532 = arith.cmpi eq, %521, %531 : vector<1x128xi32>
    %533 = vector.broadcast %518 : f32 to vector<1x128xf32>
    %534 = arith.select %532, %533, %530 : vector<1x128xi1>, vector<1x128xf32>
    %c3_i32 = arith.constant 3 : i32
    %535 = vector.broadcast %c3_i32 : i32 to vector<1x128xi32>
    %536 = arith.cmpi eq, %521, %535 : vector<1x128xi32>
    %537 = vector.broadcast %519 : f32 to vector<1x128xf32>
    %538 = arith.select %536, %537, %534 : vector<1x128xi1>, vector<1x128xf32>
    %c4_i32 = arith.constant 4 : i32
    %539 = vector.broadcast %c4_i32 : i32 to vector<1x128xi32>
    %540 = arith.cmpi eq, %521, %539 : vector<1x128xi32>
    %541 = vector.broadcast %520 : f32 to vector<1x128xf32>
    %542 = arith.select %540, %541, %538 : vector<1x128xi1>, vector<1x128xf32>
    %c5_i32 = arith.constant 5 : i32
    %543 = vector.broadcast %c5_i32 : i32 to vector<1x128xi32>
    %544 = arith.cmpi eq, %521, %543 : vector<1x128xi32>
    %545 = vector.broadcast %506 : f32 to vector<1x128xf32>
    %546 = arith.select %544, %545, %542 : vector<1x128xi1>, vector<1x128xf32>
    %c6_i32 = arith.constant 6 : i32
    %547 = vector.broadcast %c6_i32 : i32 to vector<1x128xi32>
    %548 = arith.cmpi eq, %521, %547 : vector<1x128xi32>
    %549 = vector.broadcast %515 : f32 to vector<1x128xf32>
    %550 = arith.select %548, %549, %546 : vector<1x128xi1>, vector<1x128xf32>
    %c0_124 = arith.constant 0 : index
    %c0_125 = arith.constant 0 : index
    %c0_126 = arith.constant 0 : index
    %551 = vector.load %arg14[%c0_124, %c0_125, %c0_126] : memref<1x1x128xf32, #tpu.memory_space<vmem>>, vector<1x1x128xf32>
    %552 = vector.shape_cast %551 : vector<1x1x128xf32> to vector<1x128xf32>
    %553 = vector.shape_cast %550 : vector<1x128xf32> to vector<1x1x128xf32>
    tpu.vector_store %arg14[%c0_124, %c0_125, %c0_126], %553 {strides = array<i32>} : memref<1x1x128xf32, #tpu.memory_space<vmem>>, vector<1x1x128xf32>,
    %c0_127 = arith.constant 0 : index
    %c0_128 = arith.constant 0 : index
    %c0_129 = arith.constant 0 : index
    %554 = vector.load %arg15[%c0_127, %c0_128, %c0_129] : memref<1x1x256xf32, #tpu.memory_space<vmem>>, vector<1x1x256xf32>
    %555 = vector.shape_cast %554 : vector<1x1x256xf32> to vector<1x256xf32>
    %556 = vector.shape_cast %207 : vector<1x256xf32> to vector<1x1x256xf32>
    tpu.vector_store %arg15[%c0_127, %c0_128, %c0_129], %556 {strides = array<i32>} : memref<1x1x256xf32, #tpu.memory_space<vmem>>, vector<1x1x256xf32>,
    %c0_130 = arith.constant 0 : index
    %c0_131 = arith.constant 0 : index
    %c0_132 = arith.constant 0 : index
    %557 = vector.load %arg16[%c0_130, %c0_131, %c0_132] : memref<1x1x256xf32, #tpu.memory_space<vmem>>, vector<1x1x256xf32>
    %558 = vector.shape_cast %557 : vector<1x1x256xf32> to vector<1x256xf32>
    %559 = vector.shape_cast %438 : vector<1x256xf32> to vector<1x1x256xf32>
    tpu.vector_store %arg16[%c0_130, %c0_131, %c0_132], %559 {strides = array<i32>} : memref<1x1x256xf32, #tpu.memory_space<vmem>>, vector<1x1x256xf32>,
    return
  }
  func.func @transform_0(%arg0: i32) -> (i32, i32, i32) {
    %c0_i32 = arith.constant 0 : i32
    %c0_i32_0 = arith.constant 0 : i32
    %c0_i32_1 = arith.constant 0 : i32
    return %arg0, %c0_i32, %c0_i32_0 : i32, i32, i32
  }
  func.func @transform_1(%arg0: i32) -> (i32, i32, i32) {
    %c0_i32 = arith.constant 0 : i32
    %c0_i32_0 = arith.constant 0 : i32
    %c0_i32_1 = arith.constant 0 : i32
    return %arg0, %c0_i32, %c0_i32_0 : i32, i32, i32
  }
  func.func @transform_2(%arg0: i32) -> (i32, i32, i32) {
    %c0_i32 = arith.constant 0 : i32
    %c0_i32_0 = arith.constant 0 : i32
    %c0_i32_1 = arith.constant 0 : i32
    return %arg0, %c0_i32, %c0_i32_0 : i32, i32, i32
  }
  func.func @transform_3(%arg0: i32) -> (i32, i32, i32) {
    %c0_i32 = arith.constant 0 : i32
    %c0_i32_0 = arith.constant 0 : i32
    %c0_i32_1 = arith.constant 0 : i32
    return %arg0, %c0_i32, %c0_i32_0 : i32, i32, i32
  }
  func.func @transform_4(%arg0: i32) -> (i32, i32, i32) {
    %c0_i32 = arith.constant 0 : i32
    %c0_i32_0 = arith.constant 0 : i32
    %c0_i32_1 = arith.constant 0 : i32
    return %arg0, %c0_i32, %c0_i32_0 : i32, i32, i32
  }
  func.func @transform_5(%arg0: i32) -> (i32, i32, i32) {
    %c0_i32 = arith.constant 0 : i32
    %c0_i32_0 = arith.constant 0 : i32
    %c0_i32_1 = arith.constant 0 : i32
    return %arg0, %c0_i32, %c0_i32_0 : i32, i32, i32
  }
  func.func @transform_6(%arg0: i32) -> (i32, i32, i32) {
    %c0_i32 = arith.constant 0 : i32
    %c0_i32_0 = arith.constant 0 : i32
    %c0_i32_1 = arith.constant 0 : i32
    return %arg0, %c0_i32, %c0_i32_0 : i32, i32, i32
  }
  func.func @transform_7(%arg0: i32) -> (i32, i32, i32) {
    %c0_i32 = arith.constant 0 : i32
    %c0_i32_0 = arith.constant 0 : i32
    %c0_i32_1 = arith.constant 0 : i32
    return %arg0, %c0_i32, %c0_i32_0 : i32, i32, i32
  }
  func.func @transform_8(%arg0: i32) -> (i32, i32, i32) {
    %c0_i32 = arith.constant 0 : i32
    %c0_i32_0 = arith.constant 0 : i32
    %c0_i32_1 = arith.constant 0 : i32
    return %arg0, %c0_i32, %c0_i32_0 : i32, i32, i32
  }
  func.func @transform_9(%arg0: i32) -> (i32, i32) {
    %c0_i32 = arith.constant 0 : i32
    %c0_i32_0 = arith.constant 0 : i32
    %c0_i32_1 = arith.constant 0 : i32
    return %c0_i32, %c0_i32_0 : i32, i32
  }
  func.func @transform_10(%arg0: i32) -> (i32, i32) {
    %c0_i32 = arith.constant 0 : i32
    %c0_i32_0 = arith.constant 0 : i32
    %c0_i32_1 = arith.constant 0 : i32
    return %c0_i32, %c0_i32_0 : i32, i32
  }
  func.func @transform_11(%arg0: i32) -> (i32, i32) {
    %c0_i32 = arith.constant 0 : i32
    %c0_i32_0 = arith.constant 0 : i32
    %c0_i32_1 = arith.constant 0 : i32
    return %c0_i32, %c0_i32_0 : i32, i32
  }
  func.func @transform_12(%arg0: i32) -> (i32, i32) {
    %c0_i32 = arith.constant 0 : i32
    %c0_i32_0 = arith.constant 0 : i32
    %c0_i32_1 = arith.constant 0 : i32
    return %c0_i32, %c0_i32_0 : i32, i32
  }
  func.func @transform_13(%arg0: i32) -> (i32, i32, i32) {
    %c0_i32 = arith.constant 0 : i32
    %c0_i32_0 = arith.constant 0 : i32
    %c0_i32_1 = arith.constant 0 : i32
    return %arg0, %c0_i32, %c0_i32_0 : i32, i32, i32
  }
  func.func @transform_14(%arg0: i32) -> (i32, i32, i32) {
    %c0_i32 = arith.constant 0 : i32
    %c0_i32_0 = arith.constant 0 : i32
    %c0_i32_1 = arith.constant 0 : i32
    return %arg0, %c0_i32, %c0_i32_0 : i32, i32, i32
  }
  func.func @transform_15(%arg0: i32) -> (i32, i32, i32) {
    %c0_i32 = arith.constant 0 : i32
    %c0_i32_0 = arith.constant 0 : i32
    %c0_i32_1 = arith.constant 0 : i32
    return %arg0, %c0_i32, %c0_i32_0 : i32, i32, i32
  }
}

</mosaic_0001>

<llo_original>
// kernel: elbo_fb_forward.1
$region0: #{elbo_fb_forward.1}
  #allocation0 [shape = 'u32[]', space=smem, size = 0x4, offset = 0x4, fixed_abs, tag = 'smem constant byte address 0x4 - core index']
  #allocation1 [shape = 'u32[144,128]{1,0:T(1,128)}', space=vmem, size = 0x12000, scoped, tag = 'internal scratch']
  %s0 = inlined_call_operand.vmem [shape: f32[2,2,256], index: 0, kind: input, shape index: {}]
  %s1 = inlined_call_operand.vmem [shape: f32[2,2,256], index: 1, kind: input, shape index: {}]
  %s2 = inlined_call_operand.vmem [shape: f32[2,2,256], index: 2, kind: input, shape index: {}]
  %s3 = inlined_call_operand.vmem [shape: f32[2,2,256], index: 3, kind: input, shape index: {}]
  %s4 = inlined_call_operand.vmem [shape: f32[2,2,256], index: 4, kind: input, shape index: {}]
  %s5 = inlined_call_operand.vmem [shape: f32[2,2,256], index: 5, kind: input, shape index: {}]
  %s6 = inlined_call_operand.vmem [shape: f32[2,3,256], index: 6, kind: input, shape index: {}]
  %s7 = inlined_call_operand.vmem [shape: f32[2,3,256], index: 7, kind: input, shape index: {}]
  %s8 = inlined_call_operand.vmem [shape: f32[2,2,256], index: 8, kind: input, shape index: {}]
  %s9 = inlined_call_operand.vmem [shape: f32[1,256], index: 9, kind: input, shape index: {}]
  %s10 = inlined_call_operand.vmem [shape: f32[1,256], index: 10, kind: input, shape index: {}]
  %s11 = inlined_call_operand.hbm [shape: bf16[256,512], index: 11, kind: input, shape index: {}]
  %s12 = inlined_call_operand.vmem [shape: bf16[256,512], index: 12, kind: input, shape index: {}]
  %s13 = inlined_call_operand.vmem [shape: f32[2,1,128], index: 13, kind: output, shape index: {0}]
  %s14 = inlined_call_operand.vmem [shape: f32[2,1,256], index: 14, kind: output, shape index: {1}]
  %s15 = inlined_call_operand.vmem [shape: f32[2,1,256], index: 15, kind: output, shape index: {2}]
  %16 = xla_tuple %s13, %s14, %s15
  %s17 = sld [smem:[#allocation0]]
  $region105: #{elbo_fb_forward.1} parent=0
    _
  %s19 = ssub.s32 1, %s17
  %s20 = scalar_select 0, %s19, %s17
  $region1: #{elbo_fb_forward.1} parent=0
    #allocation2 [shape = 'u8[262144]{0}', space=vmem, size = 0x40000, scoped, tag = 'input window, operand 11, single buffered']
    #allocation3 [shape = 's32[2]{0}', space=sflag, size = 0x8, scoped, tag = 'scoped memory for elbo_fb_forward.1']
    %21 = vsyncpa [#allocation3], 0
    loop: start=0, step=1, limit=4
    $region2: #{elbo_fb_forward.1} parent=1 // loop_pre_header
      _
    $region3: #{elbo_fb_forward.1} parent=1 // loop_header
      %s23 = sphi 0, %s27
      %p24 = scmp.ge.s32.totalorder %s23, 4
      %s33 = sphi 0, %s35
      %s36 = sphi 0, %s33
      %s37 = sphi 0, %s36
      %s53 = sphi 0, %s37
      %s59 = sphi 0, %s61
      %s62 = sphi 0, %s59
      %s63 = sphi 0, %s62
      %s79 = sphi 0, %s63
      %s85 = sphi 0, %s87
      %s88 = sphi 0, %s85
      %s89 = sphi 0, %s88
      %s105 = sphi 0, %s89
      %s111 = sphi 0, %s113
      %s114 = sphi 0, %s111
      %s115 = sphi 0, %s114
      %s131 = sphi 0, %s115
      %s137 = sphi 0, %s139
      %s140 = sphi 0, %s137
      %s141 = sphi 0, %s140
      %s157 = sphi 0, %s141
      %s163 = sphi 0, %s165
      %s166 = sphi 0, %s163
      %s167 = sphi 0, %s166
      %s183 = sphi 0, %s167
      %s189 = sphi 0, %s191
      %s192 = sphi 0, %s189
      %s193 = sphi 0, %s192
      %s209 = sphi 0, %s193
      %s215 = sphi 0, %s217
      %s218 = sphi 0, %s215
      %s219 = sphi 0, %s218
      %s235 = sphi 0, %s219
      %s241 = sphi 0, %s243
      %s244 = sphi 0, %s241
      %s245 = sphi 0, %s244
      %s261 = sphi 0, %s245
      %s265 = sphi 0, %s265
      %s267 = sphi 0, %s265
      %s268 = sphi 0, %s267
      %s282 = sphi 0, %s268
      %s286 = sphi 0, %s286
      %s288 = sphi 0, %s286
      %s289 = sphi 0, %s288
      %s303 = sphi 0, %s289
      %s307 = sphi 0, %s307
      %s309 = sphi 0, %s307
      %s310 = sphi 0, %s309
      %s324 = sphi 0, %s310
      %s328 = sphi 0, %s328
      %s330 = sphi 0, %s328
      %s331 = sphi 0, %s330
      %s345 = sphi 0, %s331
      %s351 = sphi 0, %s353
      %s354 = sphi 0, %s351
      %s355 = sphi 0, %s354
      %s371 = sphi 0, %s355
      %s377 = sphi 0, %s379
      %s380 = sphi 0, %s377
      %s381 = sphi 0, %s380
      %s397 = sphi 0, %s381
      %s403 = sphi 0, %s405
      %s406 = sphi 0, %s403
      %s407 = sphi 0, %s406
      %s423 = sphi 0, %s407
    $region4: #{elbo_fb_forward.1} parent=1 // loop_header_branch
      %26 = sbr.rel (%p24) target = $region8
    $region5: #{elbo_fb_forward.1} parent=1 // loop_body
      %s28 = ssub.s32 %s23, 1
      %s29 = ssub.s32 %s23, 2
      %s30 = sadd.s32 %s23, 1
      %s31 = ssub.s32 %s23, %s30
      %p32 = scmp.eq.s32.totalorder %s31, 0
      %s34 = sadd.s32 %s33, 1
      %s35 = scalar_select %p32, %s33, %s34
      %p38 = pneg %p32
      %p39 = scmp.eq.s32.totalorder %s23, 1
      %p40 = por %p38, %p39
      %p41 = scmp.ne.s32.totalorder %s33, %s36
      %p42 = scmp.eq.s32.totalorder %s23, 0
      %p43 = por %p41, %p42
      %p44 = scmp.ne.s32.totalorder %s33, %s36
      %p45 = scmp.eq.s32.totalorder %s28, 1
      %p46 = por %p44, %p45
      %p47 = scmp.ne.s32.totalorder %s36, %s37
      %p48 = scmp.eq.s32.totalorder %s28, 0
      %p49 = por %p47, %p48
      %p50 = scmp.ne.s32.totalorder %s36, %s37
      %p51 = scmp.eq.s32.totalorder %s29, 1
      %p52 = por %p50, %p51
      %p54 = scmp.ne.s32.totalorder %s37, %s53
      %p55 = scmp.eq.s32.totalorder %s29, 0
      %p56 = por %p54, %p55
      %s57 = ssub.s32 %s23, %s30
      %p58 = scmp.eq.s32.totalorder %s57, 0
      %s60 = sadd.s32 %s59, 1
      %s61 = scalar_select %p58, %s59, %s60
      %p64 = pneg %p58
      %p65 = scmp.eq.s32.totalorder %s23, 1
      %p66 = por %p64, %p65
      %p67 = scmp.ne.s32.totalorder %s59, %s62
      %p68 = scmp.eq.s32.totalorder %s23, 0
      %p69 = por %p67, %p68
      %p70 = scmp.ne.s32.totalorder %s59, %s62
      %p71 = scmp.eq.s32.totalorder %s28, 1
      %p72 = por %p70, %p71
      %p73 = scmp.ne.s32.totalorder %s62, %s63
      %p74 = scmp.eq.s32.totalorder %s28, 0
      %p75 = por %p73, %p74
      %p76 = scmp.ne.s32.totalorder %s62, %s63
      %p77 = scmp.eq.s32.totalorder %s29, 1
      %p78 = por %p76, %p77
      %p80 = scmp.ne.s32.totalorder %s63, %s79
      %p81 = scmp.eq.s32.totalorder %s29, 0
      %p82 = por %p80, %p81
      %s83 = ssub.s32 %s23, %s30
      %p84 = scmp.eq.s32.totalorder %s83, 0
      %s86 = sadd.s32 %s85, 1
      %s87 = scalar_select %p84, %s85, %s86
      %p90 = pneg %p84
      %p91 = scmp.eq.s32.totalorder %s23, 1
      %p92 = por %p90, %p91
      %p93 = scmp.ne.s32.totalorder %s85, %s88
      %p94 = scmp.eq.s32.totalorder %s23, 0
      %p95 = por %p93, %p94
      %p96 = scmp.ne.s32.totalorder %s85, %s88
      %p97 = scmp.eq.s32.totalorder %s28, 1
      %p98 = por %p96, %p97
      %p99 = scmp.ne.s32.totalorder %s88, %s89
      %p100 = scmp.eq.s32.totalorder %s28, 0
      %p101 = por %p99, %p100
      %p102 = scmp.ne.s32.totalorder %s88, %s89
      %p103 = scmp.eq.s32.totalorder %s29, 1
      %p104 = por %p102, %p103
      %p106 = scmp.ne.s32.totalorder %s89, %s105
      %p107 = scmp.eq.s32.totalorder %s29, 0
      %p108 = por %p106, %p107
      %s109 = ssub.s32 %s23, %s30
      %p110 = scmp.eq.s32.totalorder %s109, 0
      %s112 = sadd.s32 %s111, 1
      %s113 = scalar_select %p110, %s111, %s112
      %p116 = pneg %p110
      %p117 = scmp.eq.s32.totalorder %s23, 1
      %p118 = por %p116, %p117
      %p119 = scmp.ne.s32.totalorder %s111, %s114
      %p120 = scmp.eq.s32.totalorder %s23, 0
      %p121 = por %p119, %p120
      %p122 = scmp.ne.s32.totalorder %s111, %s114
      %p123 = scmp.eq.s32.totalorder %s28, 1
      %p124 = por %p122, %p123
      %p125 = scmp.ne.s32.totalorder %s114, %s115
      %p126 = scmp.eq.s32.totalorder %s28, 0
      %p127 = por %p125, %p126
      %p128 = scmp.ne.s32.totalorder %s114, %s115
      %p129 = scmp.eq.s32.totalorder %s29, 1
      %p130 = por %p128, %p129
      %p132 = scmp.ne.s32.totalorder %s115, %s131
      %p133 = scmp.eq.s32.totalorder %s29, 0
      %p134 = por %p132, %p133
      %s135 = ssub.s32 %s23, %s30
      %p136 = scmp.eq.s32.totalorder %s135, 0
      %s138 = sadd.s32 %s137, 1
      %s139 = scalar_select %p136, %s137, %s138
      %p142 = pneg %p136
      %p143 = scmp.eq.s32.totalorder %s23, 1
      %p144 = por %p142, %p143
      %p145 = scmp.ne.s32.totalorder %s137, %s140
      %p146 = scmp.eq.s32.totalorder %s23, 0
      %p147 = por %p145, %p146
      %p148 = scmp.ne.s32.totalorder %s137, %s140
      %p149 = scmp.eq.s32.totalorder %s28, 1
      %p150 = por %p148, %p149
      %p151 = scmp.ne.s32.totalorder %s140, %s141
      %p152 = scmp.eq.s32.totalorder %s28, 0
      %p153 = por %p151, %p152
      %p154 = scmp.ne.s32.totalorder %s140, %s141
      %p155 = scmp.eq.s32.totalorder %s29, 1
      %p156 = por %p154, %p155
      %p158 = scmp.ne.s32.totalorder %s141, %s157
      %p159 = scmp.eq.s32.totalorder %s29, 0
      %p160 = por %p158, %p159
      %s161 = ssub.s32 %s23, %s30
      %p162 = scmp.eq.s32.totalorder %s161, 0
      %s164 = sadd.s32 %s163, 1
      %s165 = scalar_select %p162, %s163, %s164
      %p168 = pneg %p162
      %p169 = scmp.eq.s32.totalorder %s23, 1
      %p170 = por %p168, %p169
      %p171 = scmp.ne.s32.totalorder %s163, %s166
      %p172 = scmp.eq.s32.totalorder %s23, 0
      %p173 = por %p171, %p172
      %p174 = scmp.ne.s32.totalorder %s163, %s166
      %p175 = scmp.eq.s32.totalorder %s28, 1
      %p176 = por %p174, %p175
      %p177 = scmp.ne.s32.totalorder %s166, %s167
      %p178 = scmp.eq.s32.totalorder %s28, 0
      %p179 = por %p177, %p178
      %p180 = scmp.ne.s32.totalorder %s166, %s167
      %p181 = scmp.eq.s32.totalorder %s29, 1
      %p182 = por %p180, %p181
      %p184 = scmp.ne.s32.totalorder %s167, %s183
      %p185 = scmp.eq.s32.totalorder %s29, 0
      %p186 = por %p184, %p185
      %s187 = ssub.s32 %s23, %s30
      %p188 = scmp.eq.s32.totalorder %s187, 0
      %s190 = sadd.s32 %s189, 1
      %s191 = scalar_select %p188, %s189, %s190
      %p194 = pneg %p188
      %p195 = scmp.eq.s32.totalorder %s23, 1
      %p196 = por %p194, %p195
      %p197 = scmp.ne.s32.totalorder %s189, %s192
      %p198 = scmp.eq.s32.totalorder %s23, 0
      %p199 = por %p197, %p198
      %p200 = scmp.ne.s32.totalorder %s189, %s192
      %p201 = scmp.eq.s32.totalorder %s28, 1
      %p202 = por %p200, %p201
      %p203 = scmp.ne.s32.totalorder %s192, %s193
      %p204 = scmp.eq.s32.totalorder %s28, 0
      %p205 = por %p203, %p204
      %p206 = scmp.ne.s32.totalorder %s192, %s193
      %p207 = scmp.eq.s32.totalorder %s29, 1
      %p208 = por %p206, %p207
      %p210 = scmp.ne.s32.totalorder %s193, %s209
      %p211 = scmp.eq.s32.totalorder %s29, 0
      %p212 = por %p210, %p211
      %s213 = ssub.s32 %s23, %s30
      %p214 = scmp.eq.s32.totalorder %s213, 0
      %s216 = sadd.s32 %s215, 1
      %s217 = scalar_select %p214, %s215, %s216
      %p220 = pneg %p214
      %p221 = scmp.eq.s32.totalorder %s23, 1
      %p222 = por %p220, %p221
      %p223 = scmp.ne.s32.totalorder %s215, %s218
      %p224 = scmp.eq.s32.totalorder %s23, 0
      %p225 = por %p223, %p224
      %p226 = scmp.ne.s32.totalorder %s215, %s218
      %p227 = scmp.eq.s32.totalorder %s28, 1
      %p228 = por %p226, %p227
      %p229 = scmp.ne.s32.totalorder %s218, %s219
      %p230 = scmp.eq.s32.totalorder %s28, 0
      %p231 = por %p229, %p230
      %p232 = scmp.ne.s32.totalorder %s218, %s219
      %p233 = scmp.eq.s32.totalorder %s29, 1
      %p234 = por %p232, %p233
      %p236 = scmp.ne.s32.totalorder %s219, %s235
      %p237 = scmp.eq.s32.totalorder %s29, 0
      %p238 = por %p236, %p237
      %s239 = ssub.s32 %s23, %s30
      %p240 = scmp.eq.s32.totalorder %s239, 0
      %s242 = sadd.s32 %s241, 1
      %s243 = scalar_select %p240, %s241, %s242
      %p246 = pneg %p240
      %p247 = scmp.eq.s32.totalorder %s23, 1
      %p248 = por %p246, %p247
      %p249 = scmp.ne.s32.totalorder %s241, %s244
      %p250 = scmp.eq.s32.totalorder %s23, 0
      %p251 = por %p249, %p250
      %p252 = scmp.ne.s32.totalorder %s241, %s244
      %p253 = scmp.eq.s32.totalorder %s28, 1
      %p254 = por %p252, %p253
      %p255 = scmp.ne.s32.totalorder %s244, %s245
      %p256 = scmp.eq.s32.totalorder %s28, 0
      %p257 = por %p255, %p256
      %p258 = scmp.ne.s32.totalorder %s244, %s245
      %p259 = scmp.eq.s32.totalorder %s29, 1
      %p260 = por %p258, %p259
      %p262 = scmp.ne.s32.totalorder %s245, %s261
      %p263 = scmp.eq.s32.totalorder %s29, 0
      %p264 = por %p262, %p263
      %s266 = sadd.s32 %s265, 1
      %p269 = scmp.eq.s32.totalorder %s23, 1
      %p270 = scmp.ne.s32.totalorder %s265, %s267
      %p271 = scmp.eq.s32.totalorder %s23, 0
      %p272 = por %p270, %p271
      %p273 = scmp.ne.s32.totalorder %s265, %s267
      %p274 = scmp.eq.s32.totalorder %s28, 1
      %p275 = por %p273, %p274
      %p276 = scmp.ne.s32.totalorder %s267, %s268
      %p277 = scmp.eq.s32.totalorder %s28, 0
      %p278 = por %p276, %p277
      %p279 = scmp.ne.s32.totalorder %s267, %s268
      %p280 = scmp.eq.s32.totalorder %s29, 1
      %p281 = por %p279, %p280
      %p283 = scmp.ne.s32.totalorder %s268, %s282
      %p284 = scmp.eq.s32.totalorder %s29, 0
      %p285 = por %p283, %p284
      %s287 = sadd.s32 %s286, 1
      %p290 = scmp.eq.s32.totalorder %s23, 1
      %p291 = scmp.ne.s32.totalorder %s286, %s288
      %p292 = scmp.eq.s32.totalorder %s23, 0
      %p293 = por %p291, %p292
      %p294 = scmp.ne.s32.totalorder %s286, %s288
      %p295 = scmp.eq.s32.totalorder %s28, 1
      %p296 = por %p294, %p295
      %p297 = scmp.ne.s32.totalorder %s288, %s289
      %p298 = scmp.eq.s32.totalorder %s28, 0
      %p299 = por %p297, %p298
      %p300 = scmp.ne.s32.totalorder %s288, %s289
      %p301 = scmp.eq.s32.totalorder %s29, 1
      %p302 = por %p300, %p301
      %p304 = scmp.ne.s32.totalorder %s289, %s303
      %p305 = scmp.eq.s32.totalorder %s29, 0
      %p306 = por %p304, %p305
      %s308 = sadd.s32 %s307, 1
      %p311 = scmp.eq.s32.totalorder %s23, 1
      %p312 = scmp.ne.s32.totalorder %s307, %s309
      %p313 = scmp.eq.s32.totalorder %s23, 0
      %p314 = por %p312, %p313
      %p315 = scmp.ne.s32.totalorder %s307, %s309
      %p316 = scmp.eq.s32.totalorder %s28, 1
      %p317 = por %p315, %p316
      %p318 = scmp.ne.s32.totalorder %s309, %s310
      %p319 = scmp.eq.s32.totalorder %s28, 0
      %p320 = por %p318, %p319
      %p321 = scmp.ne.s32.totalorder %s309, %s310
      %p322 = scmp.eq.s32.totalorder %s29, 1
      %p323 = por %p321, %p322
      %p325 = scmp.ne.s32.totalorder %s310, %s324
      %p326 = scmp.eq.s32.totalorder %s29, 0
      %p327 = por %p325, %p326
      %s329 = sadd.s32 %s328, 1
      %p332 = scmp.eq.s32.totalorder %s23, 1
      %p333 = scmp.ne.s32.totalorder %s328, %s330
      %p334 = scmp.eq.s32.totalorder %s23, 0
      %p335 = por %p333, %p334
      %p336 = scmp.ne.s32.totalorder %s328, %s330
      %p337 = scmp.eq.s32.totalorder %s28, 1
      %p338 = por %p336, %p337
      %p339 = scmp.ne.s32.totalorder %s330, %s331
      %p340 = scmp.eq.s32.totalorder %s28, 0
      %p341 = por %p339, %p340
      %p342 = scmp.ne.s32.totalorder %s330, %s331
      %p343 = scmp.eq.s32.totalorder %s29, 1
      %p344 = por %p342, %p343
      %p346 = scmp.ne.s32.totalorder %s331, %s345
      %p347 = scmp.eq.s32.totalorder %s29, 0
      %p348 = por %p346, %p347
      %s349 = ssub.s32 %s23, %s30
      %p350 = scmp.eq.s32.totalorder %s349, 0
      %s352 = sadd.s32 %s351, 1
      %s353 = scalar_select %p350, %s351, %s352
      %p356 = pneg %p350
      %p357 = scmp.eq.s32.totalorder %s23, 1
      %p358 = por %p356, %p357
      %p359 = scmp.ne.s32.totalorder %s351, %s354
      %p360 = scmp.eq.s32.totalorder %s23, 0
      %p361 = por %p359, %p360
      %p362 = scmp.ne.s32.totalorder %s351, %s354
      %p363 = scmp.eq.s32.totalorder %s28, 1
      %p364 = por %p362, %p363
      %p365 = scmp.ne.s32.totalorder %s354, %s355
      %p366 = scmp.eq.s32.totalorder %s28, 0
      %p367 = por %p365, %p366
      %p368 = scmp.ne.s32.totalorder %s354, %s355
      %p369 = scmp.eq.s32.totalorder %s29, 1
      %p370 = por %p368, %p369
      %p372 = scmp.ne.s32.totalorder %s355, %s371
      %p373 = scmp.eq.s32.totalorder %s29, 0
      %p374 = por %p372, %p373
      %s375 = ssub.s32 %s23, %s30
      %p376 = scmp.eq.s32.totalorder %s375, 0
      %s378 = sadd.s32 %s377, 1
      %s379 = scalar_select %p376, %s377, %s378
      %p382 = pneg %p376
      %p383 = scmp.eq.s32.totalorder %s23, 1
      %p384 = por %p382, %p383
      %p385 = scmp.ne.s32.totalorder %s377, %s380
      %p386 = scmp.eq.s32.totalorder %s23, 0
      %p387 = por %p385, %p386
      %p388 = scmp.ne.s32.totalorder %s377, %s380
      %p389 = scmp.eq.s32.totalorder %s28, 1
      %p390 = por %p388, %p389
      %p391 = scmp.ne.s32.totalorder %s380, %s381
      %p392 = scmp.eq.s32.totalorder %s28, 0
      %p393 = por %p391, %p392
      %p394 = scmp.ne.s32.totalorder %s380, %s381
      %p395 = scmp.eq.s32.totalorder %s29, 1
      %p396 = por %p394, %p395
      %p398 = scmp.ne.s32.totalorder %s381, %s397
      %p399 = scmp.eq.s32.totalorder %s29, 0
      %p400 = por %p398, %p399
      %s401 = ssub.s32 %s23, %s30
      %p402 = scmp.eq.s32.totalorder %s401, 0
      %s404 = sadd.s32 %s403, 1
      %s405 = scalar_select %p402, %s403, %s404
      %p408 = pneg %p402
      %p409 = scmp.eq.s32.totalorder %s23, 1
      %p410 = por %p408, %p409
      %p411 = scmp.ne.s32.totalorder %s403, %s406
      %p412 = scmp.eq.s32.totalorder %s23, 0
      %p413 = por %p411, %p412
      %p414 = scmp.ne.s32.totalorder %s403, %s406
      %p415 = scmp.eq.s32.totalorder %s28, 1
      %p416 = por %p414, %p415
      %p417 = scmp.ne.s32.totalorder %s406, %s407
      %p418 = scmp.eq.s32.totalorder %s28, 0
      %p419 = por %p417, %p418
      %p420 = scmp.ne.s32.totalorder %s406, %s407
      %p421 = scmp.eq.s32.totalorder %s29, 1
      %p422 = por %p420, %p421
      %p424 = scmp.ne.s32.totalorder %s407, %s423
      %p425 = scmp.eq.s32.totalorder %s29, 0
      %p426 = por %p424, %p425
      %p427 = scmp.le.s32.totalorder 1, %s23
      %p428 = scmp.lt.s32.totalorder %s23, 3
      %p429 = pnand %p427, %p428
      %p430 = pneg %p429
      // Predicated region
      $region9: #{elbo_fb_forward.1} parent=5 // pred_check
        _
      $region10: #{elbo_fb_forward.1} parent=5 // pred_check_branch
        %432 = sbr.rel (%p429) target = $region12
      $region11: #{elbo_fb_forward.1} parent=5 // pred_region
        %s433 = ssub.s32 %s23, 1
        // Predicated region
        $region13: #{elbo_fb_forward.1} parent=11 // pred_check
          %p434 = pneg %p278
        $region14: #{elbo_fb_forward.1} parent=11 // pred_check_branch
          %436 = sbr.rel (%p434) target = $region16
        $region15: #{elbo_fb_forward.1} parent=11 // pred_region
          _
        $region16: #{elbo_fb_forward.1} parent=11 // pred_fallthru
          _
        // Predicated region
        $region17: #{elbo_fb_forward.1} parent=11 // pred_check
          %p437 = pneg %p299
        $region18: #{elbo_fb_forward.1} parent=11 // pred_check_branch
          %439 = sbr.rel (%p437) target = $region20
        $region19: #{elbo_fb_forward.1} parent=11 // pred_region
          _
        $region20: #{elbo_fb_forward.1} parent=11 // pred_fallthru
          _
        // Predicated region
        $region21: #{elbo_fb_forward.1} parent=11 // pred_check
          %p440 = pneg %p320
        $region22: #{elbo_fb_forward.1} parent=11 // pred_check_branch
          %442 = sbr.rel (%p440) target = $region24
        $region23: #{elbo_fb_forward.1} parent=11 // pred_region
          %s444 = ssub.s32 8192, 8192
          %445 = vsyncadd [#allocation3], %s444
          %s446 = sshll.u32 [#allocation2], 4
          %s447 = int_to_ptr.vmem [resolvable:$true] %s446
          %452 = dma.hbm_to_vmem [thread:$0]  %s11, 8192, %s447, [#allocation3], 256, 256, 16
        $region24: #{elbo_fb_forward.1} parent=11 // pred_fallthru
          _
        // Predicated region
        $region25: #{elbo_fb_forward.1} parent=11 // pred_check
          %p453 = pneg %p341
        $region26: #{elbo_fb_forward.1} parent=11 // pred_check_branch
          %455 = sbr.rel (%p453) target = $region28
        $region27: #{elbo_fb_forward.1} parent=11 // pred_region
          _
        $region28: #{elbo_fb_forward.1} parent=11 // pred_fallthru
          _
      $region12: #{elbo_fb_forward.1} parent=5 // pred_fallthru
        _
      %p456 = scmp.lt.s32.totalorder %s23, 2
      // Predicated region
      $region29: #{elbo_fb_forward.1} parent=5 // pred_check
        %p457 = pneg %p456
      $region30: #{elbo_fb_forward.1} parent=5 // pred_check_branch
        %459 = sbr.rel (%p457) target = $region32
      $region31: #{elbo_fb_forward.1} parent=5 // pred_region
        // Predicated region
        $region33: #{elbo_fb_forward.1} parent=31 // pred_check
          %p460 = pneg %p43
        $region34: #{elbo_fb_forward.1} parent=31 // pred_check_branch
          %462 = sbr.rel (%p460) target = $region36
        $region35: #{elbo_fb_forward.1} parent=31 // pred_region
          %p463 = scmp.lt.s32.totalorder %s23, 1
          %s464 = scalar_select %p463, %s23, 1
          %s465 = smul.addr %s464, 2
          %s466 = smul.addr %s465, 2
          %s467 = scalar_lea.vmem %s0, %s466
        $region36: #{elbo_fb_forward.1} parent=31 // pred_fallthru
          _
        // Predicated region
        $region37: #{elbo_fb_forward.1} parent=31 // pred_check
          %p468 = pneg %p69
        $region38: #{elbo_fb_forward.1} parent=31 // pred_check_branch
          %470 = sbr.rel (%p468) target = $region40
        $region39: #{elbo_fb_forward.1} parent=31 // pred_region
          %p471 = scmp.lt.s32.totalorder %s23, 1
          %s472 = scalar_select %p471, %s23, 1
          %s473 = smul.addr %s472, 2
          %s474 = smul.addr %s473, 2
          %s475 = scalar_lea.vmem %s1, %s474
        $region40: #{elbo_fb_forward.1} parent=31 // pred_fallthru
          _
        // Predicated region
        $region41: #{elbo_fb_forward.1} parent=31 // pred_check
          %p476 = pneg %p95
        $region42: #{elbo_fb_forward.1} parent=31 // pred_check_branch
          %478 = sbr.rel (%p476) target = $region44
        $region43: #{elbo_fb_forward.1} parent=31 // pred_region
          %p479 = scmp.lt.s32.totalorder %s23, 1
          %s480 = scalar_select %p479, %s23, 1
          %s481 = smul.addr %s480, 2
          %s482 = smul.addr %s481, 2
          %s483 = scalar_lea.vmem %s2, %s482
        $region44: #{elbo_fb_forward.1} parent=31 // pred_fallthru
          _
        // Predicated region
        $region45: #{elbo_fb_forward.1} parent=31 // pred_check
          %p484 = pneg %p121
        $region46: #{elbo_fb_forward.1} parent=31 // pred_check_branch
          %486 = sbr.rel (%p484) target = $region48
        $region47: #{elbo_fb_forward.1} parent=31 // pred_region
          %p487 = scmp.lt.s32.totalorder %s23, 1
          %s488 = scalar_select %p487, %s23, 1
          %s489 = smul.addr %s488, 2
          %s490 = smul.addr %s489, 2
          %s491 = scalar_lea.vmem %s3, %s490
        $region48: #{elbo_fb_forward.1} parent=31 // pred_fallthru
          _
        // Predicated region
        $region49: #{elbo_fb_forward.1} parent=31 // pred_check
          %p492 = pneg %p147
        $region50: #{elbo_fb_forward.1} parent=31 // pred_check_branch
          %494 = sbr.rel (%p492) target = $region52
        $region51: #{elbo_fb_forward.1} parent=31 // pred_region
          %p495 = scmp.lt.s32.totalorder %s23, 1
          %s496 = scalar_select %p495, %s23, 1
          %s497 = smul.addr %s496, 2
          %s498 = smul.addr %s497, 2
          %s499 = scalar_lea.vmem %s4, %s498
        $region52: #{elbo_fb_forward.1} parent=31 // pred_fallthru
          _
        // Predicated region
        $region53: #{elbo_fb_forward.1} parent=31 // pred_check
          %p500 = pneg %p173
        $region54: #{elbo_fb_forward.1} parent=31 // pred_check_branch
          %502 = sbr.rel (%p500) target = $region56
        $region55: #{elbo_fb_forward.1} parent=31 // pred_region
          %p503 = scmp.lt.s32.totalorder %s23, 1
          %s504 = scalar_select %p503, %s23, 1
          %s505 = smul.addr %s504, 2
          %s506 = smul.addr %s505, 2
          %s507 = scalar_lea.vmem %s5, %s506
        $region56: #{elbo_fb_forward.1} parent=31 // pred_fallthru
          _
        // Predicated region
        $region57: #{elbo_fb_forward.1} parent=31 // pred_check
          %p508 = pneg %p199
        $region58: #{elbo_fb_forward.1} parent=31 // pred_check_branch
          %510 = sbr.rel (%p508) target = $region60
        $region59: #{elbo_fb_forward.1} parent=31 // pred_region
          %p511 = scmp.lt.s32.totalorder %s23, 1
          %s512 = scalar_select %p511, %s23, 1
          %s513 = smul.addr %s512, 2
          %s514 = smul.addr %s513, 4
          %s515 = scalar_lea.vmem %s6, %s514
        $region60: #{elbo_fb_forward.1} parent=31 // pred_fallthru
          _
        // Predicated region
        $region61: #{elbo_fb_forward.1} parent=31 // pred_check
          %p516 = pneg %p225
        $region62: #{elbo_fb_forward.1} parent=31 // pred_check_branch
          %518 = sbr.rel (%p516) target = $region64
        $region63: #{elbo_fb_forward.1} parent=31 // pred_region
          %p519 = scmp.lt.s32.totalorder %s23, 1
          %s520 = scalar_select %p519, %s23, 1
          %s521 = smul.addr %s520, 2
          %s522 = smul.addr %s521, 4
          %s523 = scalar_lea.vmem %s7, %s522
        $region64: #{elbo_fb_forward.1} parent=31 // pred_fallthru
          _
        // Predicated region
        $region65: #{elbo_fb_forward.1} parent=31 // pred_check
          %p524 = pneg %p251
        $region66: #{elbo_fb_forward.1} parent=31 // pred_check_branch
          %526 = sbr.rel (%p524) target = $region68
        $region67: #{elbo_fb_forward.1} parent=31 // pred_region
          %p527 = scmp.lt.s32.totalorder %s23, 1
          %s528 = scalar_select %p527, %s23, 1
          %s529 = smul.addr %s528, 2
          %s530 = smul.addr %s529, 2
          %s531 = scalar_lea.vmem %s8, %s530
        $region68: #{elbo_fb_forward.1} parent=31 // pred_fallthru
          _
      $region32: #{elbo_fb_forward.1} parent=5 // pred_fallthru
        _
      %p532 = scmp.le.s32.totalorder 1, %s23
      %p533 = scmp.lt.s32.totalorder %s23, 3
      %p534 = pnand %p532, %p533
      %p535 = pneg %p534
      // Predicated region
      $region69: #{elbo_fb_forward.1} parent=5 // pred_check
        _
      $region70: #{elbo_fb_forward.1} parent=5 // pred_check_branch
        %537 = sbr.rel (%p534) target = $region72
      $region71: #{elbo_fb_forward.1} parent=5 // pred_region
        %s538 = ssub.s32 %s23, 1
        // Predicated region
        $region73: #{elbo_fb_forward.1} parent=71 // pred_check
          %p539 = pneg %p320
        $region74: #{elbo_fb_forward.1} parent=71 // pred_check_branch
          %541 = sbr.rel (%p539) target = $region76
        $region75: #{elbo_fb_forward.1} parent=71 // pred_region
          %542 = dma.done [#allocation3], 8192
        $region76: #{elbo_fb_forward.1} parent=71 // pred_fallthru
          _
        %p543 = scmp.lt.s32.totalorder %s28, 1
        %s544 = scalar_select %p543, %s28, 1
        %s545 = smul.addr %s544, 2
        %s546 = smul.addr %s545, 2
        %s547 = scalar_lea.vmem %s0, %s546
        %p548 = pneg %p49
        %p549 = pneg %p46
        %p550 = scmp.lt.s32.totalorder %s28, 1
        %s551 = scalar_select %p550, %s28, 1
        %s552 = smul.addr %s551, 2
        %s553 = smul.addr %s552, 2
        %s554 = scalar_lea.vmem %s1, %s553
        %p555 = pneg %p75
        %p556 = pneg %p72
        %p557 = scmp.lt.s32.totalorder %s28, 1
        %s558 = scalar_select %p557, %s28, 1
        %s559 = smul.addr %s558, 2
        %s560 = smul.addr %s559, 2
        %s561 = scalar_lea.vmem %s2, %s560
        %p562 = pneg %p101
        %p563 = pneg %p98
        %p564 = scmp.lt.s32.totalorder %s28, 1
        %s565 = scalar_select %p564, %s28, 1
        %s566 = smul.addr %s565, 2
        %s567 = smul.addr %s566, 2
        %s568 = scalar_lea.vmem %s3, %s567
        %p569 = pneg %p127
        %p570 = pneg %p124
        %p571 = scmp.lt.s32.totalorder %s28, 1
        %s572 = scalar_select %p571, %s28, 1
        %s573 = smul.addr %s572, 2
        %s574 = smul.addr %s573, 2
        %s575 = scalar_lea.vmem %s4, %s574
        %p576 = pneg %p153
        %p577 = pneg %p150
        %p578 = scmp.lt.s32.totalorder %s28, 1
        %s579 = scalar_select %p578, %s28, 1
        %s580 = smul.addr %s579, 2
        %s581 = smul.addr %s580, 2
        %s582 = scalar_lea.vmem %s5, %s581
        %p583 = pneg %p179
        %p584 = pneg %p176
        %p585 = scmp.lt.s32.totalorder %s28, 1
        %s586 = scalar_select %p585, %s28, 1
        %s587 = smul.addr %s586, 2
        %s588 = smul.addr %s587, 4
        %s589 = scalar_lea.vmem %s6, %s588
        %p590 = pneg %p205
        %p591 = pneg %p202
        %p592 = scmp.lt.s32.totalorder %s28, 1
        %s593 = scalar_select %p592, %s28, 1
        %s594 = smul.addr %s593, 2
        %s595 = smul.addr %s594, 4
        %s596 = scalar_lea.vmem %s7, %s595
        %p597 = pneg %p231
        %p598 = pneg %p228
        %p599 = scmp.lt.s32.totalorder %s28, 1
        %s600 = scalar_select %p599, %s28, 1
        %s601 = smul.addr %s600, 2
        %s602 = smul.addr %s601, 2
        %s603 = scalar_lea.vmem %s8, %s602
        %p604 = pneg %p257
        %p605 = pneg %p254
        %p606 = pneg %p278
        %p607 = pneg %p275
        %p608 = pneg %p299
        %p609 = pneg %p296
        %p610 = pneg %p320
        %p611 = pneg %p317
        %p612 = pneg %p341
        %p613 = pneg %p338
        %p614 = pneg %p367
        %p615 = pneg %p364
        %p616 = scmp.lt.s32.totalorder %s28, 1
        %s617 = scalar_select %p616, %s28, 1
        %s618 = scalar_lea.vmem %s13, %s617
        %p619 = pneg %p393
        %p620 = pneg %p390
        %p621 = scmp.lt.s32.totalorder %s28, 1
        %s622 = scalar_select %p621, %s28, 1
        %s623 = smul.addr %s622, 2
        %s624 = scalar_lea.vmem %s14, %s623
        %p625 = pneg %p419
        %p626 = pneg %p416
        %p627 = scmp.lt.s32.totalorder %s28, 1
        %s628 = scalar_select %p627, %s28, 1
        %s629 = smul.addr %s628, 2
        %s630 = scalar_lea.vmem %s15, %s629
        %p631 = scmp.lt.s32.totalorder %s28, 1
        %s632 = scalar_select %p631, %s28, 1
        %s633 = smul.addr %s632, 2
        %s634 = smul.addr %s633, 2
        %s635 = scalar_lea.vmem %s0, %s634
        %p636 = scmp.lt.s32.totalorder %s28, 1
        %s637 = scalar_select %p636, %s28, 1
        %s638 = smul.addr %s637, 2
        %s639 = smul.addr %s638, 2
        %s640 = scalar_lea.vmem %s1, %s639
        %p641 = scmp.lt.s32.totalorder %s28, 1
        %s642 = scalar_select %p641, %s28, 1
        %s643 = smul.addr %s642, 2
        %s644 = smul.addr %s643, 2
        %s645 = scalar_lea.vmem %s2, %s644
        %p646 = scmp.lt.s32.totalorder %s28, 1
        %s647 = scalar_select %p646, %s28, 1
        %s648 = smul.addr %s647, 2
        %s649 = smul.addr %s648, 2
        %s650 = scalar_lea.vmem %s3, %s649
        %p651 = scmp.lt.s32.totalorder %s28, 1
        %s652 = scalar_select %p651, %s28, 1
        %s653 = smul.addr %s652, 2
        %s654 = smul.addr %s653, 2
        %s655 = scalar_lea.vmem %s4, %s654
        %p656 = scmp.lt.s32.totalorder %s28, 1
        %s657 = scalar_select %p656, %s28, 1
        %s658 = smul.addr %s657, 2
        %s659 = smul.addr %s658, 2
        %s660 = scalar_lea.vmem %s5, %s659
        %p661 = scmp.lt.s32.totalorder %s28, 1
        %s662 = scalar_select %p661, %s28, 1
        %s663 = smul.addr %s662, 2
        %s664 = smul.addr %s663, 4
        %s665 = scalar_lea.vmem %s6, %s664
        %p666 = scmp.lt.s32.totalorder %s28, 1
        %s667 = scalar_select %p666, %s28, 1
        %s668 = smul.addr %s667, 2
        %s669 = smul.addr %s668, 4
        %s670 = scalar_lea.vmem %s7, %s669
        %p671 = scmp.lt.s32.totalorder %s28, 1
        %s672 = scalar_select %p671, %s28, 1
        %s673 = smul.addr %s672, 2
        %s674 = smul.addr %s673, 2
        %s675 = scalar_lea.vmem %s8, %s674
        %p676 = scmp.lt.s32.totalorder %s28, 1
        %s677 = scalar_select %p676, %s28, 1
        %s678 = scalar_lea.vmem %s13, %s677
        %p679 = scmp.lt.s32.totalorder %s28, 1
        %s680 = scalar_select %p679, %s28, 1
        %s681 = smul.addr %s680, 2
        %s682 = scalar_lea.vmem %s14, %s681
        %p683 = scmp.lt.s32.totalorder %s28, 1
        %s684 = scalar_select %p683, %s28, 1
        %s685 = smul.addr %s684, 2
        %s686 = scalar_lea.vmem %s15, %s685
        %v687 = vld [vmem:[%s635] sm:$0xf]
        %v688 = vld [vmem:[%s640] sm:$0xf]
        %v689 = vmul.f32 %v688, 0.5
        %v690 = vmul.f32 %v689, 1.442695
        %v691 = vpow.pop %v690
        %v692 = vld [vmem:[%s645] sm:$0xf]
        %v693 = vmul.f32 %v691, %v692
        %v694 = vadd.f32 %v687, %v693
        %v695 = vld [vmem:[%s650] sm:$0xf]
        %v696 = vld [vmem:[%s655] sm:$0xf]
        %v697 = vmul.f32 %v696, 0.5
        %v698 = vmul.f32 %v697, 1.442695
        %v699 = vpow.pop %v698
        %v700 = vld [vmem:[%s660] sm:$0xf]
        %v701 = vmul.f32 %v699, %v700
        %v702 = vadd.f32 %v695, %v701
        %v703 = vld [vmem:[%s665] sm:$0x77]
        %v704 = vld [vmem:[%s670] sm:$0x77]
        %v705 = vld [vmem:[%s675] sm:$0xf]
        %v706 = vld [vmem:[%s9] sm:$0x3]
        %v707 = vld [vmem:[%s10] sm:$0x3]
        %v708 = vld [vmem:[#allocation2] sm:$0xff]
        %v709 = vld [vmem:[#allocation2 + $0x8] sm:$0xff]
        %v710 = vld [vmem:[#allocation2 + $0x10] sm:$0xff]
        %v711 = vld [vmem:[#allocation2 + $0x18] sm:$0xff]
        %v712 = vld [vmem:[#allocation2 + $0x20] sm:$0xff]
        %v713 = vld [vmem:[#allocation2 + $0x28] sm:$0xff]
        %v714 = vld [vmem:[#allocation2 + $0x30] sm:$0xff]
        %v715 = vld [vmem:[#allocation2 + $0x38] sm:$0xff]
        %v716 = vld [vmem:[#allocation2 + $0x40] sm:$0xff]
        %v717 = vld [vmem:[#allocation2 + $0x48] sm:$0xff]
        %v718 = vld [vmem:[#allocation2 + $0x50] sm:$0xff]
        %v719 = vld [vmem:[#allocation2 + $0x58] sm:$0xff]
        %v720 = vld [vmem:[#allocation2 + $0x60] sm:$0xff]
        %v721 = vld [vmem:[#allocation2 + $0x68] sm:$0xff]
        %v722 = vld [vmem:[#allocation2 + $0x70] sm:$0xff]
        %v723 = vld [vmem:[#allocation2 + $0x78] sm:$0xff]
        %v724 = vld [vmem:[#allocation2 + $0x80] sm:$0xff]
        %v725 = vld [vmem:[#allocation2 + $0x88] sm:$0xff]
        %v726 = vld [vmem:[#allocation2 + $0x90] sm:$0xff]
        %v727 = vld [vmem:[#allocation2 + $0x98] sm:$0xff]
        %v728 = vld [vmem:[#allocation2 + $0xa0] sm:$0xff]
        %v729 = vld [vmem:[#allocation2 + $0xa8] sm:$0xff]
        %v730 = vld [vmem:[#allocation2 + $0xb0] sm:$0xff]
        %v731 = vld [vmem:[#allocation2 + $0xb8] sm:$0xff]
        %v732 = vld [vmem:[#allocation2 + $0xc0] sm:$0xff]
        %v733 = vld [vmem:[#allocation2 + $0xc8] sm:$0xff]
        %v734 = vld [vmem:[#allocation2 + $0xd0] sm:$0xff]
        %v735 = vld [vmem:[#allocation2 + $0xd8] sm:$0xff]
        %v736 = vld [vmem:[#allocation2 + $0xe0] sm:$0xff]
        %v737 = vld [vmem:[#allocation2 + $0xe8] sm:$0xff]
        %v738 = vld [vmem:[#allocation2 + $0xf0] sm:$0xff]
        %v739 = vld [vmem:[#allocation2 + $0xf8] sm:$0xff]
        %v740 = vld [vmem:[#allocation2 + $0x100] sm:$0xff]
        %v741 = vld [vmem:[#allocation2 + $0x108] sm:$0xff]
        %v742 = vld [vmem:[#allocation2 + $0x110] sm:$0xff]
        %v743 = vld [vmem:[#allocation2 + $0x118] sm:$0xff]
        %v744 = vld [vmem:[#allocation2 + $0x120] sm:$0xff]
        %v745 = vld [vmem:[#allocation2 + $0x128] sm:$0xff]
        %v746 = vld [vmem:[#allocation2 + $0x130] sm:$0xff]
        %v747 = vld [vmem:[#allocation2 + $0x138] sm:$0xff]
        %v748 = vld [vmem:[#allocation2 + $0x140] sm:$0xff]
        %v749 = vld [vmem:[#allocation2 + $0x148] sm:$0xff]
        %v750 = vld [vmem:[#allocation2 + $0x150] sm:$0xff]
        %v751 = vld [vmem:[#allocation2 + $0x158] sm:$0xff]
        %v752 = vld [vmem:[#allocation2 + $0x160] sm:$0xff]
        %v753 = vld [vmem:[#allocation2 + $0x168] sm:$0xff]
        %v754 = vld [vmem:[#allocation2 + $0x170] sm:$0xff]
        %v755 = vld [vmem:[#allocation2 + $0x178] sm:$0xff]
        %v756 = vld [vmem:[#allocation2 + $0x180] sm:$0xff]
        %v757 = vld [vmem:[#allocation2 + $0x188] sm:$0xff]
        %v758 = vld [vmem:[#allocation2 + $0x190] sm:$0xff]
        %v759 = vld [vmem:[#allocation2 + $0x198] sm:$0xff]
        %v760 = vld [vmem:[#allocation2 + $0x1a0] sm:$0xff]
        %v761 = vld [vmem:[#allocation2 + $0x1a8] sm:$0xff]
        %v762 = vld [vmem:[#allocation2 + $0x1b0] sm:$0xff]
        %v763 = vld [vmem:[#allocation2 + $0x1b8] sm:$0xff]
        %v764 = vld [vmem:[#allocation2 + $0x1c0] sm:$0xff]
        %v765 = vld [vmem:[#allocation2 + $0x1c8] sm:$0xff]
        %v766 = vld [vmem:[#allocation2 + $0x1d0] sm:$0xff]
        %v767 = vld [vmem:[#allocation2 + $0x1d8] sm:$0xff]
        %v768 = vld [vmem:[#allocation2 + $0x1e0] sm:$0xff]
        %v769 = vld [vmem:[#allocation2 + $0x1e8] sm:$0xff]
        %v770 = vld [vmem:[#allocation2 + $0x1f0] sm:$0xff]
        %v771 = vld [vmem:[#allocation2 + $0x1f8] sm:$0xff]
        %v772 = vld [vmem:[%s12] sm:$0xff]
        %v773 = vld [vmem:[%s12 + $0x8] sm:$0xff]
        %v774 = vld [vmem:[%s12 + $0x10] sm:$0xff]
        %v775 = vld [vmem:[%s12 + $0x18] sm:$0xff]
        %v776 = vld [vmem:[%s12 + $0x20] sm:$0xff]
        %v777 = vld [vmem:[%s12 + $0x28] sm:$0xff]
        %v778 = vld [vmem:[%s12 + $0x30] sm:$0xff]
        %v779 = vld [vmem:[%s12 + $0x38] sm:$0xff]
        %v780 = vld [vmem:[%s12 + $0x40] sm:$0xff]
        %v781 = vld [vmem:[%s12 + $0x48] sm:$0xff]
        %v782 = vld [vmem:[%s12 + $0x50] sm:$0xff]
        %v783 = vld [vmem:[%s12 + $0x58] sm:$0xff]
        %v784 = vld [vmem:[%s12 + $0x60] sm:$0xff]
        %v785 = vld [vmem:[%s12 + $0x68] sm:$0xff]
        %v786 = vld [vmem:[%s12 + $0x70] sm:$0xff]
        %v787 = vld [vmem:[%s12 + $0x78] sm:$0xff]
        %v788 = vld [vmem:[%s12 + $0x80] sm:$0xff]
        %v789 = vld [vmem:[%s12 + $0x88] sm:$0xff]
        %v790 = vld [vmem:[%s12 + $0x90] sm:$0xff]
        %v791 = vld [vmem:[%s12 + $0x98] sm:$0xff]
        %v792 = vld [vmem:[%s12 + $0xa0] sm:$0xff]
        %v793 = vld [vmem:[%s12 + $0xa8] sm:$0xff]
        %v794 = vld [vmem:[%s12 + $0xb0] sm:$0xff]
        %v795 = vld [vmem:[%s12 + $0xb8] sm:$0xff]
        %v796 = vld [vmem:[%s12 + $0xc0] sm:$0xff]
        %v797 = vld [vmem:[%s12 + $0xc8] sm:$0xff]
        %v798 = vld [vmem:[%s12 + $0xd0] sm:$0xff]
        %v799 = vld [vmem:[%s12 + $0xd8] sm:$0xff]
        %v800 = vld [vmem:[%s12 + $0xe0] sm:$0xff]
        %v801 = vld [vmem:[%s12 + $0xe8] sm:$0xff]
        %v802 = vld [vmem:[%s12 + $0xf0] sm:$0xff]
        %v803 = vld [vmem:[%s12 + $0xf8] sm:$0xff]
        %v804 = vld [vmem:[%s12 + $0x100] sm:$0xff]
        %v805 = vld [vmem:[%s12 + $0x108] sm:$0xff]
        %v806 = vld [vmem:[%s12 + $0x110] sm:$0xff]
        %v807 = vld [vmem:[%s12 + $0x118] sm:$0xff]
        %v808 = vld [vmem:[%s12 + $0x120] sm:$0xff]
        %v809 = vld [vmem:[%s12 + $0x128] sm:$0xff]
        %v810 = vld [vmem:[%s12 + $0x130] sm:$0xff]
        %v811 = vld [vmem:[%s12 + $0x138] sm:$0xff]
        %v812 = vld [vmem:[%s12 + $0x140] sm:$0xff]
        %v813 = vld [vmem:[%s12 + $0x148] sm:$0xff]
        %v814 = vld [vmem:[%s12 + $0x150] sm:$0xff]
        %v815 = vld [vmem:[%s12 + $0x158] sm:$0xff]
        %v816 = vld [vmem:[%s12 + $0x160] sm:$0xff]
        %v817 = vld [vmem:[%s12 + $0x168] sm:$0xff]
        %v818 = vld [vmem:[%s12 + $0x170] sm:$0xff]
        %v819 = vld [vmem:[%s12 + $0x178] sm:$0xff]
        %v820 = vld [vmem:[%s12 + $0x180] sm:$0xff]
        %v821 = vld [vmem:[%s12 + $0x188] sm:$0xff]
        %v822 = vld [vmem:[%s12 + $0x190] sm:$0xff]
        %v823 = vld [vmem:[%s12 + $0x198] sm:$0xff]
        %v824 = vld [vmem:[%s12 + $0x1a0] sm:$0xff]
        %v825 = vld [vmem:[%s12 + $0x1a8] sm:$0xff]
        %v826 = vld [vmem:[%s12 + $0x1b0] sm:$0xff]
        %v827 = vld [vmem:[%s12 + $0x1b8] sm:$0xff]
        %v828 = vld [vmem:[%s12 + $0x1c0] sm:$0xff]
        %v829 = vld [vmem:[%s12 + $0x1c8] sm:$0xff]
        %v830 = vld [vmem:[%s12 + $0x1d0] sm:$0xff]
        %v831 = vld [vmem:[%s12 + $0x1d8] sm:$0xff]
        %v832 = vld [vmem:[%s12 + $0x1e0] sm:$0xff]
        %v833 = vld [vmem:[%s12 + $0x1e8] sm:$0xff]
        %v834 = vld [vmem:[%s12 + $0x1f0] sm:$0xff]
        %v835 = vld [vmem:[%s12 + $0x1f8] sm:$0xff]
        %v836 = vlaneseq
        %v837 = vshrl.u32 %v836, 7
        %v838 = vadd.s32 %v837, 8
        %v841 = vunpack.c.l.s4 1966171168
        %v842 = vunpack.c.0.s8 %v841
        %v843 = vlaneseq
        %v844 = vshrl.u32 %v843, 7
        %v845 = vsub.s32 %v842, %v844
        %v846 = vrot.slane %v694, %v845
        %v848 = vadd.f32 %v706, %v846
        %v849 = vcombine.high %v846, %v846
        %v851 = vadd.f32 %v707, %v849
        %v852 = vfloor.f32 %v848
        %v853 = vfloor.f32 %v851
        %v854 = vsub.f32 %v848, %v852
        %v855 = vsub.f32 %v851, %v853
        %v856 = vcvt.f32.s32.to.zero.pseudo %v852
        %v857 = vcvt.f32.s32.to.zero.pseudo %v853
        %v858 = vlaneseq
        %v859 = vshrl.u32 %v858, 7
        %v860 = vsub.s32 0, %v859
        %v861 = vrot.slane %v856, %v860
        %v862 = vlaneseq
        %v863 = vshrl.u32 %v862, 7
        %v864 = vsub.s32 1, %v863
        %v865 = vrot.slane %v856, %v864
        %vm866 = vcmp.eq.s32.totalorder %v837, %v861
        %vm867 = vcmp.eq.s32.totalorder %v837, %v865
        %vm868 = vcmp.eq.s32.totalorder %v838, %v861
        %vm869 = vcmp.eq.s32.totalorder %v838, %v865
        %v870 = vsub.f32 1.0, %v854
        %v872 = vlaneseq
        %v873 = vshrl.u32 %v872, 7
        %v874 = vsub.s32 0, %v873
        %v875 = vrot.slane %v870, %v874
        %v876 = vlaneseq
        %v877 = vshrl.u32 %v876, 7
        %v878 = vsub.s32 1, %v877
        %v879 = vrot.slane %v870, %v878
        %v882 = vsel %vm866, %v875, 0.0
        %v883 = vsel %vm867, %v879, 0.0
        %v884 = vsel %vm868, %v875, 0.0
        %v885 = vsel %vm869, %v879, 0.0
        %v886 = vadd.s32 %v856, 1
        %v887 = vlaneseq
        %v888 = vshrl.u32 %v887, 7
        %v889 = vsub.s32 0, %v888
        %v890 = vrot.slane %v886, %v889
        %v891 = vlaneseq
        %v892 = vshrl.u32 %v891, 7
        %v893 = vsub.s32 1, %v892
        %v894 = vrot.slane %v886, %v893
        %vm895 = vcmp.eq.s32.totalorder %v837, %v890
        %vm896 = vcmp.eq.s32.totalorder %v837, %v894
        %vm897 = vcmp.eq.s32.totalorder %v838, %v890
        %vm898 = vcmp.eq.s32.totalorder %v838, %v894
        %v900 = vlaneseq
        %v901 = vshrl.u32 %v900, 7
        %v902 = vsub.s32 0, %v901
        %v903 = vrot.slane %v854, %v902
        %v904 = vlaneseq
        %v905 = vshrl.u32 %v904, 7
        %v906 = vsub.s32 1, %v905
        %v907 = vrot.slane %v854, %v906
        %v910 = vsel %vm895, %v903, 0.0
        %v911 = vsel %vm896, %v907, 0.0
        %v912 = vsel %vm897, %v903, 0.0
        %v913 = vsel %vm898, %v907, 0.0
        %v914 = vadd.f32 %v882, %v910
        %v915 = vadd.f32 %v883, %v911
        %v916 = vadd.f32 %v884, %v912
        %v917 = vadd.f32 %v885, %v913
        %v918 = vlaneseq
        %v919 = vshrl.u32 %v918, 7
        %v920 = vsub.s32 0, %v919
        %v921 = vrot.slane %v857, %v920
        %v922 = vlaneseq
        %v923 = vshrl.u32 %v922, 7
        %v924 = vsub.s32 1, %v923
        %v925 = vrot.slane %v857, %v924
        %vm926 = vcmp.eq.s32.totalorder %v837, %v921
        %vm927 = vcmp.eq.s32.totalorder %v837, %v925
        %vm928 = vcmp.eq.s32.totalorder %v838, %v921
        %vm929 = vcmp.eq.s32.totalorder %v838, %v925
        %v930 = vsub.f32 1.0, %v855
        %v932 = vlaneseq
        %v933 = vshrl.u32 %v932, 7
        %v934 = vsub.s32 0, %v933
        %v935 = vrot.slane %v930, %v934
        %v936 = vlaneseq
        %v937 = vshrl.u32 %v936, 7
        %v938 = vsub.s32 1, %v937
        %v939 = vrot.slane %v930, %v938
        %v942 = vsel %vm926, %v935, 0.0
        %v943 = vsel %vm927, %v939, 0.0
        %v944 = vsel %vm928, %v935, 0.0
        %v945 = vsel %vm929, %v939, 0.0
        %v946 = vadd.s32 %v857, 1
        %v947 = vlaneseq
        %v948 = vshrl.u32 %v947, 7
        %v949 = vsub.s32 0, %v948
        %v950 = vrot.slane %v946, %v949
        %v951 = vlaneseq
        %v952 = vshrl.u32 %v951, 7
        %v953 = vsub.s32 1, %v952
        %v954 = vrot.slane %v946, %v953
        %vm955 = vcmp.eq.s32.totalorder %v837, %v950
        %vm956 = vcmp.eq.s32.totalorder %v837, %v954
        %vm957 = vcmp.eq.s32.totalorder %v838, %v950
        %vm958 = vcmp.eq.s32.totalorder %v838, %v954
        %v960 = vlaneseq
        %v961 = vshrl.u32 %v960, 7
        %v962 = vsub.s32 0, %v961
        %v963 = vrot.slane %v855, %v962
        %v964 = vlaneseq
        %v965 = vshrl.u32 %v964, 7
        %v966 = vsub.s32 1, %v965
        %v967 = vrot.slane %v855, %v966
        %v970 = vsel %vm955, %v963, 0.0
        %v971 = vsel %vm956, %v967, 0.0
        %v972 = vsel %vm957, %v963, 0.0
        %v973 = vsel %vm958, %v967, 0.0
        %v974 = vadd.f32 %v942, %v970
        %v975 = vadd.f32 %v943, %v971
        %v976 = vadd.f32 %v944, %v972
        %v977 = vadd.f32 %v945, %v973
        %v978 = vlaneseq
        %v979 = vshrl.u32 %v978, 7
        %v980 = vsub.s32 0, %v979
        %v981 = vrot.slane %v974, %v980
        %v982 = vlaneseq
        %v983 = vshrl.u32 %v982, 7
        %v984 = vsub.s32 0, %v983
        %v985 = vrot.slane %v975, %v984
        %v986 = vmul.f32 %v981, %v914
        %v987 = vmul.f32 %v985, %v915
        %v988 = vmul.f32 %v981, %v916
        %v989 = vmul.f32 %v985, %v917
        %v990 = vpack.c.bf16 %v988, %v986
        %v991 = vpack.c.bf16 %v989, %v987
        %v992 = vlaneseq
        %v993 = vshrl.u32 %v992, 7
        %v994 = vsub.s32 1, %v993
        %v995 = vrot.slane %v974, %v994
        %v996 = vlaneseq
        %v997 = vshrl.u32 %v996, 7
        %v998 = vsub.s32 1, %v997
        %v999 = vrot.slane %v975, %v998
        %v1000 = vmul.f32 %v995, %v914
        %v1001 = vmul.f32 %v999, %v915
        %v1002 = vmul.f32 %v995, %v916
        %v1003 = vmul.f32 %v999, %v917
        %v1004 = vpack.c.bf16 %v1002, %v1000
        %v1005 = vpack.c.bf16 %v1003, %v1001
        %v1006 = vlaneseq
        %v1007 = vshrl.u32 %v1006, 7
        %v1008 = vsub.s32 2, %v1007
        %v1009 = vrot.slane %v974, %v1008
        %v1010 = vlaneseq
        %v1011 = vshrl.u32 %v1010, 7
        %v1012 = vsub.s32 2, %v1011
        %v1013 = vrot.slane %v975, %v1012
        %v1014 = vmul.f32 %v1009, %v914
        %v1015 = vmul.f32 %v1013, %v915
        %v1016 = vmul.f32 %v1009, %v916
        %v1017 = vmul.f32 %v1013, %v917
        %v1018 = vpack.c.bf16 %v1016, %v1014
        %v1019 = vpack.c.bf16 %v1017, %v1015
        %v1020 = vlaneseq
        %v1021 = vshrl.u32 %v1020, 7
        %v1022 = vsub.s32 3, %v1021
        %v1023 = vrot.slane %v974, %v1022
        %v1024 = vlaneseq
        %v1025 = vshrl.u32 %v1024, 7
        %v1026 = vsub.s32 3, %v1025
        %v1027 = vrot.slane %v975, %v1026
        %v1028 = vmul.f32 %v1023, %v914
        %v1029 = vmul.f32 %v1027, %v915
        %v1030 = vmul.f32 %v1023, %v916
        %v1031 = vmul.f32 %v1027, %v917
        %v1032 = vpack.c.bf16 %v1030, %v1028
        %v1033 = vpack.c.bf16 %v1031, %v1029
        %v1034 = vlaneseq
        %v1035 = vshrl.u32 %v1034, 7
        %v1036 = vsub.s32 4, %v1035
        %v1037 = vrot.slane %v974, %v1036
        %v1038 = vlaneseq
        %v1039 = vshrl.u32 %v1038, 7
        %v1040 = vsub.s32 4, %v1039
        %v1041 = vrot.slane %v975, %v1040
        %v1042 = vmul.f32 %v1037, %v914
        %v1043 = vmul.f32 %v1041, %v915
        %v1044 = vmul.f32 %v1037, %v916
        %v1045 = vmul.f32 %v1041, %v917
        %v1046 = vpack.c.bf16 %v1044, %v1042
        %v1047 = vpack.c.bf16 %v1045, %v1043
        %v1048 = vlaneseq
        %v1049 = vshrl.u32 %v1048, 7
        %v1050 = vsub.s32 5, %v1049
        %v1051 = vrot.slane %v974, %v1050
        %v1052 = vlaneseq
        %v1053 = vshrl.u32 %v1052, 7
        %v1054 = vsub.s32 5, %v1053
        %v1055 = vrot.slane %v975, %v1054
        %v1056 = vmul.f32 %v1051, %v914
        %v1057 = vmul.f32 %v1055, %v915
        %v1058 = vmul.f32 %v1051, %v916
        %v1059 = vmul.f32 %v1055, %v917
        %v1060 = vpack.c.bf16 %v1058, %v1056
        %v1061 = vpack.c.bf16 %v1059, %v1057
        %v1062 = vlaneseq
        %v1063 = vshrl.u32 %v1062, 7
        %v1064 = vsub.s32 6, %v1063
        %v1065 = vrot.slane %v974, %v1064
        %v1066 = vlaneseq
        %v1067 = vshrl.u32 %v1066, 7
        %v1068 = vsub.s32 6, %v1067
        %v1069 = vrot.slane %v975, %v1068
        %v1070 = vmul.f32 %v1065, %v914
        %v1071 = vmul.f32 %v1069, %v915
        %v1072 = vmul.f32 %v1065, %v916
        %v1073 = vmul.f32 %v1069, %v917
        %v1074 = vpack.c.bf16 %v1072, %v1070
        %v1075 = vpack.c.bf16 %v1073, %v1071
        %v1076 = vlaneseq
        %v1077 = vshrl.u32 %v1076, 7
        %v1078 = vsub.s32 7, %v1077
        %v1079 = vrot.slane %v974, %v1078
        %v1080 = vlaneseq
        %v1081 = vshrl.u32 %v1080, 7
        %v1082 = vsub.s32 7, %v1081
        %v1083 = vrot.slane %v975, %v1082
        %v1084 = vmul.f32 %v1079, %v914
        %v1085 = vmul.f32 %v1083, %v915
        %v1086 = vmul.f32 %v1079, %v916
        %v1087 = vmul.f32 %v1083, %v917
        %v1088 = vpack.c.bf16 %v1086, %v1084
        %v1089 = vpack.c.bf16 %v1087, %v1085
        %v1090 = vlaneseq
        %v1091 = vshrl.u32 %v1090, 7
        %v1092 = vsub.s32 0, %v1091
        %v1093 = vrot.slane %v976, %v1092
        %v1094 = vlaneseq
        %v1095 = vshrl.u32 %v1094, 7
        %v1096 = vsub.s32 0, %v1095
        %v1097 = vrot.slane %v977, %v1096
        %v1098 = vmul.f32 %v1093, %v914
        %v1099 = vmul.f32 %v1097, %v915
        %v1100 = vmul.f32 %v1093, %v916
        %v1101 = vmul.f32 %v1097, %v917
        %v1102 = vpack.c.bf16 %v1100, %v1098
        %v1103 = vpack.c.bf16 %v1101, %v1099
        %v1104 = vlaneseq
        %v1105 = vshrl.u32 %v1104, 7
        %v1106 = vsub.s32 1, %v1105
        %v1107 = vrot.slane %v976, %v1106
        %v1108 = vlaneseq
        %v1109 = vshrl.u32 %v1108, 7
        %v1110 = vsub.s32 1, %v1109
        %v1111 = vrot.slane %v977, %v1110
        %v1112 = vmul.f32 %v1107, %v914
        %v1113 = vmul.f32 %v1111, %v915
        %v1114 = vmul.f32 %v1107, %v916
        %v1115 = vmul.f32 %v1111, %v917
        %v1116 = vpack.c.bf16 %v1114, %v1112
        %v1117 = vpack.c.bf16 %v1115, %v1113
        %v1118 = vlaneseq
        %v1119 = vshrl.u32 %v1118, 7
        %v1120 = vsub.s32 2, %v1119
        %v1121 = vrot.slane %v976, %v1120
        %v1122 = vlaneseq
        %v1123 = vshrl.u32 %v1122, 7
        %v1124 = vsub.s32 2, %v1123
        %v1125 = vrot.slane %v977, %v1124
        %v1126 = vmul.f32 %v1121, %v914
        %v1127 = vmul.f32 %v1125, %v915
        %v1128 = vmul.f32 %v1121, %v916
        %v1129 = vmul.f32 %v1125, %v917
        %v1130 = vpack.c.bf16 %v1128, %v1126
        %v1131 = vpack.c.bf16 %v1129, %v1127
        %v1132 = vlaneseq
        %v1133 = vshrl.u32 %v1132, 7
        %v1134 = vsub.s32 3, %v1133
        %v1135 = vrot.slane %v976, %v1134
        %v1136 = vlaneseq
        %v1137 = vshrl.u32 %v1136, 7
        %v1138 = vsub.s32 3, %v1137
        %v1139 = vrot.slane %v977, %v1138
        %v1140 = vmul.f32 %v1135, %v914
        %v1141 = vmul.f32 %v1139, %v915
        %v1142 = vmul.f32 %v1135, %v916
        %v1143 = vmul.f32 %v1139, %v917
        %v1144 = vpack.c.bf16 %v1142, %v1140
        %v1145 = vpack.c.bf16 %v1143, %v1141
        %v1146 = vlaneseq
        %v1147 = vshrl.u32 %v1146, 7
        %v1148 = vsub.s32 4, %v1147
        %v1149 = vrot.slane %v976, %v1148
        %v1150 = vlaneseq
        %v1151 = vshrl.u32 %v1150, 7
        %v1152 = vsub.s32 4, %v1151
        %v1153 = vrot.slane %v977, %v1152
        %v1154 = vmul.f32 %v1149, %v914
        %v1155 = vmul.f32 %v1153, %v915
        %v1156 = vmul.f32 %v1149, %v916
        %v1157 = vmul.f32 %v1153, %v917
        %v1158 = vpack.c.bf16 %v1156, %v1154
        %v1159 = vpack.c.bf16 %v1157, %v1155
        %v1160 = vlaneseq
        %v1161 = vshrl.u32 %v1160, 7
        %v1162 = vsub.s32 5, %v1161
        %v1163 = vrot.slane %v976, %v1162
        %v1164 = vlaneseq
        %v1165 = vshrl.u32 %v1164, 7
        %v1166 = vsub.s32 5, %v1165
        %v1167 = vrot.slane %v977, %v1166
        %v1168 = vmul.f32 %v1163, %v914
        %v1169 = vmul.f32 %v1167, %v915
        %v1170 = vmul.f32 %v1163, %v916
        %v1171 = vmul.f32 %v1167, %v917
        %v1172 = vpack.c.bf16 %v1170, %v1168
        %v1173 = vpack.c.bf16 %v1171, %v1169
        %v1174 = vlaneseq
        %v1175 = vshrl.u32 %v1174, 7
        %v1176 = vsub.s32 6, %v1175
        %v1177 = vrot.slane %v976, %v1176
        %v1178 = vlaneseq
        %v1179 = vshrl.u32 %v1178, 7
        %v1180 = vsub.s32 6, %v1179
        %v1181 = vrot.slane %v977, %v1180
        %v1182 = vmul.f32 %v1177, %v914
        %v1183 = vmul.f32 %v1181, %v915
        %v1184 = vmul.f32 %v1177, %v916
        %v1185 = vmul.f32 %v1181, %v917
        %v1186 = vpack.c.bf16 %v1184, %v1182
        %v1187 = vpack.c.bf16 %v1185, %v1183
        %v1188 = vlaneseq
        %v1189 = vshrl.u32 %v1188, 7
        %v1190 = vsub.s32 7, %v1189
        %v1191 = vrot.slane %v976, %v1190
        %v1192 = vlaneseq
        %v1193 = vshrl.u32 %v1192, 7
        %v1194 = vsub.s32 7, %v1193
        %v1195 = vrot.slane %v977, %v1194
        %v1196 = vmul.f32 %v1191, %v914
        %v1197 = vmul.f32 %v1195, %v915
        %v1198 = vmul.f32 %v1191, %v916
        %v1199 = vmul.f32 %v1195, %v917
        %v1200 = vpack.c.bf16 %v1198, %v1196
        %v1201 = vpack.c.bf16 %v1199, %v1197
        %v1202 = vadd.f32 %v848, 0.5
        %v1203 = vxor.u32 %v1202, 2147483648
        %v1204 = vmul.f32 %v1203, 1.442695
        %v1205 = vpow.pop %v1204
        %v1206 = vadd.f32 %v1205, 1.0
        %v1207 = vrcp.pop %v1206
        %v1208 = vmul.f32 1.0, %v1207
        %v1209 = vsub.f32 %v848, 15.5
        %v1210 = vxor.u32 %v1209, 2147483648
        %v1211 = vmul.f32 %v1210, 1.442695
        %v1212 = vpow.pop %v1211
        %v1213 = vadd.f32 %v1212, 1.0
        %v1214 = vrcp.pop %v1213
        %v1215 = vmul.f32 1.0, %v1214
        %v1216 = vsub.f32 1.0, %v1215
        %v1217 = vmul.f32 %v1208, %v1216
        %v1218 = vadd.f32 %v851, 0.5
        %v1219 = vxor.u32 %v1218, 2147483648
        %v1220 = vmul.f32 %v1219, 1.442695
        %v1221 = vpow.pop %v1220
        %v1222 = vadd.f32 %v1221, 1.0
        %v1223 = vrcp.pop %v1222
        %v1224 = vmul.f32 1.0, %v1223
        %v1225 = vsub.f32 %v851, 15.5
        %v1226 = vxor.u32 %v1225, 2147483648
        %v1227 = vmul.f32 %v1226, 1.442695
        %v1228 = vpow.pop %v1227
        %v1229 = vadd.f32 %v1228, 1.0
        %v1230 = vrcp.pop %v1229
        %v1231 = vmul.f32 1.0, %v1230
        %v1232 = vsub.f32 1.0, %v1231
        %v1233 = vmul.f32 %v1224, %v1232
        %v1234 = vmul.f32 %v1217, %v1233
        %v1237 = vunpack.c.l.s4 1983009808
        %v1238 = vunpack.c.0.s8 %v1237
        %v1239 = vlaneseq
        %v1240 = vshrl.u32 %v1239, 7
        %v1241 = vsub.s32 %v1238, %v1240
        %v1242 = vrot.slane %v702, %v1241
        %v1243 = vcombine.high %v1242, %v1242
        %v1246 = vpack.c.bf16 %v1242, %v1242
        %v1247 = vpack.c.bf16 %v1243, %v1243
        %1248 = vmatprep.subr.bf16.mxu0 %v1089
        %1249 = vmatpush1.bf16.msra.mxu0 %v1088
        %1250 = vmatprep.subr.bf16.mxu0 %v1075
        %1251 = vmatpush1.bf16.msra.mxu0 %v1074
        %1252 = vmatprep.subr.bf16.mxu0 %v1061
        %1253 = vmatpush1.bf16.msra.mxu0 %v1060
        %1254 = vmatprep.subr.bf16.mxu0 %v1047
        %1255 = vmatpush1.bf16.msra.mxu0 %v1046
        %1256 = vmatprep.subr.bf16.mxu0 %v1033
        %1257 = vmatpush1.bf16.msra.mxu0 %v1032
        %1258 = vmatprep.subr.bf16.mxu0 %v1019
        %1259 = vmatpush1.bf16.msra.mxu0 %v1018
        %1260 = vmatprep.subr.bf16.mxu0 %v1005
        %1261 = vmatpush1.bf16.msra.mxu0 %v1004
        %1262 = vmatprep.subr.bf16.mxu0 %v991
        %1263 = vmatpush1.bf16.msra.mxu0 %v990
        %1264 = vmatprep.subr.bf16.mxu0 %v1201
        %1265 = vmatpush2.bf16.msra.mxu0 %v1200
        %1266 = vmatprep.subr.bf16.mxu0 %v1187
        %1267 = vmatpush2.bf16.msra.mxu0 %v1186
        %1268 = vmatprep.subr.bf16.mxu0 %v1173
        %1269 = vmatpush2.bf16.msra.mxu0 %v1172
        %1270 = vmatprep.subr.bf16.mxu0 %v1159
        %1271 = vmatpush2.bf16.msra.mxu0 %v1158
        %1272 = vmatprep.subr.bf16.mxu0 %v1145
        %1273 = vmatpush2.bf16.msra.mxu0 %v1144
        %1274 = vmatprep.subr.bf16.mxu0 %v1131
        %1275 = vmatpush2.bf16.msra.mxu0 %v1130
        %1276 = vmatprep.subr.bf16.mxu0 %v1117
        %1277 = vmatpush2.bf16.msra.mxu0 %v1116
        %1278 = vmatprep.subr.bf16.mxu0 %v1103
        %1279 = vmatpush2.bf16.msra.mxu0 %v1102
        %1280 = vmatprep.mubr.bf16.mxu0 %v1247
        %1281 = vmatmul.mubr.bf16.gmra.mxu0 %v1246
        %v1282 = vpop.f32.mrf.mxu0
        %v1283 = vadd.f32 0.0, %v1282
        %v1284 = vpop.f32.mrf.mxu0
        %v1285 = vadd.f32 0.0, %v1284
        %v1286 = vpop.f32.mrf.mxu0
        %v1287 = vpop.f32.mrf.mxu0
        %1288 = vdwg.mxu0
        %v1290 = vcombine.high %v704, %v704
        %v1292 = vpack.c.bf16 %v704, %v704
        %v1293 = vpack.c.bf16 %v1290, %v1290
        %1294 = vmatprep.subr.bf16.mxu0 %v1089
        %1295 = vmatpush1.bf16.msra.mxu0 %v1088
        %1296 = vmatprep.subr.bf16.mxu0 %v1075
        %1297 = vmatpush1.bf16.msra.mxu0 %v1074
        %1298 = vmatprep.subr.bf16.mxu0 %v1061
        %1299 = vmatpush1.bf16.msra.mxu0 %v1060
        %1300 = vmatprep.subr.bf16.mxu0 %v1047
        %1301 = vmatpush1.bf16.msra.mxu0 %v1046
        %1302 = vmatprep.subr.bf16.mxu0 %v1033
        %1303 = vmatpush1.bf16.msra.mxu0 %v1032
        %1304 = vmatprep.subr.bf16.mxu0 %v1019
        %1305 = vmatpush1.bf16.msra.mxu0 %v1018
        %1306 = vmatprep.subr.bf16.mxu0 %v1005
        %1307 = vmatpush1.bf16.msra.mxu0 %v1004
        %1308 = vmatprep.subr.bf16.mxu0 %v991
        %1309 = vmatpush1.bf16.msra.mxu0 %v990
        %1310 = vmatprep.subr.bf16.mxu0 %v1201
        %1311 = vmatpush2.bf16.msra.mxu0 %v1200
        %1312 = vmatprep.subr.bf16.mxu0 %v1187
        %1313 = vmatpush2.bf16.msra.mxu0 %v1186
        %1314 = vmatprep.subr.bf16.mxu0 %v1173
        %1315 = vmatpush2.bf16.msra.mxu0 %v1172
        %1316 = vmatprep.subr.bf16.mxu0 %v1159
        %1317 = vmatpush2.bf16.msra.mxu0 %v1158
        %1318 = vmatprep.subr.bf16.mxu0 %v1145
        %1319 = vmatpush2.bf16.msra.mxu0 %v1144
        %1320 = vmatprep.subr.bf16.mxu0 %v1131
        %1321 = vmatpush2.bf16.msra.mxu0 %v1130
        %1322 = vmatprep.subr.bf16.mxu0 %v1117
        %1323 = vmatpush2.bf16.msra.mxu0 %v1116
        %1324 = vmatprep.subr.bf16.mxu0 %v1103
        %1325 = vmatpush2.bf16.msra.mxu0 %v1102
        %1326 = vmatprep.mubr.bf16.mxu0 %v1293
        %1327 = vmatmul.mubr.bf16.gmra.mxu0 %v1292
        %v1328 = vpop.f32.mrf.mxu0
        %v1329 = vadd.f32 0.0, %v1328
        %v1330 = vpop.f32.mrf.mxu0
        %v1331 = vadd.f32 0.0, %v1330
        %v1332 = vpop.f32.mrf.mxu0
        %v1333 = vpop.f32.mrf.mxu0
        %1334 = vdwg.mxu0
        %v1335 = vmul.f32 %v694, %v694
        %v1336 = vmul.f32 %v1283, %v1283
        %v1337 = vmul.f32 %v1285, %v1285
        %v1340 = vcombine.low %v1336, %v1337
        %v1342 = vunpack.c.l.s4 1983009808
        %v1343 = vunpack.c.0.s8 %v1342
        %v1344 = vlaneseq
        %v1345 = vshrl.u32 %v1344, 7
        %v1346 = vsub.s32 %v1343, %v1345
        %v1347 = vrot.slane %v1340, %v1346
        %v1349 = vadd.f32 %v1335, %v1347
        %v1352 = vunpack.c.l.s4 1983009808
        %v1353 = vunpack.c.0.s8 %v1352
        %v1354 = vlaneseq
        %v1355 = vshrl.u32 %v1354, 7
        %v1356 = vsub.s32 %v1353, %v1355
        %v1357 = vrot.slane %v1349, %v1356
        %v1358 = vcombine.high %v1357, %v1357
        %vm1361 = vcmask 1041408
        %v1362 = vsel %vm1361, %v1357, 0.0
        %v1363 = vrot.slane %v1362, 4
        %v1364 = vadd.f32 %v1362, %v1363
        %v1365 = vrot.slane %v1364, 2
        %v1366 = vadd.f32 %v1364, %v1365
        %v1367 = vrot.slane %v1366, 1
        %v1368 = vadd.f32 %v1366, %v1367
        %v1369 = vsel %vm1361, %v1358, 0.0
        %v1370 = vrot.slane %v1369, 4
        %v1371 = vadd.f32 %v1369, %v1370
        %v1372 = vrot.slane %v1371, 2
        %v1373 = vadd.f32 %v1371, %v1372
        %v1374 = vrot.slane %v1373, 1
        %v1375 = vadd.f32 %v1373, %v1374
        %v1378 = vcombine.low %v1283, %v1285
        %v1380 = vunpack.c.l.s4 1983009808
        %v1381 = vunpack.c.0.s8 %v1380
        %v1382 = vlaneseq
        %v1383 = vshrl.u32 %v1382, 7
        %v1384 = vsub.s32 %v1381, %v1383
        %v1385 = vrot.slane %v1378, %v1384
        %v1387 = vadd.f32 %v694, %v1385
        %v1388 = vmul.f32 %v1387, %v1387
        %v1391 = vunpack.c.l.s4 1983009808
        %v1392 = vunpack.c.0.s8 %v1391
        %v1393 = vlaneseq
        %v1394 = vshrl.u32 %v1393, 7
        %v1395 = vsub.s32 %v1392, %v1394
        %v1396 = vrot.slane %v1388, %v1395
        %v1397 = vcombine.high %v1396, %v1396
        %v1400 = vsel %vm1361, %v1396, 0.0
        %v1401 = vrot.slane %v1400, 4
        %v1402 = vadd.f32 %v1400, %v1401
        %v1403 = vrot.slane %v1402, 2
        %v1404 = vadd.f32 %v1402, %v1403
        %v1405 = vrot.slane %v1404, 1
        %v1406 = vadd.f32 %v1404, %v1405
        %v1407 = vsel %vm1361, %v1397, 0.0
        %v1408 = vrot.slane %v1407, 4
        %v1409 = vadd.f32 %v1407, %v1408
        %v1410 = vrot.slane %v1409, 2
        %v1411 = vadd.f32 %v1409, %v1410
        %v1412 = vrot.slane %v1411, 1
        %v1413 = vadd.f32 %v1411, %v1412
        %v1414 = vmul.f32 %v1368, 0.01
        %v1415 = vmul.f32 %v1375, 0.01
        %v1416 = vadd.f32 %v1414, 0.5
        %v1417 = vadd.f32 %v1415, 0.5
        %v1418 = vsub.f32 %v1406, %v1416
        %v1419 = vsub.f32 %v1413, %v1417
        %v1420 = vxor.u32 %v1418, 2147483648
        %v1421 = vxor.u32 %v1419, 2147483648
        %v1422 = vmul.f32 %v1420, 1.442695
        %v1423 = vpow.pop %v1422
        %v1424 = vmul.f32 %v1421, 1.442695
        %v1425 = vpow.pop %v1424
        %v1426 = vadd.f32 %v1423, 1.0
        %v1427 = vadd.f32 %v1425, 1.0
        %v1428 = vrcp.pop %v1426
        %v1429 = vmul.f32 1.0, %v1428
        %v1430 = vrcp.pop %v1427
        %v1431 = vmul.f32 1.0, %v1430
        %v1432 = vsub.f32 1.0, %v1429
        %v1433 = vsub.f32 1.0, %v1431
        %v1436 = vcombine.low %v1432, %v1433
        %v1438 = vunpack.c.l.s4 1966171168
        %v1439 = vunpack.c.0.s8 %v1438
        %v1440 = vlaneseq
        %v1441 = vshrl.u32 %v1440, 7
        %v1442 = vsub.s32 %v1439, %v1441
        %v1443 = vrot.slane %v1436, %v1442
        %v1445 = vunpack.c.l.s4 1966171168
        %v1446 = vunpack.c.0.s8 %v1445
        %v1447 = vlaneseq
        %v1448 = vshrl.u32 %v1447, 7
        %v1449 = vsub.s32 %v1446, %v1448
        %v1450 = vrot.slane %v1443, %v1449
        %v1452 = vmul.f32 %v1234, %v1450
        %v1455 = vcombine.low %v1329, %v1331
        %v1457 = vsub.f32 %v703, %v1455
        %v1458 = vmul.f32 %v1457, %v1457
        %v1460 = vcombine.high %v1458, %v1458
        %vm1462 = vcmask 1042432
        %v1463 = vsel %vm1462, %v1458, 0.0
        %v1464 = vrot.slane %v1463, 4
        %v1465 = vadd.f32 %v1463, %v1464
        %v1466 = vrot.slane %v1465, 2
        %v1467 = vadd.f32 %v1465, %v1466
        %v1468 = vrot.slane %v1467, 1
        %v1469 = vadd.f32 %v1467, %v1468
        %v1470 = vsel %vm1462, %v1460, 0.0
        %v1471 = vrot.slane %v1470, 4
        %v1472 = vadd.f32 %v1470, %v1471
        %v1473 = vrot.slane %v1472, 2
        %v1474 = vadd.f32 %v1472, %v1473
        %v1475 = vrot.slane %v1474, 1
        %v1476 = vadd.f32 %v1474, %v1475
        %v1477 = vadd.f32 %v1469, 1e-05
        %v1478 = vadd.f32 %v1476, 1e-05
        %v1479 = vrsqrt.pop %v1477
        %v1480 = vmul.f32 %v1477, %v1479
        %vm1481 = vcmp.eq.f32.partialorder %v1477, inf
        %v1482 = vsel %vm1481, %v1477, %v1480
        %vm1483 = vcmp.eq.f32.partialorder %v1477, 0.0
        %v1484 = vand.u32 %v1477, 2147483648
        %v1485 = vsel %vm1483, %v1484, %v1482
        %v1486 = vrsqrt.pop %v1478
        %v1487 = vmul.f32 %v1478, %v1486
        %vm1488 = vcmp.eq.f32.partialorder %v1478, inf
        %v1489 = vsel %vm1488, %v1478, %v1487
        %vm1490 = vcmp.eq.f32.partialorder %v1478, 0.0
        %v1491 = vand.u32 %v1478, 2147483648
        %v1492 = vsel %vm1490, %v1491, %v1489
        %v1494 = vlaneseq
        %v1495 = vshrl.u32 %v1494, 7
        %v1496 = vsub.s32 0, %v1495
        %v1497 = vrot.slane %v1452, %v1496
        %v1498 = vlaneseq
        %v1499 = vshrl.u32 %v1498, 7
        %v1500 = vsub.s32 1, %v1499
        %v1501 = vrot.slane %v1452, %v1500
        %v1504 = vmul.f32 %v1485, %v1497
        %v1505 = vmul.f32 %v1492, %v1501
        %vm1506 = vcmask 1040384
        %v1507 = vsel %vm1506, %v1504, 0.0
        %v1508 = vsel %vm1506, %v1505, 0.0
        %v1509 = vadd.f32 %v1507, %v1508
        %1510 = vadd.xlane.f32.xlu0 %v1509
        %v1511 = vpop.xlane.xlu0 %1510
        %v1512 = vrot.slane %v1511, 4
        %v1513 = vadd.f32 %v1511, %v1512
        %v1514 = vrot.slane %v1513, 2
        %v1515 = vadd.f32 %v1513, %v1514
        %v1516 = vrot.slane %v1515, 1
        %v1517 = vadd.f32 %v1515, %v1516
        %s1518 = vtos %v1517
        %v1520 = vunpack.c.l.s4 1983009808
        %v1521 = vunpack.c.0.s8 %v1520
        %v1522 = vlaneseq
        %v1523 = vshrl.u32 %v1522, 7
        %v1524 = vsub.s32 %v1521, %v1523
        %v1525 = vrot.slane %v694, %v1524
        %v1526 = vcombine.high %v1525, %v1525
        %v1529 = vpack.c.bf16 %v1525, %v1525
        %v1530 = vpack.c.bf16 %v1526, %v1526
        %v1595 = vunpack.c.l.b16 %v708
        %v1596 = vunpack.c.h.b16 %v708
        %v1597 = vunpack.c.l.b16 %v709
        %v1598 = vunpack.c.h.b16 %v709
        %v1599 = vunpack.c.l.b16 %v710
        %v1600 = vunpack.c.h.b16 %v710
        %v1601 = vunpack.c.l.b16 %v711
        %v1602 = vunpack.c.h.b16 %v711
        %v1603 = vunpack.c.l.b16 %v712
        %v1604 = vunpack.c.h.b16 %v712
        %v1605 = vunpack.c.l.b16 %v713
        %v1606 = vunpack.c.h.b16 %v713
        %v1607 = vunpack.c.l.b16 %v714
        %v1608 = vunpack.c.h.b16 %v714
        %v1609 = vunpack.c.l.b16 %v715
        %v1610 = vunpack.c.h.b16 %v715
        %v1611 = vunpack.c.l.b16 %v716
        %v1612 = vunpack.c.h.b16 %v716
        %v1613 = vunpack.c.l.b16 %v717
        %v1614 = vunpack.c.h.b16 %v717
        %v1615 = vunpack.c.l.b16 %v718
        %v1616 = vunpack.c.h.b16 %v718
        %v1617 = vunpack.c.l.b16 %v719
        %v1618 = vunpack.c.h.b16 %v719
        %v1619 = vunpack.c.l.b16 %v720
        %v1620 = vunpack.c.h.b16 %v720
        %v1621 = vunpack.c.l.b16 %v721
        %v1622 = vunpack.c.h.b16 %v721
        %v1623 = vunpack.c.l.b16 %v722
        %v1624 = vunpack.c.h.b16 %v722
        %v1625 = vunpack.c.l.b16 %v723
        %v1626 = vunpack.c.h.b16 %v723
        %v1627 = vunpack.c.l.b16 %v724
        %v1628 = vunpack.c.h.b16 %v724
        %v1629 = vunpack.c.l.b16 %v725
        %v1630 = vunpack.c.h.b16 %v725
        %v1631 = vunpack.c.l.b16 %v726
        %v1632 = vunpack.c.h.b16 %v726
        %v1633 = vunpack.c.l.b16 %v727
        %v1634 = vunpack.c.h.b16 %v727
        %v1635 = vunpack.c.l.b16 %v728
        %v1636 = vunpack.c.h.b16 %v728
        %v1637 = vunpack.c.l.b16 %v729
        %v1638 = vunpack.c.h.b16 %v729
        %v1639 = vunpack.c.l.b16 %v730
        %v1640 = vunpack.c.h.b16 %v730
        %v1641 = vunpack.c.l.b16 %v731
        %v1642 = vunpack.c.h.b16 %v731
        %v1643 = vunpack.c.l.b16 %v732
        %v1644 = vunpack.c.h.b16 %v732
        %v1645 = vunpack.c.l.b16 %v733
        %v1646 = vunpack.c.h.b16 %v733
        %v1647 = vunpack.c.l.b16 %v734
        %v1648 = vunpack.c.h.b16 %v734
        %v1649 = vunpack.c.l.b16 %v735
        %v1650 = vunpack.c.h.b16 %v735
        %v1651 = vunpack.c.l.b16 %v736
        %v1652 = vunpack.c.h.b16 %v736
        %v1653 = vunpack.c.l.b16 %v737
        %v1654 = vunpack.c.h.b16 %v737
        %v1655 = vunpack.c.l.b16 %v738
        %v1656 = vunpack.c.h.b16 %v738
        %v1657 = vunpack.c.l.b16 %v739
        %v1658 = vunpack.c.h.b16 %v739
        %v1659 = vunpack.c.l.b16 %v740
        %v1660 = vunpack.c.h.b16 %v740
        %v1661 = vunpack.c.l.b16 %v741
        %v1662 = vunpack.c.h.b16 %v741
        %v1663 = vunpack.c.l.b16 %v742
        %v1664 = vunpack.c.h.b16 %v742
        %v1665 = vunpack.c.l.b16 %v743
        %v1666 = vunpack.c.h.b16 %v743
        %v1667 = vunpack.c.l.b16 %v744
        %v1668 = vunpack.c.h.b16 %v744
        %v1669 = vunpack.c.l.b16 %v745
        %v1670 = vunpack.c.h.b16 %v745
        %v1671 = vunpack.c.l.b16 %v746
        %v1672 = vunpack.c.h.b16 %v746
        %v1673 = vunpack.c.l.b16 %v747
        %v1674 = vunpack.c.h.b16 %v747
        %v1675 = vunpack.c.l.b16 %v748
        %v1676 = vunpack.c.h.b16 %v748
        %v1677 = vunpack.c.l.b16 %v749
        %v1678 = vunpack.c.h.b16 %v749
        %v1679 = vunpack.c.l.b16 %v750
        %v1680 = vunpack.c.h.b16 %v750
        %v1681 = vunpack.c.l.b16 %v751
        %v1682 = vunpack.c.h.b16 %v751
        %v1683 = vunpack.c.l.b16 %v752
        %v1684 = vunpack.c.h.b16 %v752
        %v1685 = vunpack.c.l.b16 %v753
        %v1686 = vunpack.c.h.b16 %v753
        %v1687 = vunpack.c.l.b16 %v754
        %v1688 = vunpack.c.h.b16 %v754
        %v1689 = vunpack.c.l.b16 %v755
        %v1690 = vunpack.c.h.b16 %v755
        %v1691 = vunpack.c.l.b16 %v756
        %v1692 = vunpack.c.h.b16 %v756
        %v1693 = vunpack.c.l.b16 %v757
        %v1694 = vunpack.c.h.b16 %v757
        %v1695 = vunpack.c.l.b16 %v758
        %v1696 = vunpack.c.h.b16 %v758
        %v1697 = vunpack.c.l.b16 %v759
        %v1698 = vunpack.c.h.b16 %v759
        %v1699 = vunpack.c.l.b16 %v760
        %v1700 = vunpack.c.h.b16 %v760
        %v1701 = vunpack.c.l.b16 %v761
        %v1702 = vunpack.c.h.b16 %v761
        %v1703 = vunpack.c.l.b16 %v762
        %v1704 = vunpack.c.h.b16 %v762
        %v1705 = vunpack.c.l.b16 %v763
        %v1706 = vunpack.c.h.b16 %v763
        %v1707 = vunpack.c.l.b16 %v764
        %v1708 = vunpack.c.h.b16 %v764
        %v1709 = vunpack.c.l.b16 %v765
        %v1710 = vunpack.c.h.b16 %v765
        %v1711 = vunpack.c.l.b16 %v766
        %v1712 = vunpack.c.h.b16 %v766
        %v1713 = vunpack.c.l.b16 %v767
        %v1714 = vunpack.c.h.b16 %v767
        %v1715 = vunpack.c.l.b16 %v768
        %v1716 = vunpack.c.h.b16 %v768
        %v1717 = vunpack.c.l.b16 %v769
        %v1718 = vunpack.c.h.b16 %v769
        %v1719 = vunpack.c.l.b16 %v770
        %v1720 = vunpack.c.h.b16 %v770
        %v1721 = vunpack.c.l.b16 %v771
        %v1722 = vunpack.c.h.b16 %v771
        %v1723 = vpack.c.b16 %v1599, %v1595
        %v1724 = vpack.c.b16 %v1600, %v1596
        %v1725 = vpack.c.b16 %v1601, %v1597
        %v1726 = vpack.c.b16 %v1602, %v1598
        %v1727 = vpack.c.b16 %v1607, %v1603
        %v1728 = vpack.c.b16 %v1608, %v1604
        %v1729 = vpack.c.b16 %v1609, %v1605
        %v1730 = vpack.c.b16 %v1610, %v1606
        %v1731 = vpack.c.b16 %v1615, %v1611
        %v1732 = vpack.c.b16 %v1616, %v1612
        %v1733 = vpack.c.b16 %v1617, %v1613
        %v1734 = vpack.c.b16 %v1618, %v1614
        %v1735 = vpack.c.b16 %v1623, %v1619
        %v1736 = vpack.c.b16 %v1624, %v1620
        %v1737 = vpack.c.b16 %v1625, %v1621
        %v1738 = vpack.c.b16 %v1626, %v1622
        %v1739 = vpack.c.b16 %v1631, %v1627
        %v1740 = vpack.c.b16 %v1632, %v1628
        %v1741 = vpack.c.b16 %v1633, %v1629
        %v1742 = vpack.c.b16 %v1634, %v1630
        %v1743 = vpack.c.b16 %v1639, %v1635
        %v1744 = vpack.c.b16 %v1640, %v1636
        %v1745 = vpack.c.b16 %v1641, %v1637
        %v1746 = vpack.c.b16 %v1642, %v1638
        %v1747 = vpack.c.b16 %v1647, %v1643
        %v1748 = vpack.c.b16 %v1648, %v1644
        %v1749 = vpack.c.b16 %v1649, %v1645
        %v1750 = vpack.c.b16 %v1650, %v1646
        %v1751 = vpack.c.b16 %v1655, %v1651
        %v1752 = vpack.c.b16 %v1656, %v1652
        %v1753 = vpack.c.b16 %v1657, %v1653
        %v1754 = vpack.c.b16 %v1658, %v1654
        %v1755 = vpack.c.b16 %v1663, %v1659
        %v1756 = vpack.c.b16 %v1664, %v1660
        %v1757 = vpack.c.b16 %v1665, %v1661
        %v1758 = vpack.c.b16 %v1666, %v1662
        %v1759 = vpack.c.b16 %v1671, %v1667
        %v1760 = vpack.c.b16 %v1672, %v1668
        %v1761 = vpack.c.b16 %v1673, %v1669
        %v1762 = vpack.c.b16 %v1674, %v1670
        %v1763 = vpack.c.b16 %v1679, %v1675
        %v1764 = vpack.c.b16 %v1680, %v1676
        %v1765 = vpack.c.b16 %v1681, %v1677
        %v1766 = vpack.c.b16 %v1682, %v1678
        %v1767 = vpack.c.b16 %v1687, %v1683
        %v1768 = vpack.c.b16 %v1688, %v1684
        %v1769 = vpack.c.b16 %v1689, %v1685
        %v1770 = vpack.c.b16 %v1690, %v1686
        %v1771 = vpack.c.b16 %v1695, %v1691
        %v1772 = vpack.c.b16 %v1696, %v1692
        %v1773 = vpack.c.b16 %v1697, %v1693
        %v1774 = vpack.c.b16 %v1698, %v1694
        %v1775 = vpack.c.b16 %v1703, %v1699
        %v1776 = vpack.c.b16 %v1704, %v1700
        %v1777 = vpack.c.b16 %v1705, %v1701
        %v1778 = vpack.c.b16 %v1706, %v1702
        %v1779 = vpack.c.b16 %v1711, %v1707
        %v1780 = vpack.c.b16 %v1712, %v1708
        %v1781 = vpack.c.b16 %v1713, %v1709
        %v1782 = vpack.c.b16 %v1714, %v1710
        %v1783 = vpack.c.b16 %v1719, %v1715
        %v1784 = vpack.c.b16 %v1720, %v1716
        %v1785 = vpack.c.b16 %v1721, %v1717
        %v1786 = vpack.c.b16 %v1722, %v1718
        %1851 = vmatprep.subr.bf16.mxu0 %v1752
        %1852 = vmatpush1.bf16.msra.mxu0 %v1751
        %1853 = vmatprep.subr.bf16.mxu0 %v1748
        %1854 = vmatpush1.bf16.msra.mxu0 %v1747
        %1855 = vmatprep.subr.bf16.mxu0 %v1744
        %1856 = vmatpush1.bf16.msra.mxu0 %v1743
        %1857 = vmatprep.subr.bf16.mxu0 %v1740
        %1858 = vmatpush1.bf16.msra.mxu0 %v1739
        %1859 = vmatprep.subr.bf16.mxu0 %v1736
        %1860 = vmatpush1.bf16.msra.mxu0 %v1735
        %1861 = vmatprep.subr.bf16.mxu0 %v1732
        %1862 = vmatpush1.bf16.msra.mxu0 %v1731
        %1863 = vmatprep.subr.bf16.mxu0 %v1728
        %1864 = vmatpush1.bf16.msra.mxu0 %v1727
        %1865 = vmatprep.subr.bf16.mxu0 %v1724
        %1866 = vmatpush1.bf16.msra.mxu0 %v1723
        %1867 = vmatprep.subr.bf16.mxu0 %v1784
        %1868 = vmatpush2.bf16.msra.mxu0 %v1783
        %1869 = vmatprep.subr.bf16.mxu0 %v1780
        %1870 = vmatpush2.bf16.msra.mxu0 %v1779
        %1871 = vmatprep.subr.bf16.mxu0 %v1776
        %1872 = vmatpush2.bf16.msra.mxu0 %v1775
        %1873 = vmatprep.subr.bf16.mxu0 %v1772
        %1874 = vmatpush2.bf16.msra.mxu0 %v1771
        %1875 = vmatprep.subr.bf16.mxu0 %v1768
        %1876 = vmatpush2.bf16.msra.mxu0 %v1767
        %1877 = vmatprep.subr.bf16.mxu0 %v1764
        %1878 = vmatpush2.bf16.msra.mxu0 %v1763
        %1879 = vmatprep.subr.bf16.mxu0 %v1760
        %1880 = vmatpush2.bf16.msra.mxu0 %v1759
        %1881 = vmatprep.subr.bf16.mxu0 %v1756
        %1882 = vmatpush2.bf16.msra.mxu0 %v1755
        %1883 = vmatprep.mubr.bf16.mxu0 %v1530
        %1884 = vmatmul.mubr.bf16.gmra.mxu0 %v1529
        %v1885 = vpop.f32.mrf.mxu0
        %v1886 = vadd.f32 0.0, %v1885
        %v1887 = vpop.f32.mrf.mxu0
        %v1888 = vadd.f32 0.0, %v1887
        %v1889 = vpop.f32.mrf.mxu0
        %v1890 = vpop.f32.mrf.mxu0
        %1891 = vdwg.mxu0
        %1892 = vmatprep.subr.bf16.mxu0 %v1754
        %1893 = vmatpush1.bf16.msra.mxu0 %v1753
        %1894 = vmatprep.subr.bf16.mxu0 %v1750
        %1895 = vmatpush1.bf16.msra.mxu0 %v1749
        %1896 = vmatprep.subr.bf16.mxu0 %v1746
        %1897 = vmatpush1.bf16.msra.mxu0 %v1745
        %1898 = vmatprep.subr.bf16.mxu0 %v1742
        %1899 = vmatpush1.bf16.msra.mxu0 %v1741
        %1900 = vmatprep.subr.bf16.mxu0 %v1738
        %1901 = vmatpush1.bf16.msra.mxu0 %v1737
        %1902 = vmatprep.subr.bf16.mxu0 %v1734
        %1903 = vmatpush1.bf16.msra.mxu0 %v1733
        %1904 = vmatprep.subr.bf16.mxu0 %v1730
        %1905 = vmatpush1.bf16.msra.mxu0 %v1729
        %1906 = vmatprep.subr.bf16.mxu0 %v1726
        %1907 = vmatpush1.bf16.msra.mxu0 %v1725
        %1908 = vmatprep.subr.bf16.mxu0 %v1786
        %1909 = vmatpush2.bf16.msra.mxu0 %v1785
        %1910 = vmatprep.subr.bf16.mxu0 %v1782
        %1911 = vmatpush2.bf16.msra.mxu0 %v1781
        %1912 = vmatprep.subr.bf16.mxu0 %v1778
        %1913 = vmatpush2.bf16.msra.mxu0 %v1777
        %1914 = vmatprep.subr.bf16.mxu0 %v1774
        %1915 = vmatpush2.bf16.msra.mxu0 %v1773
        %1916 = vmatprep.subr.bf16.mxu0 %v1770
        %1917 = vmatpush2.bf16.msra.mxu0 %v1769
        %1918 = vmatprep.subr.bf16.mxu0 %v1766
        %1919 = vmatpush2.bf16.msra.mxu0 %v1765
        %1920 = vmatprep.subr.bf16.mxu0 %v1762
        %1921 = vmatpush2.bf16.msra.mxu0 %v1761
        %1922 = vmatprep.subr.bf16.mxu0 %v1758
        %1923 = vmatpush2.bf16.msra.mxu0 %v1757
        %1924 = vmatprep.mubr.bf16.mxu0 %v1530
        %1925 = vmatmul.mubr.bf16.gmra.mxu0 %v1529
        %v1926 = vpop.f32.mrf.mxu0
        %v1927 = vadd.f32 0.0, %v1926
        %v1928 = vpop.f32.mrf.mxu0
        %v1929 = vadd.f32 0.0, %v1928
        %v1930 = vpop.f32.mrf.mxu0
        %v1931 = vpop.f32.mrf.mxu0
        %1932 = vdwg.mxu0
        %v1933 = vmul.f32 %v1886, %v1886
        %v1934 = vmul.f32 %v1888, %v1888
        %v1935 = vmul.f32 %v1927, %v1927
        %v1936 = vmul.f32 %v1929, %v1929
        %v1937 = vsel %vm1361, %v1933, 0.0
        %v1938 = vrot.slane %v1937, 4
        %v1939 = vadd.f32 %v1937, %v1938
        %v1940 = vrot.slane %v1939, 2
        %v1941 = vadd.f32 %v1939, %v1940
        %v1942 = vrot.slane %v1941, 1
        %v1943 = vadd.f32 %v1941, %v1942
        %v1944 = vsel %vm1361, %v1934, 0.0
        %v1945 = vrot.slane %v1944, 4
        %v1946 = vadd.f32 %v1944, %v1945
        %v1947 = vrot.slane %v1946, 2
        %v1948 = vadd.f32 %v1946, %v1947
        %v1949 = vrot.slane %v1948, 1
        %v1950 = vadd.f32 %v1948, %v1949
        %v1951 = vsel %vm1361, %v1935, 0.0
        %v1952 = vrot.slane %v1951, 4
        %v1953 = vadd.f32 %v1951, %v1952
        %v1954 = vrot.slane %v1953, 2
        %v1955 = vadd.f32 %v1953, %v1954
        %v1956 = vrot.slane %v1955, 1
        %v1957 = vadd.f32 %v1955, %v1956
        %v1958 = vsel %vm1361, %v1936, 0.0
        %v1959 = vrot.slane %v1958, 4
        %v1960 = vadd.f32 %v1958, %v1959
        %v1961 = vrot.slane %v1960, 2
        %v1962 = vadd.f32 %v1960, %v1961
        %v1963 = vrot.slane %v1962, 1
        %v1964 = vadd.f32 %v1962, %v1963
        %v1965 = vadd.f32 %v1943, %v1957
        %v1966 = vadd.f32 %v1950, %v1964
        %v1967 = vadd.f32 %v1965, 1e-05
        %v1968 = vadd.f32 %v1966, 1e-05
        %v1969 = vrsqrt.pop %v1967
        %v1970 = vmul.f32 %v1967, %v1969
        %vm1971 = vcmp.eq.f32.partialorder %v1967, inf
        %v1972 = vsel %vm1971, %v1967, %v1970
        %vm1973 = vcmp.eq.f32.partialorder %v1967, 0.0
        %v1974 = vand.u32 %v1967, 2147483648
        %v1975 = vsel %vm1973, %v1974, %v1972
        %v1976 = vrsqrt.pop %v1968
        %v1977 = vmul.f32 %v1968, %v1976
        %vm1978 = vcmp.eq.f32.partialorder %v1968, inf
        %v1979 = vsel %vm1978, %v1968, %v1977
        %vm1980 = vcmp.eq.f32.partialorder %v1968, 0.0
        %v1981 = vand.u32 %v1968, 2147483648
        %v1982 = vsel %vm1980, %v1981, %v1979
        %v1983 = vsel %vm1506, %v1975, 0.0
        %v1984 = vsel %vm1506, %v1982, 0.0
        %v1985 = vadd.f32 %v1983, %v1984
        %1986 = vadd.xlane.f32.xlu0 %v1985
        %v1987 = vpop.xlane.xlu0 %1986
        %v1988 = vrot.slane %v1987, 4
        %v1989 = vadd.f32 %v1987, %v1988
        %v1990 = vrot.slane %v1989, 2
        %v1991 = vadd.f32 %v1989, %v1990
        %v1992 = vrot.slane %v1991, 1
        %v1993 = vadd.f32 %v1991, %v1992
        %s1994 = vtos %v1993
        %v1996 = vcombine.high %v1457, %v1457
        %v1998 = vpack.c.bf16 %v1457, %v1457
        %v1999 = vpack.c.bf16 %v1996, %v1996
        %v2064 = vunpack.c.l.b16 %v772
        %v2065 = vunpack.c.h.b16 %v772
        %v2066 = vunpack.c.l.b16 %v773
        %v2067 = vunpack.c.h.b16 %v773
        %v2068 = vunpack.c.l.b16 %v774
        %v2069 = vunpack.c.h.b16 %v774
        %v2070 = vunpack.c.l.b16 %v775
        %v2071 = vunpack.c.h.b16 %v775
        %v2072 = vunpack.c.l.b16 %v776
        %v2073 = vunpack.c.h.b16 %v776
        %v2074 = vunpack.c.l.b16 %v777
        %v2075 = vunpack.c.h.b16 %v777
        %v2076 = vunpack.c.l.b16 %v778
        %v2077 = vunpack.c.h.b16 %v778
        %v2078 = vunpack.c.l.b16 %v779
        %v2079 = vunpack.c.h.b16 %v779
        %v2080 = vunpack.c.l.b16 %v780
        %v2081 = vunpack.c.h.b16 %v780
        %v2082 = vunpack.c.l.b16 %v781
        %v2083 = vunpack.c.h.b16 %v781
        %v2084 = vunpack.c.l.b16 %v782
        %v2085 = vunpack.c.h.b16 %v782
        %v2086 = vunpack.c.l.b16 %v783
        %v2087 = vunpack.c.h.b16 %v783
        %v2088 = vunpack.c.l.b16 %v784
        %v2089 = vunpack.c.h.b16 %v784
        %v2090 = vunpack.c.l.b16 %v785
        %v2091 = vunpack.c.h.b16 %v785
        %v2092 = vunpack.c.l.b16 %v786
        %v2093 = vunpack.c.h.b16 %v786
        %v2094 = vunpack.c.l.b16 %v787
        %v2095 = vunpack.c.h.b16 %v787
        %v2096 = vunpack.c.l.b16 %v788
        %v2097 = vunpack.c.h.b16 %v788
        %v2098 = vunpack.c.l.b16 %v789
        %v2099 = vunpack.c.h.b16 %v789
        %v2100 = vunpack.c.l.b16 %v790
        %v2101 = vunpack.c.h.b16 %v790
        %v2102 = vunpack.c.l.b16 %v791
        %v2103 = vunpack.c.h.b16 %v791
        %v2104 = vunpack.c.l.b16 %v792
        %v2105 = vunpack.c.h.b16 %v792
        %v2106 = vunpack.c.l.b16 %v793
        %v2107 = vunpack.c.h.b16 %v793
        %v2108 = vunpack.c.l.b16 %v794
        %v2109 = vunpack.c.h.b16 %v794
        %v2110 = vunpack.c.l.b16 %v795
        %v2111 = vunpack.c.h.b16 %v795
        %v2112 = vunpack.c.l.b16 %v796
        %v2113 = vunpack.c.h.b16 %v796
        %v2114 = vunpack.c.l.b16 %v797
        %v2115 = vunpack.c.h.b16 %v797
        %v2116 = vunpack.c.l.b16 %v798
        %v2117 = vunpack.c.h.b16 %v798
        %v2118 = vunpack.c.l.b16 %v799
        %v2119 = vunpack.c.h.b16 %v799
        %v2120 = vunpack.c.l.b16 %v800
        %v2121 = vunpack.c.h.b16 %v800
        %v2122 = vunpack.c.l.b16 %v801
        %v2123 = vunpack.c.h.b16 %v801
        %v2124 = vunpack.c.l.b16 %v802
        %v2125 = vunpack.c.h.b16 %v802
        %v2126 = vunpack.c.l.b16 %v803
        %v2127 = vunpack.c.h.b16 %v803
        %v2128 = vunpack.c.l.b16 %v804
        %v2129 = vunpack.c.h.b16 %v804
        %v2130 = vunpack.c.l.b16 %v805
        %v2131 = vunpack.c.h.b16 %v805
        %v2132 = vunpack.c.l.b16 %v806
        %v2133 = vunpack.c.h.b16 %v806
        %v2134 = vunpack.c.l.b16 %v807
        %v2135 = vunpack.c.h.b16 %v807
        %v2136 = vunpack.c.l.b16 %v808
        %v2137 = vunpack.c.h.b16 %v808
        %v2138 = vunpack.c.l.b16 %v809
        %v2139 = vunpack.c.h.b16 %v809
        %v2140 = vunpack.c.l.b16 %v810
        %v2141 = vunpack.c.h.b16 %v810
        %v2142 = vunpack.c.l.b16 %v811
        %v2143 = vunpack.c.h.b16 %v811
        %v2144 = vunpack.c.l.b16 %v812
        %v2145 = vunpack.c.h.b16 %v812
        %v2146 = vunpack.c.l.b16 %v813
        %v2147 = vunpack.c.h.b16 %v813
        %v2148 = vunpack.c.l.b16 %v814
        %v2149 = vunpack.c.h.b16 %v814
        %v2150 = vunpack.c.l.b16 %v815
        %v2151 = vunpack.c.h.b16 %v815
        %v2152 = vunpack.c.l.b16 %v816
        %v2153 = vunpack.c.h.b16 %v816
        %v2154 = vunpack.c.l.b16 %v817
        %v2155 = vunpack.c.h.b16 %v817
        %v2156 = vunpack.c.l.b16 %v818
        %v2157 = vunpack.c.h.b16 %v818
        %v2158 = vunpack.c.l.b16 %v819
        %v2159 = vunpack.c.h.b16 %v819
        %v2160 = vunpack.c.l.b16 %v820
        %v2161 = vunpack.c.h.b16 %v820
        %v2162 = vunpack.c.l.b16 %v821
        %v2163 = vunpack.c.h.b16 %v821
        %v2164 = vunpack.c.l.b16 %v822
        %v2165 = vunpack.c.h.b16 %v822
        %v2166 = vunpack.c.l.b16 %v823
        %v2167 = vunpack.c.h.b16 %v823
        %v2168 = vunpack.c.l.b16 %v824
        %v2169 = vunpack.c.h.b16 %v824
        %v2170 = vunpack.c.l.b16 %v825
        %v2171 = vunpack.c.h.b16 %v825
        %v2172 = vunpack.c.l.b16 %v826
        %v2173 = vunpack.c.h.b16 %v826
        %v2174 = vunpack.c.l.b16 %v827
        %v2175 = vunpack.c.h.b16 %v827
        %v2176 = vunpack.c.l.b16 %v828
        %v2177 = vunpack.c.h.b16 %v828
        %v2178 = vunpack.c.l.b16 %v829
        %v2179 = vunpack.c.h.b16 %v829
        %v2180 = vunpack.c.l.b16 %v830
        %v2181 = vunpack.c.h.b16 %v830
        %v2182 = vunpack.c.l.b16 %v831
        %v2183 = vunpack.c.h.b16 %v831
        %v2184 = vunpack.c.l.b16 %v832
        %v2185 = vunpack.c.h.b16 %v832
        %v2186 = vunpack.c.l.b16 %v833
        %v2187 = vunpack.c.h.b16 %v833
        %v2188 = vunpack.c.l.b16 %v834
        %v2189 = vunpack.c.h.b16 %v834
        %v2190 = vunpack.c.l.b16 %v835
        %v2191 = vunpack.c.h.b16 %v835
        %v2192 = vpack.c.b16 %v2068, %v2064
        %v2193 = vpack.c.b16 %v2069, %v2065
        %v2194 = vpack.c.b16 %v2070, %v2066
        %v2195 = vpack.c.b16 %v2071, %v2067
        %v2196 = vpack.c.b16 %v2076, %v2072
        %v2197 = vpack.c.b16 %v2077, %v2073
        %v2198 = vpack.c.b16 %v2078, %v2074
        %v2199 = vpack.c.b16 %v2079, %v2075
        %v2200 = vpack.c.b16 %v2084, %v2080
        %v2201 = vpack.c.b16 %v2085, %v2081
        %v2202 = vpack.c.b16 %v2086, %v2082
        %v2203 = vpack.c.b16 %v2087, %v2083
        %v2204 = vpack.c.b16 %v2092, %v2088
        %v2205 = vpack.c.b16 %v2093, %v2089
        %v2206 = vpack.c.b16 %v2094, %v2090
        %v2207 = vpack.c.b16 %v2095, %v2091
        %v2208 = vpack.c.b16 %v2100, %v2096
        %v2209 = vpack.c.b16 %v2101, %v2097
        %v2210 = vpack.c.b16 %v2102, %v2098
        %v2211 = vpack.c.b16 %v2103, %v2099
        %v2212 = vpack.c.b16 %v2108, %v2104
        %v2213 = vpack.c.b16 %v2109, %v2105
        %v2214 = vpack.c.b16 %v2110, %v2106
        %v2215 = vpack.c.b16 %v2111, %v2107
        %v2216 = vpack.c.b16 %v2116, %v2112
        %v2217 = vpack.c.b16 %v2117, %v2113
        %v2218 = vpack.c.b16 %v2118, %v2114
        %v2219 = vpack.c.b16 %v2119, %v2115
        %v2220 = vpack.c.b16 %v2124, %v2120
        %v2221 = vpack.c.b16 %v2125, %v2121
        %v2222 = vpack.c.b16 %v2126, %v2122
        %v2223 = vpack.c.b16 %v2127, %v2123
        %v2224 = vpack.c.b16 %v2132, %v2128
        %v2225 = vpack.c.b16 %v2133, %v2129
        %v2226 = vpack.c.b16 %v2134, %v2130
        %v2227 = vpack.c.b16 %v2135, %v2131
        %v2228 = vpack.c.b16 %v2140, %v2136
        %v2229 = vpack.c.b16 %v2141, %v2137
        %v2230 = vpack.c.b16 %v2142, %v2138
        %v2231 = vpack.c.b16 %v2143, %v2139
        %v2232 = vpack.c.b16 %v2148, %v2144
        %v2233 = vpack.c.b16 %v2149, %v2145
        %v2234 = vpack.c.b16 %v2150, %v2146
        %v2235 = vpack.c.b16 %v2151, %v2147
        %v2236 = vpack.c.b16 %v2156, %v2152
        %v2237 = vpack.c.b16 %v2157, %v2153
        %v2238 = vpack.c.b16 %v2158, %v2154
        %v2239 = vpack.c.b16 %v2159, %v2155
        %v2240 = vpack.c.b16 %v2164, %v2160
        %v2241 = vpack.c.b16 %v2165, %v2161
        %v2242 = vpack.c.b16 %v2166, %v2162
        %v2243 = vpack.c.b16 %v2167, %v2163
        %v2244 = vpack.c.b16 %v2172, %v2168
        %v2245 = vpack.c.b16 %v2173, %v2169
        %v2246 = vpack.c.b16 %v2174, %v2170
        %v2247 = vpack.c.b16 %v2175, %v2171
        %v2248 = vpack.c.b16 %v2180, %v2176
        %v2249 = vpack.c.b16 %v2181, %v2177
        %v2250 = vpack.c.b16 %v2182, %v2178
        %v2251 = vpack.c.b16 %v2183, %v2179
        %v2252 = vpack.c.b16 %v2188, %v2184
        %v2253 = vpack.c.b16 %v2189, %v2185
        %v2254 = vpack.c.b16 %v2190, %v2186
        %v2255 = vpack.c.b16 %v2191, %v2187
        %2320 = vmatprep.subr.bf16.mxu0 %v2221
        %2321 = vmatpush1.bf16.msra.mxu0 %v2220
        %2322 = vmatprep.subr.bf16.mxu0 %v2217
        %2323 = vmatpush1.bf16.msra.mxu0 %v2216
        %2324 = vmatprep.subr.bf16.mxu0 %v2213
        %2325 = vmatpush1.bf16.msra.mxu0 %v2212
        %2326 = vmatprep.subr.bf16.mxu0 %v2209
        %2327 = vmatpush1.bf16.msra.mxu0 %v2208
        %2328 = vmatprep.subr.bf16.mxu0 %v2205
        %2329 = vmatpush1.bf16.msra.mxu0 %v2204
        %2330 = vmatprep.subr.bf16.mxu0 %v2201
        %2331 = vmatpush1.bf16.msra.mxu0 %v2200
        %2332 = vmatprep.subr.bf16.mxu0 %v2197
        %2333 = vmatpush1.bf16.msra.mxu0 %v2196
        %2334 = vmatprep.subr.bf16.mxu0 %v2193
        %2335 = vmatpush1.bf16.msra.mxu0 %v2192
        %2336 = vmatprep.subr.bf16.mxu0 %v2253
        %2337 = vmatpush2.bf16.msra.mxu0 %v2252
        %2338 = vmatprep.subr.bf16.mxu0 %v2249
        %2339 = vmatpush2.bf16.msra.mxu0 %v2248
        %2340 = vmatprep.subr.bf16.mxu0 %v2245
        %2341 = vmatpush2.bf16.msra.mxu0 %v2244
        %2342 = vmatprep.subr.bf16.mxu0 %v2241
        %2343 = vmatpush2.bf16.msra.mxu0 %v2240
        %2344 = vmatprep.subr.bf16.mxu0 %v2237
        %2345 = vmatpush2.bf16.msra.mxu0 %v2236
        %2346 = vmatprep.subr.bf16.mxu0 %v2233
        %2347 = vmatpush2.bf16.msra.mxu0 %v2232
        %2348 = vmatprep.subr.bf16.mxu0 %v2229
        %2349 = vmatpush2.bf16.msra.mxu0 %v2228
        %2350 = vmatprep.subr.bf16.mxu0 %v2225
        %2351 = vmatpush2.bf16.msra.mxu0 %v2224
        %2352 = vmatprep.mubr.bf16.mxu0 %v1999
        %2353 = vmatmul.mubr.bf16.gmra.mxu0 %v1998
        %v2354 = vpop.f32.mrf.mxu0
        %v2355 = vadd.f32 0.0, %v2354
        %v2356 = vpop.f32.mrf.mxu0
        %v2357 = vadd.f32 0.0, %v2356
        %v2358 = vpop.f32.mrf.mxu0
        %v2359 = vpop.f32.mrf.mxu0
        %2360 = vdwg.mxu0
        %2361 = vmatprep.subr.bf16.mxu0 %v2223
        %2362 = vmatpush1.bf16.msra.mxu0 %v2222
        %2363 = vmatprep.subr.bf16.mxu0 %v2219
        %2364 = vmatpush1.bf16.msra.mxu0 %v2218
        %2365 = vmatprep.subr.bf16.mxu0 %v2215
        %2366 = vmatpush1.bf16.msra.mxu0 %v2214
        %2367 = vmatprep.subr.bf16.mxu0 %v2211
        %2368 = vmatpush1.bf16.msra.mxu0 %v2210
        %2369 = vmatprep.subr.bf16.mxu0 %v2207
        %2370 = vmatpush1.bf16.msra.mxu0 %v2206
        %2371 = vmatprep.subr.bf16.mxu0 %v2203
        %2372 = vmatpush1.bf16.msra.mxu0 %v2202
        %2373 = vmatprep.subr.bf16.mxu0 %v2199
        %2374 = vmatpush1.bf16.msra.mxu0 %v2198
        %2375 = vmatprep.subr.bf16.mxu0 %v2195
        %2376 = vmatpush1.bf16.msra.mxu0 %v2194
        %2377 = vmatprep.subr.bf16.mxu0 %v2255
        %2378 = vmatpush2.bf16.msra.mxu0 %v2254
        %2379 = vmatprep.subr.bf16.mxu0 %v2251
        %2380 = vmatpush2.bf16.msra.mxu0 %v2250
        %2381 = vmatprep.subr.bf16.mxu0 %v2247
        %2382 = vmatpush2.bf16.msra.mxu0 %v2246
        %2383 = vmatprep.subr.bf16.mxu0 %v2243
        %2384 = vmatpush2.bf16.msra.mxu0 %v2242
        %2385 = vmatprep.subr.bf16.mxu0 %v2239
        %2386 = vmatpush2.bf16.msra.mxu0 %v2238
        %2387 = vmatprep.subr.bf16.mxu0 %v2235
        %2388 = vmatpush2.bf16.msra.mxu0 %v2234
        %2389 = vmatprep.subr.bf16.mxu0 %v2231
        %2390 = vmatpush2.bf16.msra.mxu0 %v2230
        %2391 = vmatprep.subr.bf16.mxu0 %v2227
        %2392 = vmatpush2.bf16.msra.mxu0 %v2226
        %2393 = vmatprep.mubr.bf16.mxu0 %v1999
        %2394 = vmatmul.mubr.bf16.gmra.mxu0 %v1998
        %v2395 = vpop.f32.mrf.mxu0
        %v2396 = vadd.f32 0.0, %v2395
        %v2397 = vpop.f32.mrf.mxu0
        %v2398 = vadd.f32 0.0, %v2397
        %v2399 = vpop.f32.mrf.mxu0
        %v2400 = vpop.f32.mrf.mxu0
        %2401 = vdwg.mxu0
        %v2402 = vmul.f32 %v2355, %v2355
        %v2403 = vmul.f32 %v2357, %v2357
        %v2404 = vmul.f32 %v2396, %v2396
        %v2405 = vmul.f32 %v2398, %v2398
        %v2406 = vsel %vm1462, %v2402, 0.0
        %v2407 = vrot.slane %v2406, 4
        %v2408 = vadd.f32 %v2406, %v2407
        %v2409 = vrot.slane %v2408, 2
        %v2410 = vadd.f32 %v2408, %v2409
        %v2411 = vrot.slane %v2410, 1
        %v2412 = vadd.f32 %v2410, %v2411
        %v2413 = vsel %vm1462, %v2403, 0.0
        %v2414 = vrot.slane %v2413, 4
        %v2415 = vadd.f32 %v2413, %v2414
        %v2416 = vrot.slane %v2415, 2
        %v2417 = vadd.f32 %v2415, %v2416
        %v2418 = vrot.slane %v2417, 1
        %v2419 = vadd.f32 %v2417, %v2418
        %v2420 = vsel %vm1462, %v2404, 0.0
        %v2421 = vrot.slane %v2420, 4
        %v2422 = vadd.f32 %v2420, %v2421
        %v2423 = vrot.slane %v2422, 2
        %v2424 = vadd.f32 %v2422, %v2423
        %v2425 = vrot.slane %v2424, 1
        %v2426 = vadd.f32 %v2424, %v2425
        %v2427 = vsel %vm1462, %v2405, 0.0
        %v2428 = vrot.slane %v2427, 4
        %v2429 = vadd.f32 %v2427, %v2428
        %v2430 = vrot.slane %v2429, 2
        %v2431 = vadd.f32 %v2429, %v2430
        %v2432 = vrot.slane %v2431, 1
        %v2433 = vadd.f32 %v2431, %v2432
        %v2434 = vadd.f32 %v2412, %v2426
        %v2435 = vadd.f32 %v2419, %v2433
        %v2436 = vadd.f32 %v2434, 1e-05
        %v2437 = vadd.f32 %v2435, 1e-05
        %v2438 = vrsqrt.pop %v2436
        %v2439 = vmul.f32 %v2436, %v2438
        %vm2440 = vcmp.eq.f32.partialorder %v2436, inf
        %v2441 = vsel %vm2440, %v2436, %v2439
        %vm2442 = vcmp.eq.f32.partialorder %v2436, 0.0
        %v2443 = vand.u32 %v2436, 2147483648
        %v2444 = vsel %vm2442, %v2443, %v2441
        %v2445 = vrsqrt.pop %v2437
        %v2446 = vmul.f32 %v2437, %v2445
        %vm2447 = vcmp.eq.f32.partialorder %v2437, inf
        %v2448 = vsel %vm2447, %v2437, %v2446
        %vm2449 = vcmp.eq.f32.partialorder %v2437, 0.0
        %v2450 = vand.u32 %v2437, 2147483648
        %v2451 = vsel %vm2449, %v2450, %v2448
        %v2452 = vmul.f32 %v2444, %v1497
        %v2453 = vmul.f32 %v2451, %v1501
        %v2454 = vsel %vm1506, %v2452, 0.0
        %v2455 = vsel %vm1506, %v2453, 0.0
        %v2456 = vadd.f32 %v2454, %v2455
        %2457 = vadd.xlane.f32.xlu0 %v2456
        %v2458 = vpop.xlane.xlu0 %2457
        %v2459 = vrot.slane %v2458, 4
        %v2460 = vadd.f32 %v2458, %v2459
        %v2461 = vrot.slane %v2460, 2
        %v2462 = vadd.f32 %v2460, %v2461
        %v2463 = vrot.slane %v2462, 1
        %v2464 = vadd.f32 %v2462, %v2463
        %s2465 = vtos %v2464
        %v2466 = vsub.f32 1.0, %v1452
        %v2468 = vlaneseq
        %v2469 = vshrl.u32 %v2468, 7
        %v2470 = vsub.s32 0, %v2469
        %v2471 = vrot.slane %v2466, %v2470
        %v2472 = vlaneseq
        %v2473 = vshrl.u32 %v2472, 7
        %v2474 = vsub.s32 1, %v2473
        %v2475 = vrot.slane %v2466, %v2474
        %v2478 = vsel %vm1506, %v2471, 0.0
        %v2479 = vsel %vm1506, %v2475, 0.0
        %v2480 = vadd.f32 %v2478, %v2479
        %2481 = vadd.xlane.f32.xlu0 %v2480
        %v2482 = vpop.xlane.xlu0 %2481
        %v2483 = vrot.slane %v2482, 4
        %v2484 = vadd.f32 %v2482, %v2483
        %v2485 = vrot.slane %v2484, 2
        %v2486 = vadd.f32 %v2484, %v2485
        %v2487 = vrot.slane %v2486, 1
        %v2488 = vadd.f32 %v2486, %v2487
        %s2489 = vtos %v2488
        %v2490 = vadd.f32 %v1406, 1e-05
        %v2491 = vadd.f32 %v1413, 1e-05
        %v2492 = vrsqrt.pop %v2490
        %v2493 = vmul.f32 %v2490, %v2492
        %vm2494 = vcmp.eq.f32.partialorder %v2490, inf
        %v2495 = vsel %vm2494, %v2490, %v2493
        %vm2496 = vcmp.eq.f32.partialorder %v2490, 0.0
        %v2497 = vand.u32 %v2490, 2147483648
        %v2498 = vsel %vm2496, %v2497, %v2495
        %v2499 = vrsqrt.pop %v2491
        %v2500 = vmul.f32 %v2491, %v2499
        %vm2501 = vcmp.eq.f32.partialorder %v2491, inf
        %v2502 = vsel %vm2501, %v2491, %v2500
        %vm2503 = vcmp.eq.f32.partialorder %v2491, 0.0
        %v2504 = vand.u32 %v2491, 2147483648
        %v2505 = vsel %vm2503, %v2504, %v2502
        %v2506 = vmul.f32 %v2498, %v1497
        %v2507 = vmul.f32 %v2505, %v1501
        %v2508 = vsel %vm1506, %v2506, 0.0
        %v2509 = vsel %vm1506, %v2507, 0.0
        %v2510 = vadd.f32 %v2508, %v2509
        %2511 = vadd.xlane.f32.xlu0 %v2510
        %v2512 = vpop.xlane.xlu0 %2511
        %v2513 = vrot.slane %v2512, 4
        %v2514 = vadd.f32 %v2512, %v2513
        %v2515 = vrot.slane %v2514, 2
        %v2516 = vadd.f32 %v2514, %v2515
        %v2517 = vrot.slane %v2516, 1
        %v2518 = vadd.f32 %v2516, %v2517
        %s2519 = vtos %v2518
        %v2521 = vunpack.c.l.s4 1966171168
        %v2522 = vunpack.c.0.s8 %v2521
        %v2523 = vlaneseq
        %v2524 = vshrl.u32 %v2523, 7
        %v2525 = vsub.s32 %v2522, %v2524
        %v2526 = vrot.slane %v702, %v2525
        %v2528 = vadd.f32 %v706, %v2526
        %v2529 = vcombine.high %v2526, %v2526
        %v2531 = vadd.f32 %v707, %v2529
        %v2532 = vfloor.f32 %v2528
        %v2533 = vfloor.f32 %v2531
        %v2534 = vsub.f32 %v2528, %v2532
        %v2535 = vsub.f32 %v2531, %v2533
        %v2536 = vcvt.f32.s32.to.zero.pseudo %v2532
        %v2537 = vcvt.f32.s32.to.zero.pseudo %v2533
        %v2538 = vlaneseq
        %v2539 = vshrl.u32 %v2538, 7
        %v2540 = vsub.s32 0, %v2539
        %v2541 = vrot.slane %v2536, %v2540
        %v2542 = vlaneseq
        %v2543 = vshrl.u32 %v2542, 7
        %v2544 = vsub.s32 1, %v2543
        %v2545 = vrot.slane %v2536, %v2544
        %vm2546 = vcmp.eq.s32.totalorder %v837, %v2541
        %vm2547 = vcmp.eq.s32.totalorder %v837, %v2545
        %vm2548 = vcmp.eq.s32.totalorder %v838, %v2541
        %vm2549 = vcmp.eq.s32.totalorder %v838, %v2545
        %v2550 = vsub.f32 1.0, %v2534
        %v2552 = vlaneseq
        %v2553 = vshrl.u32 %v2552, 7
        %v2554 = vsub.s32 0, %v2553
        %v2555 = vrot.slane %v2550, %v2554
        %v2556 = vlaneseq
        %v2557 = vshrl.u32 %v2556, 7
        %v2558 = vsub.s32 1, %v2557
        %v2559 = vrot.slane %v2550, %v2558
        %v2562 = vsel %vm2546, %v2555, 0.0
        %v2563 = vsel %vm2547, %v2559, 0.0
        %v2564 = vsel %vm2548, %v2555, 0.0
        %v2565 = vsel %vm2549, %v2559, 0.0
        %v2566 = vadd.s32 %v2536, 1
        %v2567 = vlaneseq
        %v2568 = vshrl.u32 %v2567, 7
        %v2569 = vsub.s32 0, %v2568
        %v2570 = vrot.slane %v2566, %v2569
        %v2571 = vlaneseq
        %v2572 = vshrl.u32 %v2571, 7
        %v2573 = vsub.s32 1, %v2572
        %v2574 = vrot.slane %v2566, %v2573
        %vm2575 = vcmp.eq.s32.totalorder %v837, %v2570
        %vm2576 = vcmp.eq.s32.totalorder %v837, %v2574
        %vm2577 = vcmp.eq.s32.totalorder %v838, %v2570
        %vm2578 = vcmp.eq.s32.totalorder %v838, %v2574
        %v2580 = vlaneseq
        %v2581 = vshrl.u32 %v2580, 7
        %v2582 = vsub.s32 0, %v2581
        %v2583 = vrot.slane %v2534, %v2582
        %v2584 = vlaneseq
        %v2585 = vshrl.u32 %v2584, 7
        %v2586 = vsub.s32 1, %v2585
        %v2587 = vrot.slane %v2534, %v2586
        %v2590 = vsel %vm2575, %v2583, 0.0
        %v2591 = vsel %vm2576, %v2587, 0.0
        %v2592 = vsel %vm2577, %v2583, 0.0
        %v2593 = vsel %vm2578, %v2587, 0.0
        %v2594 = vadd.f32 %v2562, %v2590
        %v2595 = vadd.f32 %v2563, %v2591
        %v2596 = vadd.f32 %v2564, %v2592
        %v2597 = vadd.f32 %v2565, %v2593
        %v2598 = vlaneseq
        %v2599 = vshrl.u32 %v2598, 7
        %v2600 = vsub.s32 0, %v2599
        %v2601 = vrot.slane %v2537, %v2600
        %v2602 = vlaneseq
        %v2603 = vshrl.u32 %v2602, 7
        %v2604 = vsub.s32 1, %v2603
        %v2605 = vrot.slane %v2537, %v2604
        %vm2606 = vcmp.eq.s32.totalorder %v837, %v2601
        %vm2607 = vcmp.eq.s32.totalorder %v837, %v2605
        %vm2608 = vcmp.eq.s32.totalorder %v838, %v2601
        %vm2609 = vcmp.eq.s32.totalorder %v838, %v2605
        %v2610 = vsub.f32 1.0, %v2535
        %v2612 = vlaneseq
        %v2613 = vshrl.u32 %v2612, 7
        %v2614 = vsub.s32 0, %v2613
        %v2615 = vrot.slane %v2610, %v2614
        %v2616 = vlaneseq
        %v2617 = vshrl.u32 %v2616, 7
        %v2618 = vsub.s32 1, %v2617
        %v2619 = vrot.slane %v2610, %v2618
        %v2622 = vsel %vm2606, %v2615, 0.0
        %v2623 = vsel %vm2607, %v2619, 0.0
        %v2624 = vsel %vm2608, %v2615, 0.0
        %v2625 = vsel %vm2609, %v2619, 0.0
        %v2626 = vadd.s32 %v2537, 1
        %v2627 = vlaneseq
        %v2628 = vshrl.u32 %v2627, 7
        %v2629 = vsub.s32 0, %v2628
        %v2630 = vrot.slane %v2626, %v2629
        %v2631 = vlaneseq
        %v2632 = vshrl.u32 %v2631, 7
        %v2633 = vsub.s32 1, %v2632
        %v2634 = vrot.slane %v2626, %v2633
        %vm2635 = vcmp.eq.s32.totalorder %v837, %v2630
        %vm2636 = vcmp.eq.s32.totalorder %v837, %v2634
        %vm2637 = vcmp.eq.s32.totalorder %v838, %v2630
        %vm2638 = vcmp.eq.s32.totalorder %v838, %v2634
        %v2640 = vlaneseq
        %v2641 = vshrl.u32 %v2640, 7
        %v2642 = vsub.s32 0, %v2641
        %v2643 = vrot.slane %v2535, %v2642
        %v2644 = vlaneseq
        %v2645 = vshrl.u32 %v2644, 7
        %v2646 = vsub.s32 1, %v2645
        %v2647 = vrot.slane %v2535, %v2646
        %v2650 = vsel %vm2635, %v2643, 0.0
        %v2651 = vsel %vm2636, %v2647, 0.0
        %v2652 = vsel %vm2637, %v2643, 0.0
        %v2653 = vsel %vm2638, %v2647, 0.0
        %v2654 = vadd.f32 %v2622, %v2650
        %v2655 = vadd.f32 %v2623, %v2651
        %v2656 = vadd.f32 %v2624, %v2652
        %v2657 = vadd.f32 %v2625, %v2653
        %v2658 = vlaneseq
        %v2659 = vshrl.u32 %v2658, 7
        %v2660 = vsub.s32 0, %v2659
        %v2661 = vrot.slane %v2654, %v2660
        %v2662 = vlaneseq
        %v2663 = vshrl.u32 %v2662, 7
        %v2664 = vsub.s32 0, %v2663
        %v2665 = vrot.slane %v2655, %v2664
        %v2666 = vmul.f32 %v2661, %v2594
        %v2667 = vmul.f32 %v2665, %v2595
        %v2668 = vmul.f32 %v2661, %v2596
        %v2669 = vmul.f32 %v2665, %v2597
        %v2670 = vpack.c.bf16 %v2668, %v2666
        %v2671 = vpack.c.bf16 %v2669, %v2667
        %v2672 = vlaneseq
        %v2673 = vshrl.u32 %v2672, 7
        %v2674 = vsub.s32 1, %v2673
        %v2675 = vrot.slane %v2654, %v2674
        %v2676 = vlaneseq
        %v2677 = vshrl.u32 %v2676, 7
        %v2678 = vsub.s32 1, %v2677
        %v2679 = vrot.slane %v2655, %v2678
        %v2680 = vmul.f32 %v2675, %v2594
        %v2681 = vmul.f32 %v2679, %v2595
        %v2682 = vmul.f32 %v2675, %v2596
        %v2683 = vmul.f32 %v2679, %v2597
        %v2684 = vpack.c.bf16 %v2682, %v2680
        %v2685 = vpack.c.bf16 %v2683, %v2681
        %v2686 = vlaneseq
        %v2687 = vshrl.u32 %v2686, 7
        %v2688 = vsub.s32 2, %v2687
        %v2689 = vrot.slane %v2654, %v2688
        %v2690 = vlaneseq
        %v2691 = vshrl.u32 %v2690, 7
        %v2692 = vsub.s32 2, %v2691
        %v2693 = vrot.slane %v2655, %v2692
        %v2694 = vmul.f32 %v2689, %v2594
        %v2695 = vmul.f32 %v2693, %v2595
        %v2696 = vmul.f32 %v2689, %v2596
        %v2697 = vmul.f32 %v2693, %v2597
        %v2698 = vpack.c.bf16 %v2696, %v2694
        %v2699 = vpack.c.bf16 %v2697, %v2695
        %v2700 = vlaneseq
        %v2701 = vshrl.u32 %v2700, 7
        %v2702 = vsub.s32 3, %v2701
        %v2703 = vrot.slane %v2654, %v2702
        %v2704 = vlaneseq
        %v2705 = vshrl.u32 %v2704, 7
        %v2706 = vsub.s32 3, %v2705
        %v2707 = vrot.slane %v2655, %v2706
        %v2708 = vmul.f32 %v2703, %v2594
        %v2709 = vmul.f32 %v2707, %v2595
        %v2710 = vmul.f32 %v2703, %v2596
        %v2711 = vmul.f32 %v2707, %v2597
        %v2712 = vpack.c.bf16 %v2710, %v2708
        %v2713 = vpack.c.bf16 %v2711, %v2709
        %v2714 = vlaneseq
        %v2715 = vshrl.u32 %v2714, 7
        %v2716 = vsub.s32 4, %v2715
        %v2717 = vrot.slane %v2654, %v2716
        %v2718 = vlaneseq
        %v2719 = vshrl.u32 %v2718, 7
        %v2720 = vsub.s32 4, %v2719
        %v2721 = vrot.slane %v2655, %v2720
        %v2722 = vmul.f32 %v2717, %v2594
        %v2723 = vmul.f32 %v2721, %v2595
        %v2724 = vmul.f32 %v2717, %v2596
        %v2725 = vmul.f32 %v2721, %v2597
        %v2726 = vpack.c.bf16 %v2724, %v2722
        %v2727 = vpack.c.bf16 %v2725, %v2723
        %v2728 = vlaneseq
        %v2729 = vshrl.u32 %v2728, 7
        %v2730 = vsub.s32 5, %v2729
        %v2731 = vrot.slane %v2654, %v2730
        %v2732 = vlaneseq
        %v2733 = vshrl.u32 %v2732, 7
        %v2734 = vsub.s32 5, %v2733
        %v2735 = vrot.slane %v2655, %v2734
        %v2736 = vmul.f32 %v2731, %v2594
        %v2737 = vmul.f32 %v2735, %v2595
        %v2738 = vmul.f32 %v2731, %v2596
        %v2739 = vmul.f32 %v2735, %v2597
        %v2740 = vpack.c.bf16 %v2738, %v2736
        %v2741 = vpack.c.bf16 %v2739, %v2737
        %v2742 = vlaneseq
        %v2743 = vshrl.u32 %v2742, 7
        %v2744 = vsub.s32 6, %v2743
        %v2745 = vrot.slane %v2654, %v2744
        %v2746 = vlaneseq
        %v2747 = vshrl.u32 %v2746, 7
        %v2748 = vsub.s32 6, %v2747
        %v2749 = vrot.slane %v2655, %v2748
        %v2750 = vmul.f32 %v2745, %v2594
        %v2751 = vmul.f32 %v2749, %v2595
        %v2752 = vmul.f32 %v2745, %v2596
        %v2753 = vmul.f32 %v2749, %v2597
        %v2754 = vpack.c.bf16 %v2752, %v2750
        %v2755 = vpack.c.bf16 %v2753, %v2751
        %v2756 = vlaneseq
        %v2757 = vshrl.u32 %v2756, 7
        %v2758 = vsub.s32 7, %v2757
        %v2759 = vrot.slane %v2654, %v2758
        %v2760 = vlaneseq
        %v2761 = vshrl.u32 %v2760, 7
        %v2762 = vsub.s32 7, %v2761
        %v2763 = vrot.slane %v2655, %v2762
        %v2764 = vmul.f32 %v2759, %v2594
        %v2765 = vmul.f32 %v2763, %v2595
        %v2766 = vmul.f32 %v2759, %v2596
        %v2767 = vmul.f32 %v2763, %v2597
        %v2768 = vpack.c.bf16 %v2766, %v2764
        %v2769 = vpack.c.bf16 %v2767, %v2765
        %v2770 = vlaneseq
        %v2771 = vshrl.u32 %v2770, 7
        %v2772 = vsub.s32 0, %v2771
        %v2773 = vrot.slane %v2656, %v2772
        %v2774 = vlaneseq
        %v2775 = vshrl.u32 %v2774, 7
        %v2776 = vsub.s32 0, %v2775
        %v2777 = vrot.slane %v2657, %v2776
        %v2778 = vmul.f32 %v2773, %v2594
        %v2779 = vmul.f32 %v2777, %v2595
        %v2780 = vmul.f32 %v2773, %v2596
        %v2781 = vmul.f32 %v2777, %v2597
        %v2782 = vpack.c.bf16 %v2780, %v2778
        %v2783 = vpack.c.bf16 %v2781, %v2779
        %v2784 = vlaneseq
        %v2785 = vshrl.u32 %v2784, 7
        %v2786 = vsub.s32 1, %v2785
        %v2787 = vrot.slane %v2656, %v2786
        %v2788 = vlaneseq
        %v2789 = vshrl.u32 %v2788, 7
        %v2790 = vsub.s32 1, %v2789
        %v2791 = vrot.slane %v2657, %v2790
        %v2792 = vmul.f32 %v2787, %v2594
        %v2793 = vmul.f32 %v2791, %v2595
        %v2794 = vmul.f32 %v2787, %v2596
        %v2795 = vmul.f32 %v2791, %v2597
        %v2796 = vpack.c.bf16 %v2794, %v2792
        %v2797 = vpack.c.bf16 %v2795, %v2793
        %v2798 = vlaneseq
        %v2799 = vshrl.u32 %v2798, 7
        %v2800 = vsub.s32 2, %v2799
        %v2801 = vrot.slane %v2656, %v2800
        %v2802 = vlaneseq
        %v2803 = vshrl.u32 %v2802, 7
        %v2804 = vsub.s32 2, %v2803
        %v2805 = vrot.slane %v2657, %v2804
        %v2806 = vmul.f32 %v2801, %v2594
        %v2807 = vmul.f32 %v2805, %v2595
        %v2808 = vmul.f32 %v2801, %v2596
        %v2809 = vmul.f32 %v2805, %v2597
        %v2810 = vpack.c.bf16 %v2808, %v2806
        %v2811 = vpack.c.bf16 %v2809, %v2807
        %v2812 = vlaneseq
        %v2813 = vshrl.u32 %v2812, 7
        %v2814 = vsub.s32 3, %v2813
        %v2815 = vrot.slane %v2656, %v2814
        %v2816 = vlaneseq
        %v2817 = vshrl.u32 %v2816, 7
        %v2818 = vsub.s32 3, %v2817
        %v2819 = vrot.slane %v2657, %v2818
        %v2820 = vmul.f32 %v2815, %v2594
        %v2821 = vmul.f32 %v2819, %v2595
        %v2822 = vmul.f32 %v2815, %v2596
        %v2823 = vmul.f32 %v2819, %v2597
        %v2824 = vpack.c.bf16 %v2822, %v2820
        %v2825 = vpack.c.bf16 %v2823, %v2821
        %v2826 = vlaneseq
        %v2827 = vshrl.u32 %v2826, 7
        %v2828 = vsub.s32 4, %v2827
        %v2829 = vrot.slane %v2656, %v2828
        %v2830 = vlaneseq
        %v2831 = vshrl.u32 %v2830, 7
        %v2832 = vsub.s32 4, %v2831
        %v2833 = vrot.slane %v2657, %v2832
        %v2834 = vmul.f32 %v2829, %v2594
        %v2835 = vmul.f32 %v2833, %v2595
        %v2836 = vmul.f32 %v2829, %v2596
        %v2837 = vmul.f32 %v2833, %v2597
        %v2838 = vpack.c.bf16 %v2836, %v2834
        %v2839 = vpack.c.bf16 %v2837, %v2835
        %v2840 = vlaneseq
        %v2841 = vshrl.u32 %v2840, 7
        %v2842 = vsub.s32 5, %v2841
        %v2843 = vrot.slane %v2656, %v2842
        %v2844 = vlaneseq
        %v2845 = vshrl.u32 %v2844, 7
        %v2846 = vsub.s32 5, %v2845
        %v2847 = vrot.slane %v2657, %v2846
        %v2848 = vmul.f32 %v2843, %v2594
        %v2849 = vmul.f32 %v2847, %v2595
        %v2850 = vmul.f32 %v2843, %v2596
        %v2851 = vmul.f32 %v2847, %v2597
        %v2852 = vpack.c.bf16 %v2850, %v2848
        %v2853 = vpack.c.bf16 %v2851, %v2849
        %v2854 = vlaneseq
        %v2855 = vshrl.u32 %v2854, 7
        %v2856 = vsub.s32 6, %v2855
        %v2857 = vrot.slane %v2656, %v2856
        %v2858 = vlaneseq
        %v2859 = vshrl.u32 %v2858, 7
        %v2860 = vsub.s32 6, %v2859
        %v2861 = vrot.slane %v2657, %v2860
        %v2862 = vmul.f32 %v2857, %v2594
        %v2863 = vmul.f32 %v2861, %v2595
        %v2864 = vmul.f32 %v2857, %v2596
        %v2865 = vmul.f32 %v2861, %v2597
        %v2866 = vpack.c.bf16 %v2864, %v2862
        %v2867 = vpack.c.bf16 %v2865, %v2863
        %v2868 = vlaneseq
        %v2869 = vshrl.u32 %v2868, 7
        %v2870 = vsub.s32 7, %v2869
        %v2871 = vrot.slane %v2656, %v2870
        %v2872 = vlaneseq
        %v2873 = vshrl.u32 %v2872, 7
        %v2874 = vsub.s32 7, %v2873
        %v2875 = vrot.slane %v2657, %v2874
        %v2876 = vmul.f32 %v2871, %v2594
        %v2877 = vmul.f32 %v2875, %v2595
        %v2878 = vmul.f32 %v2871, %v2596
        %v2879 = vmul.f32 %v2875, %v2597
        %v2880 = vpack.c.bf16 %v2878, %v2876
        %v2881 = vpack.c.bf16 %v2879, %v2877
        %v2882 = vadd.f32 %v2528, 0.5
        %v2883 = vxor.u32 %v2882, 2147483648
        %v2884 = vmul.f32 %v2883, 1.442695
        %v2885 = vpow.pop %v2884
        %v2886 = vadd.f32 %v2885, 1.0
        %v2887 = vrcp.pop %v2886
        %v2888 = vmul.f32 1.0, %v2887
        %v2889 = vsub.f32 %v2528, 15.5
        %v2890 = vxor.u32 %v2889, 2147483648
        %v2891 = vmul.f32 %v2890, 1.442695
        %v2892 = vpow.pop %v2891
        %v2893 = vadd.f32 %v2892, 1.0
        %v2894 = vrcp.pop %v2893
        %v2895 = vmul.f32 1.0, %v2894
        %v2896 = vsub.f32 1.0, %v2895
        %v2897 = vmul.f32 %v2888, %v2896
        %v2898 = vadd.f32 %v2531, 0.5
        %v2899 = vxor.u32 %v2898, 2147483648
        %v2900 = vmul.f32 %v2899, 1.442695
        %v2901 = vpow.pop %v2900
        %v2902 = vadd.f32 %v2901, 1.0
        %v2903 = vrcp.pop %v2902
        %v2904 = vmul.f32 1.0, %v2903
        %v2905 = vsub.f32 %v2531, 15.5
        %v2906 = vxor.u32 %v2905, 2147483648
        %v2907 = vmul.f32 %v2906, 1.442695
        %v2908 = vpow.pop %v2907
        %v2909 = vadd.f32 %v2908, 1.0
        %v2910 = vrcp.pop %v2909
        %v2911 = vmul.f32 1.0, %v2910
        %v2912 = vsub.f32 1.0, %v2911
        %v2913 = vmul.f32 %v2904, %v2912
        %v2914 = vmul.f32 %v2897, %v2913
        %2915 = vmatprep.subr.bf16.mxu0 %v2769
        %2916 = vmatpush1.bf16.msra.mxu0 %v2768
        %2917 = vmatprep.subr.bf16.mxu0 %v2755
        %2918 = vmatpush1.bf16.msra.mxu0 %v2754
        %2919 = vmatprep.subr.bf16.mxu0 %v2741
        %2920 = vmatpush1.bf16.msra.mxu0 %v2740
        %2921 = vmatprep.subr.bf16.mxu0 %v2727
        %2922 = vmatpush1.bf16.msra.mxu0 %v2726
        %2923 = vmatprep.subr.bf16.mxu0 %v2713
        %2924 = vmatpush1.bf16.msra.mxu0 %v2712
        %2925 = vmatprep.subr.bf16.mxu0 %v2699
        %2926 = vmatpush1.bf16.msra.mxu0 %v2698
        %2927 = vmatprep.subr.bf16.mxu0 %v2685
        %2928 = vmatpush1.bf16.msra.mxu0 %v2684
        %2929 = vmatprep.subr.bf16.mxu0 %v2671
        %2930 = vmatpush1.bf16.msra.mxu0 %v2670
        %2931 = vmatprep.subr.bf16.mxu0 %v2881
        %2932 = vmatpush2.bf16.msra.mxu0 %v2880
        %2933 = vmatprep.subr.bf16.mxu0 %v2867
        %2934 = vmatpush2.bf16.msra.mxu0 %v2866
        %2935 = vmatprep.subr.bf16.mxu0 %v2853
        %2936 = vmatpush2.bf16.msra.mxu0 %v2852
        %2937 = vmatprep.subr.bf16.mxu0 %v2839
        %2938 = vmatpush2.bf16.msra.mxu0 %v2838
        %2939 = vmatprep.subr.bf16.mxu0 %v2825
        %2940 = vmatpush2.bf16.msra.mxu0 %v2824
        %2941 = vmatprep.subr.bf16.mxu0 %v2811
        %2942 = vmatpush2.bf16.msra.mxu0 %v2810
        %2943 = vmatprep.subr.bf16.mxu0 %v2797
        %2944 = vmatpush2.bf16.msra.mxu0 %v2796
        %2945 = vmatprep.subr.bf16.mxu0 %v2783
        %2946 = vmatpush2.bf16.msra.mxu0 %v2782
        %2947 = vmatprep.mubr.bf16.mxu0 %v1530
        %2948 = vmatmul.mubr.bf16.gmra.mxu0 %v1529
        %v2949 = vpop.f32.mrf.mxu0
        %v2950 = vadd.f32 0.0, %v2949
        %v2951 = vpop.f32.mrf.mxu0
        %v2952 = vadd.f32 0.0, %v2951
        %v2953 = vpop.f32.mrf.mxu0
        %v2954 = vpop.f32.mrf.mxu0
        %2955 = vdwg.mxu0
        %v2957 = vcombine.high %v703, %v703
        %v2959 = vpack.c.bf16 %v703, %v703
        %v2960 = vpack.c.bf16 %v2957, %v2957
        %2961 = vmatprep.subr.bf16.mxu0 %v2769
        %2962 = vmatpush1.bf16.msra.mxu0 %v2768
        %2963 = vmatprep.subr.bf16.mxu0 %v2755
        %2964 = vmatpush1.bf16.msra.mxu0 %v2754
        %2965 = vmatprep.subr.bf16.mxu0 %v2741
        %2966 = vmatpush1.bf16.msra.mxu0 %v2740
        %2967 = vmatprep.subr.bf16.mxu0 %v2727
        %2968 = vmatpush1.bf16.msra.mxu0 %v2726
        %2969 = vmatprep.subr.bf16.mxu0 %v2713
        %2970 = vmatpush1.bf16.msra.mxu0 %v2712
        %2971 = vmatprep.subr.bf16.mxu0 %v2699
        %2972 = vmatpush1.bf16.msra.mxu0 %v2698
        %2973 = vmatprep.subr.bf16.mxu0 %v2685
        %2974 = vmatpush1.bf16.msra.mxu0 %v2684
        %2975 = vmatprep.subr.bf16.mxu0 %v2671
        %2976 = vmatpush1.bf16.msra.mxu0 %v2670
        %2977 = vmatprep.subr.bf16.mxu0 %v2881
        %2978 = vmatpush2.bf16.msra.mxu0 %v2880
        %2979 = vmatprep.subr.bf16.mxu0 %v2867
        %2980 = vmatpush2.bf16.msra.mxu0 %v2866
        %2981 = vmatprep.subr.bf16.mxu0 %v2853
        %2982 = vmatpush2.bf16.msra.mxu0 %v2852
        %2983 = vmatprep.subr.bf16.mxu0 %v2839
        %2984 = vmatpush2.bf16.msra.mxu0 %v2838
        %2985 = vmatprep.subr.bf16.mxu0 %v2825
        %2986 = vmatpush2.bf16.msra.mxu0 %v2824
        %2987 = vmatprep.subr.bf16.mxu0 %v2811
        %2988 = vmatpush2.bf16.msra.mxu0 %v2810
        %2989 = vmatprep.subr.bf16.mxu0 %v2797
        %2990 = vmatpush2.bf16.msra.mxu0 %v2796
        %2991 = vmatprep.subr.bf16.mxu0 %v2783
        %2992 = vmatpush2.bf16.msra.mxu0 %v2782
        %2993 = vmatprep.mubr.bf16.mxu0 %v2960
        %2994 = vmatmul.mubr.bf16.gmra.mxu0 %v2959
        %v2995 = vpop.f32.mrf.mxu0
        %v2996 = vadd.f32 0.0, %v2995
        %v2997 = vpop.f32.mrf.mxu0
        %v2998 = vadd.f32 0.0, %v2997
        %v2999 = vpop.f32.mrf.mxu0
        %v3000 = vpop.f32.mrf.mxu0
        %3001 = vdwg.mxu0
        %v3002 = vmul.f32 %v702, %v702
        %v3003 = vmul.f32 %v2950, %v2950
        %v3004 = vmul.f32 %v2952, %v2952
        %v3007 = vcombine.low %v3003, %v3004
        %v3009 = vunpack.c.l.s4 1983009808
        %v3010 = vunpack.c.0.s8 %v3009
        %v3011 = vlaneseq
        %v3012 = vshrl.u32 %v3011, 7
        %v3013 = vsub.s32 %v3010, %v3012
        %v3014 = vrot.slane %v3007, %v3013
        %v3016 = vadd.f32 %v3002, %v3014
        %v3019 = vunpack.c.l.s4 1983009808
        %v3020 = vunpack.c.0.s8 %v3019
        %v3021 = vlaneseq
        %v3022 = vshrl.u32 %v3021, 7
        %v3023 = vsub.s32 %v3020, %v3022
        %v3024 = vrot.slane %v3016, %v3023
        %v3025 = vcombine.high %v3024, %v3024
        %v3028 = vsel %vm1361, %v3024, 0.0
        %v3029 = vrot.slane %v3028, 4
        %v3030 = vadd.f32 %v3028, %v3029
        %v3031 = vrot.slane %v3030, 2
        %v3032 = vadd.f32 %v3030, %v3031
        %v3033 = vrot.slane %v3032, 1
        %v3034 = vadd.f32 %v3032, %v3033
        %v3035 = vsel %vm1361, %v3025, 0.0
        %v3036 = vrot.slane %v3035, 4
        %v3037 = vadd.f32 %v3035, %v3036
        %v3038 = vrot.slane %v3037, 2
        %v3039 = vadd.f32 %v3037, %v3038
        %v3040 = vrot.slane %v3039, 1
        %v3041 = vadd.f32 %v3039, %v3040
        %v3044 = vcombine.low %v2950, %v2952
        %v3046 = vunpack.c.l.s4 1983009808
        %v3047 = vunpack.c.0.s8 %v3046
        %v3048 = vlaneseq
        %v3049 = vshrl.u32 %v3048, 7
        %v3050 = vsub.s32 %v3047, %v3049
        %v3051 = vrot.slane %v3044, %v3050
        %v3053 = vadd.f32 %v702, %v3051
        %v3054 = vmul.f32 %v3053, %v3053
        %v3057 = vunpack.c.l.s4 1983009808
        %v3058 = vunpack.c.0.s8 %v3057
        %v3059 = vlaneseq
        %v3060 = vshrl.u32 %v3059, 7
        %v3061 = vsub.s32 %v3058, %v3060
        %v3062 = vrot.slane %v3054, %v3061
        %v3063 = vcombine.high %v3062, %v3062
        %v3066 = vsel %vm1361, %v3062, 0.0
        %v3067 = vrot.slane %v3066, 4
        %v3068 = vadd.f32 %v3066, %v3067
        %v3069 = vrot.slane %v3068, 2
        %v3070 = vadd.f32 %v3068, %v3069
        %v3071 = vrot.slane %v3070, 1
        %v3072 = vadd.f32 %v3070, %v3071
        %v3073 = vsel %vm1361, %v3063, 0.0
        %v3074 = vrot.slane %v3073, 4
        %v3075 = vadd.f32 %v3073, %v3074
        %v3076 = vrot.slane %v3075, 2
        %v3077 = vadd.f32 %v3075, %v3076
        %v3078 = vrot.slane %v3077, 1
        %v3079 = vadd.f32 %v3077, %v3078
        %v3080 = vmul.f32 %v3034, 0.01
        %v3081 = vmul.f32 %v3041, 0.01
        %v3082 = vadd.f32 %v3080, 0.5
        %v3083 = vadd.f32 %v3081, 0.5
        %v3084 = vsub.f32 %v3072, %v3082
        %v3085 = vsub.f32 %v3079, %v3083
        %v3086 = vxor.u32 %v3084, 2147483648
        %v3087 = vxor.u32 %v3085, 2147483648
        %v3088 = vmul.f32 %v3086, 1.442695
        %v3089 = vpow.pop %v3088
        %v3090 = vmul.f32 %v3087, 1.442695
        %v3091 = vpow.pop %v3090
        %v3092 = vadd.f32 %v3089, 1.0
        %v3093 = vadd.f32 %v3091, 1.0
        %v3094 = vrcp.pop %v3092
        %v3095 = vmul.f32 1.0, %v3094
        %v3096 = vrcp.pop %v3093
        %v3097 = vmul.f32 1.0, %v3096
        %v3098 = vsub.f32 1.0, %v3095
        %v3099 = vsub.f32 1.0, %v3097
        %v3102 = vcombine.low %v3098, %v3099
        %v3104 = vunpack.c.l.s4 1966171168
        %v3105 = vunpack.c.0.s8 %v3104
        %v3106 = vlaneseq
        %v3107 = vshrl.u32 %v3106, 7
        %v3108 = vsub.s32 %v3105, %v3107
        %v3109 = vrot.slane %v3102, %v3108
        %v3111 = vunpack.c.l.s4 1966171168
        %v3112 = vunpack.c.0.s8 %v3111
        %v3113 = vlaneseq
        %v3114 = vshrl.u32 %v3113, 7
        %v3115 = vsub.s32 %v3112, %v3114
        %v3116 = vrot.slane %v3109, %v3115
        %v3118 = vmul.f32 %v2914, %v3116
        %v3121 = vcombine.low %v2996, %v2998
        %v3123 = vsub.f32 %v704, %v3121
        %v3124 = vmul.f32 %v3123, %v3123
        %v3126 = vcombine.high %v3124, %v3124
        %v3128 = vsel %vm1462, %v3124, 0.0
        %v3129 = vrot.slane %v3128, 4
        %v3130 = vadd.f32 %v3128, %v3129
        %v3131 = vrot.slane %v3130, 2
        %v3132 = vadd.f32 %v3130, %v3131
        %v3133 = vrot.slane %v3132, 1
        %v3134 = vadd.f32 %v3132, %v3133
        %v3135 = vsel %vm1462, %v3126, 0.0
        %v3136 = vrot.slane %v3135, 4
        %v3137 = vadd.f32 %v3135, %v3136
        %v3138 = vrot.slane %v3137, 2
        %v3139 = vadd.f32 %v3137, %v3138
        %v3140 = vrot.slane %v3139, 1
        %v3141 = vadd.f32 %v3139, %v3140
        %v3142 = vadd.f32 %v3134, 1e-05
        %v3143 = vadd.f32 %v3141, 1e-05
        %v3144 = vrsqrt.pop %v3142
        %v3145 = vmul.f32 %v3142, %v3144
        %vm3146 = vcmp.eq.f32.partialorder %v3142, inf
        %v3147 = vsel %vm3146, %v3142, %v3145
        %vm3148 = vcmp.eq.f32.partialorder %v3142, 0.0
        %v3149 = vand.u32 %v3142, 2147483648
        %v3150 = vsel %vm3148, %v3149, %v3147
        %v3151 = vrsqrt.pop %v3143
        %v3152 = vmul.f32 %v3143, %v3151
        %vm3153 = vcmp.eq.f32.partialorder %v3143, inf
        %v3154 = vsel %vm3153, %v3143, %v3152
        %vm3155 = vcmp.eq.f32.partialorder %v3143, 0.0
        %v3156 = vand.u32 %v3143, 2147483648
        %v3157 = vsel %vm3155, %v3156, %v3154
        %v3159 = vlaneseq
        %v3160 = vshrl.u32 %v3159, 7
        %v3161 = vsub.s32 0, %v3160
        %v3162 = vrot.slane %v3118, %v3161
        %v3163 = vlaneseq
        %v3164 = vshrl.u32 %v3163, 7
        %v3165 = vsub.s32 1, %v3164
        %v3166 = vrot.slane %v3118, %v3165
        %v3169 = vmul.f32 %v3150, %v3162
        %v3170 = vmul.f32 %v3157, %v3166
        %v3171 = vsel %vm1506, %v3169, 0.0
        %v3172 = vsel %vm1506, %v3170, 0.0
        %v3173 = vadd.f32 %v3171, %v3172
        %3174 = vadd.xlane.f32.xlu0 %v3173
        %v3175 = vpop.xlane.xlu0 %3174
        %v3176 = vrot.slane %v3175, 4
        %v3177 = vadd.f32 %v3175, %v3176
        %v3178 = vrot.slane %v3177, 2
        %v3179 = vadd.f32 %v3177, %v3178
        %v3180 = vrot.slane %v3179, 1
        %v3181 = vadd.f32 %v3179, %v3180
        %s3182 = vtos %v3181
        %3183 = vmatprep.subr.bf16.mxu0 %v1752
        %3184 = vmatpush1.bf16.msra.mxu0 %v1751
        %3185 = vmatprep.subr.bf16.mxu0 %v1748
        %3186 = vmatpush1.bf16.msra.mxu0 %v1747
        %3187 = vmatprep.subr.bf16.mxu0 %v1744
        %3188 = vmatpush1.bf16.msra.mxu0 %v1743
        %3189 = vmatprep.subr.bf16.mxu0 %v1740
        %3190 = vmatpush1.bf16.msra.mxu0 %v1739
        %3191 = vmatprep.subr.bf16.mxu0 %v1736
        %3192 = vmatpush1.bf16.msra.mxu0 %v1735
        %3193 = vmatprep.subr.bf16.mxu0 %v1732
        %3194 = vmatpush1.bf16.msra.mxu0 %v1731
        %3195 = vmatprep.subr.bf16.mxu0 %v1728
        %3196 = vmatpush1.bf16.msra.mxu0 %v1727
        %3197 = vmatprep.subr.bf16.mxu0 %v1724
        %3198 = vmatpush1.bf16.msra.mxu0 %v1723
        %3199 = vmatprep.subr.bf16.mxu0 %v1784
        %3200 = vmatpush2.bf16.msra.mxu0 %v1783
        %3201 = vmatprep.subr.bf16.mxu0 %v1780
        %3202 = vmatpush2.bf16.msra.mxu0 %v1779
        %3203 = vmatprep.subr.bf16.mxu0 %v1776
        %3204 = vmatpush2.bf16.msra.mxu0 %v1775
        %3205 = vmatprep.subr.bf16.mxu0 %v1772
        %3206 = vmatpush2.bf16.msra.mxu0 %v1771
        %3207 = vmatprep.subr.bf16.mxu0 %v1768
        %3208 = vmatpush2.bf16.msra.mxu0 %v1767
        %3209 = vmatprep.subr.bf16.mxu0 %v1764
        %3210 = vmatpush2.bf16.msra.mxu0 %v1763
        %3211 = vmatprep.subr.bf16.mxu0 %v1760
        %3212 = vmatpush2.bf16.msra.mxu0 %v1759
        %3213 = vmatprep.subr.bf16.mxu0 %v1756
        %3214 = vmatpush2.bf16.msra.mxu0 %v1755
        %3215 = vmatprep.mubr.bf16.mxu0 %v1247
        %3216 = vmatmul.mubr.bf16.gmra.mxu0 %v1246
        %v3217 = vpop.f32.mrf.mxu0
        %v3218 = vadd.f32 0.0, %v3217
        %v3219 = vpop.f32.mrf.mxu0
        %v3220 = vadd.f32 0.0, %v3219
        %v3221 = vpop.f32.mrf.mxu0
        %v3222 = vpop.f32.mrf.mxu0
        %3223 = vdwg.mxu0
        %3224 = vmatprep.subr.bf16.mxu0 %v1754
        %3225 = vmatpush1.bf16.msra.mxu0 %v1753
        %3226 = vmatprep.subr.bf16.mxu0 %v1750
        %3227 = vmatpush1.bf16.msra.mxu0 %v1749
        %3228 = vmatprep.subr.bf16.mxu0 %v1746
        %3229 = vmatpush1.bf16.msra.mxu0 %v1745
        %3230 = vmatprep.subr.bf16.mxu0 %v1742
        %3231 = vmatpush1.bf16.msra.mxu0 %v1741
        %3232 = vmatprep.subr.bf16.mxu0 %v1738
        %3233 = vmatpush1.bf16.msra.mxu0 %v1737
        %3234 = vmatprep.subr.bf16.mxu0 %v1734
        %3235 = vmatpush1.bf16.msra.mxu0 %v1733
        %3236 = vmatprep.subr.bf16.mxu0 %v1730
        %3237 = vmatpush1.bf16.msra.mxu0 %v1729
        %3238 = vmatprep.subr.bf16.mxu0 %v1726
        %3239 = vmatpush1.bf16.msra.mxu0 %v1725
        %3240 = vmatprep.subr.bf16.mxu0 %v1786
        %3241 = vmatpush2.bf16.msra.mxu0 %v1785
        %3242 = vmatprep.subr.bf16.mxu0 %v1782
        %3243 = vmatpush2.bf16.msra.mxu0 %v1781
        %3244 = vmatprep.subr.bf16.mxu0 %v1778
        %3245 = vmatpush2.bf16.msra.mxu0 %v1777
        %3246 = vmatprep.subr.bf16.mxu0 %v1774
        %3247 = vmatpush2.bf16.msra.mxu0 %v1773
        %3248 = vmatprep.subr.bf16.mxu0 %v1770
        %3249 = vmatpush2.bf16.msra.mxu0 %v1769
        %3250 = vmatprep.subr.bf16.mxu0 %v1766
        %3251 = vmatpush2.bf16.msra.mxu0 %v1765
        %3252 = vmatprep.subr.bf16.mxu0 %v1762
        %3253 = vmatpush2.bf16.msra.mxu0 %v1761
        %3254 = vmatprep.subr.bf16.mxu0 %v1758
        %3255 = vmatpush2.bf16.msra.mxu0 %v1757
        %3256 = vmatprep.mubr.bf16.mxu0 %v1247
        %3257 = vmatmul.mubr.bf16.gmra.mxu0 %v1246
        %v3258 = vpop.f32.mrf.mxu0
        %v3259 = vadd.f32 0.0, %v3258
        %v3260 = vpop.f32.mrf.mxu0
        %v3261 = vadd.f32 0.0, %v3260
        %v3262 = vpop.f32.mrf.mxu0
        %v3263 = vpop.f32.mrf.mxu0
        %3264 = vdwg.mxu0
        %v3265 = vmul.f32 %v3218, %v3218
        %v3266 = vmul.f32 %v3220, %v3220
        %v3267 = vmul.f32 %v3259, %v3259
        %v3268 = vmul.f32 %v3261, %v3261
        %v3269 = vsel %vm1361, %v3265, 0.0
        %v3270 = vrot.slane %v3269, 4
        %v3271 = vadd.f32 %v3269, %v3270
        %v3272 = vrot.slane %v3271, 2
        %v3273 = vadd.f32 %v3271, %v3272
        %v3274 = vrot.slane %v3273, 1
        %v3275 = vadd.f32 %v3273, %v3274
        %v3276 = vsel %vm1361, %v3266, 0.0
        %v3277 = vrot.slane %v3276, 4
        %v3278 = vadd.f32 %v3276, %v3277
        %v3279 = vrot.slane %v3278, 2
        %v3280 = vadd.f32 %v3278, %v3279
        %v3281 = vrot.slane %v3280, 1
        %v3282 = vadd.f32 %v3280, %v3281
        %v3283 = vsel %vm1361, %v3267, 0.0
        %v3284 = vrot.slane %v3283, 4
        %v3285 = vadd.f32 %v3283, %v3284
        %v3286 = vrot.slane %v3285, 2
        %v3287 = vadd.f32 %v3285, %v3286
        %v3288 = vrot.slane %v3287, 1
        %v3289 = vadd.f32 %v3287, %v3288
        %v3290 = vsel %vm1361, %v3268, 0.0
        %v3291 = vrot.slane %v3290, 4
        %v3292 = vadd.f32 %v3290, %v3291
        %v3293 = vrot.slane %v3292, 2
        %v3294 = vadd.f32 %v3292, %v3293
        %v3295 = vrot.slane %v3294, 1
        %v3296 = vadd.f32 %v3294, %v3295
        %v3297 = vadd.f32 %v3275, %v3289
        %v3298 = vadd.f32 %v3282, %v3296
        %v3299 = vadd.f32 %v3297, 1e-05
        %v3300 = vadd.f32 %v3298, 1e-05
        %v3301 = vrsqrt.pop %v3299
        %v3302 = vmul.f32 %v3299, %v3301
        %vm3303 = vcmp.eq.f32.partialorder %v3299, inf
        %v3304 = vsel %vm3303, %v3299, %v3302
        %vm3305 = vcmp.eq.f32.partialorder %v3299, 0.0
        %v3306 = vand.u32 %v3299, 2147483648
        %v3307 = vsel %vm3305, %v3306, %v3304
        %v3308 = vrsqrt.pop %v3300
        %v3309 = vmul.f32 %v3300, %v3308
        %vm3310 = vcmp.eq.f32.partialorder %v3300, inf
        %v3311 = vsel %vm3310, %v3300, %v3309
        %vm3312 = vcmp.eq.f32.partialorder %v3300, 0.0
        %v3313 = vand.u32 %v3300, 2147483648
        %v3314 = vsel %vm3312, %v3313, %v3311
        %v3315 = vsel %vm1506, %v3307, 0.0
        %v3316 = vsel %vm1506, %v3314, 0.0
        %v3317 = vadd.f32 %v3315, %v3316
        %3318 = vadd.xlane.f32.xlu0 %v3317
        %v3319 = vpop.xlane.xlu0 %3318
        %v3320 = vrot.slane %v3319, 4
        %v3321 = vadd.f32 %v3319, %v3320
        %v3322 = vrot.slane %v3321, 2
        %v3323 = vadd.f32 %v3321, %v3322
        %v3324 = vrot.slane %v3323, 1
        %v3325 = vadd.f32 %v3323, %v3324
        %s3326 = vtos %v3325
        %v3328 = vcombine.high %v3123, %v3123
        %v3330 = vpack.c.bf16 %v3123, %v3123
        %v3331 = vpack.c.bf16 %v3328, %v3328
        %3332 = vmatprep.subr.bf16.mxu0 %v2221
        %3333 = vmatpush1.bf16.msra.mxu0 %v2220
        %3334 = vmatprep.subr.bf16.mxu0 %v2217
        %3335 = vmatpush1.bf16.msra.mxu0 %v2216
        %3336 = vmatprep.subr.bf16.mxu0 %v2213
        %3337 = vmatpush1.bf16.msra.mxu0 %v2212
        %3338 = vmatprep.subr.bf16.mxu0 %v2209
        %3339 = vmatpush1.bf16.msra.mxu0 %v2208
        %3340 = vmatprep.subr.bf16.mxu0 %v2205
        %3341 = vmatpush1.bf16.msra.mxu0 %v2204
        %3342 = vmatprep.subr.bf16.mxu0 %v2201
        %3343 = vmatpush1.bf16.msra.mxu0 %v2200
        %3344 = vmatprep.subr.bf16.mxu0 %v2197
        %3345 = vmatpush1.bf16.msra.mxu0 %v2196
        %3346 = vmatprep.subr.bf16.mxu0 %v2193
        %3347 = vmatpush1.bf16.msra.mxu0 %v2192
        %3348 = vmatprep.subr.bf16.mxu0 %v2253
        %3349 = vmatpush2.bf16.msra.mxu0 %v2252
        %3350 = vmatprep.subr.bf16.mxu0 %v2249
        %3351 = vmatpush2.bf16.msra.mxu0 %v2248
        %3352 = vmatprep.subr.bf16.mxu0 %v2245
        %3353 = vmatpush2.bf16.msra.mxu0 %v2244
        %3354 = vmatprep.subr.bf16.mxu0 %v2241
        %3355 = vmatpush2.bf16.msra.mxu0 %v2240
        %3356 = vmatprep.subr.bf16.mxu0 %v2237
        %3357 = vmatpush2.bf16.msra.mxu0 %v2236
        %3358 = vmatprep.subr.bf16.mxu0 %v2233
        %3359 = vmatpush2.bf16.msra.mxu0 %v2232
        %3360 = vmatprep.subr.bf16.mxu0 %v2229
        %3361 = vmatpush2.bf16.msra.mxu0 %v2228
        %3362 = vmatprep.subr.bf16.mxu0 %v2225
        %3363 = vmatpush2.bf16.msra.mxu0 %v2224
        %3364 = vmatprep.mubr.bf16.mxu0 %v3331
        %3365 = vmatmul.mubr.bf16.gmra.mxu0 %v3330
        %v3366 = vpop.f32.mrf.mxu0
        %v3367 = vadd.f32 0.0, %v3366
        %v3368 = vpop.f32.mrf.mxu0
        %v3369 = vadd.f32 0.0, %v3368
        %v3370 = vpop.f32.mrf.mxu0
        %v3371 = vpop.f32.mrf.mxu0
        %3372 = vdwg.mxu0
        %3373 = vmatprep.subr.bf16.mxu0 %v2223
        %3374 = vmatpush1.bf16.msra.mxu0 %v2222
        %3375 = vmatprep.subr.bf16.mxu0 %v2219
        %3376 = vmatpush1.bf16.msra.mxu0 %v2218
        %3377 = vmatprep.subr.bf16.mxu0 %v2215
        %3378 = vmatpush1.bf16.msra.mxu0 %v2214
        %3379 = vmatprep.subr.bf16.mxu0 %v2211
        %3380 = vmatpush1.bf16.msra.mxu0 %v2210
        %3381 = vmatprep.subr.bf16.mxu0 %v2207
        %3382 = vmatpush1.bf16.msra.mxu0 %v2206
        %3383 = vmatprep.subr.bf16.mxu0 %v2203
        %3384 = vmatpush1.bf16.msra.mxu0 %v2202
        %3385 = vmatprep.subr.bf16.mxu0 %v2199
        %3386 = vmatpush1.bf16.msra.mxu0 %v2198
        %3387 = vmatprep.subr.bf16.mxu0 %v2195
        %3388 = vmatpush1.bf16.msra.mxu0 %v2194
        %3389 = vmatprep.subr.bf16.mxu0 %v2255
        %3390 = vmatpush2.bf16.msra.mxu0 %v2254
        %3391 = vmatprep.subr.bf16.mxu0 %v2251
        %3392 = vmatpush2.bf16.msra.mxu0 %v2250
        %3393 = vmatprep.subr.bf16.mxu0 %v2247
        %3394 = vmatpush2.bf16.msra.mxu0 %v2246
        %3395 = vmatprep.subr.bf16.mxu0 %v2243
        %3396 = vmatpush2.bf16.msra.mxu0 %v2242
        %3397 = vmatprep.subr.bf16.mxu0 %v2239
        %3398 = vmatpush2.bf16.msra.mxu0 %v2238
        %3399 = vmatprep.subr.bf16.mxu0 %v2235
        %3400 = vmatpush2.bf16.msra.mxu0 %v2234
        %3401 = vmatprep.subr.bf16.mxu0 %v2231
        %3402 = vmatpush2.bf16.msra.mxu0 %v2230
        %3403 = vmatprep.subr.bf16.mxu0 %v2227
        %3404 = vmatpush2.bf16.msra.mxu0 %v2226
        %3405 = vmatprep.mubr.bf16.mxu0 %v3331
        %3406 = vmatmul.mubr.bf16.gmra.mxu0 %v3330
        %v3407 = vpop.f32.mrf.mxu0
        %v3408 = vadd.f32 0.0, %v3407
        %v3409 = vpop.f32.mrf.mxu0
        %v3410 = vadd.f32 0.0, %v3409
        %v3411 = vpop.f32.mrf.mxu0
        %v3412 = vpop.f32.mrf.mxu0
        %3413 = vdwg.mxu0
        %v3414 = vmul.f32 %v3367, %v3367
        %v3415 = vmul.f32 %v3369, %v3369
        %v3416 = vmul.f32 %v3408, %v3408
        %v3417 = vmul.f32 %v3410, %v3410
        %v3418 = vsel %vm1462, %v3414, 0.0
        %v3419 = vrot.slane %v3418, 4
        %v3420 = vadd.f32 %v3418, %v3419
        %v3421 = vrot.slane %v3420, 2
        %v3422 = vadd.f32 %v3420, %v3421
        %v3423 = vrot.slane %v3422, 1
        %v3424 = vadd.f32 %v3422, %v3423
        %v3425 = vsel %vm1462, %v3415, 0.0
        %v3426 = vrot.slane %v3425, 4
        %v3427 = vadd.f32 %v3425, %v3426
        %v3428 = vrot.slane %v3427, 2
        %v3429 = vadd.f32 %v3427, %v3428
        %v3430 = vrot.slane %v3429, 1
        %v3431 = vadd.f32 %v3429, %v3430
        %v3432 = vsel %vm1462, %v3416, 0.0
        %v3433 = vrot.slane %v3432, 4
        %v3434 = vadd.f32 %v3432, %v3433
        %v3435 = vrot.slane %v3434, 2
        %v3436 = vadd.f32 %v3434, %v3435
        %v3437 = vrot.slane %v3436, 1
        %v3438 = vadd.f32 %v3436, %v3437
        %v3439 = vsel %vm1462, %v3417, 0.0
        %v3440 = vrot.slane %v3439, 4
        %v3441 = vadd.f32 %v3439, %v3440
        %v3442 = vrot.slane %v3441, 2
        %v3443 = vadd.f32 %v3441, %v3442
        %v3444 = vrot.slane %v3443, 1
        %v3445 = vadd.f32 %v3443, %v3444
        %v3446 = vadd.f32 %v3424, %v3438
        %v3447 = vadd.f32 %v3431, %v3445
        %v3448 = vadd.f32 %v3446, 1e-05
        %v3449 = vadd.f32 %v3447, 1e-05
        %v3450 = vrsqrt.pop %v3448
        %v3451 = vmul.f32 %v3448, %v3450
        %vm3452 = vcmp.eq.f32.partialorder %v3448, inf
        %v3453 = vsel %vm3452, %v3448, %v3451
        %vm3454 = vcmp.eq.f32.partialorder %v3448, 0.0
        %v3455 = vand.u32 %v3448, 2147483648
        %v3456 = vsel %vm3454, %v3455, %v3453
        %v3457 = vrsqrt.pop %v3449
        %v3458 = vmul.f32 %v3449, %v3457
        %vm3459 = vcmp.eq.f32.partialorder %v3449, inf
        %v3460 = vsel %vm3459, %v3449, %v3458
        %vm3461 = vcmp.eq.f32.partialorder %v3449, 0.0
        %v3462 = vand.u32 %v3449, 2147483648
        %v3463 = vsel %vm3461, %v3462, %v3460
        %v3464 = vmul.f32 %v3456, %v3162
        %v3465 = vmul.f32 %v3463, %v3166
        %v3466 = vsel %vm1506, %v3464, 0.0
        %v3467 = vsel %vm1506, %v3465, 0.0
        %v3468 = vadd.f32 %v3466, %v3467
        %3469 = vadd.xlane.f32.xlu0 %v3468
        %v3470 = vpop.xlane.xlu0 %3469
        %v3471 = vrot.slane %v3470, 4
        %v3472 = vadd.f32 %v3470, %v3471
        %v3473 = vrot.slane %v3472, 2
        %v3474 = vadd.f32 %v3472, %v3473
        %v3475 = vrot.slane %v3474, 1
        %v3476 = vadd.f32 %v3474, %v3475
        %s3477 = vtos %v3476
        %v3478 = vsub.f32 1.0, %v3118
        %v3480 = vlaneseq
        %v3481 = vshrl.u32 %v3480, 7
        %v3482 = vsub.s32 0, %v3481
        %v3483 = vrot.slane %v3478, %v3482
        %v3484 = vlaneseq
        %v3485 = vshrl.u32 %v3484, 7
        %v3486 = vsub.s32 1, %v3485
        %v3487 = vrot.slane %v3478, %v3486
        %v3490 = vsel %vm1506, %v3483, 0.0
        %v3491 = vsel %vm1506, %v3487, 0.0
        %v3492 = vadd.f32 %v3490, %v3491
        %3493 = vadd.xlane.f32.xlu0 %v3492
        %v3494 = vpop.xlane.xlu0 %3493
        %v3495 = vrot.slane %v3494, 4
        %v3496 = vadd.f32 %v3494, %v3495
        %v3497 = vrot.slane %v3496, 2
        %v3498 = vadd.f32 %v3496, %v3497
        %v3499 = vrot.slane %v3498, 1
        %v3500 = vadd.f32 %v3498, %v3499
        %s3501 = vtos %v3500
        %v3502 = vadd.f32 %v3072, 1e-05
        %v3503 = vadd.f32 %v3079, 1e-05
        %v3504 = vrsqrt.pop %v3502
        %v3505 = vmul.f32 %v3502, %v3504
        %vm3506 = vcmp.eq.f32.partialorder %v3502, inf
        %v3507 = vsel %vm3506, %v3502, %v3505
        %vm3508 = vcmp.eq.f32.partialorder %v3502, 0.0
        %v3509 = vand.u32 %v3502, 2147483648
        %v3510 = vsel %vm3508, %v3509, %v3507
        %v3511 = vrsqrt.pop %v3503
        %v3512 = vmul.f32 %v3503, %v3511
        %vm3513 = vcmp.eq.f32.partialorder %v3503, inf
        %v3514 = vsel %vm3513, %v3503, %v3512
        %vm3515 = vcmp.eq.f32.partialorder %v3503, 0.0
        %v3516 = vand.u32 %v3503, 2147483648
        %v3517 = vsel %vm3515, %v3516, %v3514
        %v3518 = vmul.f32 %v3510, %v3162
        %v3519 = vmul.f32 %v3517, %v3166
        %v3520 = vsel %vm1506, %v3518, 0.0
        %v3521 = vsel %vm1506, %v3519, 0.0
        %v3522 = vadd.f32 %v3520, %v3521
        %3523 = vadd.xlane.f32.xlu0 %v3522
        %v3524 = vpop.xlane.xlu0 %3523
        %v3525 = vrot.slane %v3524, 4
        %v3526 = vadd.f32 %v3524, %v3525
        %v3527 = vrot.slane %v3526, 2
        %v3528 = vadd.f32 %v3526, %v3527
        %v3529 = vrot.slane %v3528, 1
        %v3530 = vadd.f32 %v3528, %v3529
        %s3531 = vtos %v3530
        %v3534 = vunpack.c.l.s4 1983009808
        %v3535 = vunpack.c.0.s8 %v3534
        %v3536 = vlaneseq
        %v3537 = vshrl.u32 %v3536, 7
        %v3538 = vsub.s32 %v3535, %v3537
        %v3539 = vrot.slane %v688, %v3538
        %v3540 = vcombine.high %v3539, %v3539
        %v3543 = vsel %vm1361, %v3539, 0.0
        %v3544 = vsel %vm1361, %v3540, 0.0
        %v3545 = vadd.f32 %v3543, %v3544
        %3546 = vadd.xlane.f32.xlu0 %v3545
        %v3547 = vpop.xlane.xlu0 %3546
        %v3548 = vrot.slane %v3547, 4
        %v3549 = vadd.f32 %v3547, %v3548
        %v3550 = vrot.slane %v3549, 2
        %v3551 = vadd.f32 %v3549, %v3550
        %v3552 = vrot.slane %v3551, 1
        %v3553 = vadd.f32 %v3551, %v3552
        %s3554 = vtos %v3553
        %s3555 = smul.f32 %s3554, 0.5
        %v3558 = vunpack.c.l.s4 1983009808
        %v3559 = vunpack.c.0.s8 %v3558
        %v3560 = vlaneseq
        %v3561 = vshrl.u32 %v3560, 7
        %v3562 = vsub.s32 %v3559, %v3561
        %v3563 = vrot.slane %v696, %v3562
        %v3564 = vcombine.high %v3563, %v3563
        %v3567 = vsel %vm1361, %v3563, 0.0
        %v3568 = vsel %vm1361, %v3564, 0.0
        %v3569 = vadd.f32 %v3567, %v3568
        %3570 = vadd.xlane.f32.xlu0 %v3569
        %v3571 = vpop.xlane.xlu0 %3570
        %v3572 = vrot.slane %v3571, 4
        %v3573 = vadd.f32 %v3571, %v3572
        %v3574 = vrot.slane %v3573, 2
        %v3575 = vadd.f32 %v3573, %v3574
        %v3576 = vrot.slane %v3575, 1
        %v3577 = vadd.f32 %v3575, %v3576
        %s3578 = vtos %v3577
        %s3579 = smul.f32 %s3578, 0.5
        %s3580 = sadd.f32 %s3555, %s3579
        %v3581 = vsub.f32 %v687, %v705
        %v3582 = vmul.f32 %v3581, %v3581
        %v3585 = vunpack.c.l.s4 1983009808
        %v3586 = vunpack.c.0.s8 %v3585
        %v3587 = vlaneseq
        %v3588 = vshrl.u32 %v3587, 7
        %v3589 = vsub.s32 %v3586, %v3588
        %v3590 = vrot.slane %v3582, %v3589
        %v3591 = vcombine.high %v3590, %v3590
        %v3594 = vsel %vm1361, %v3590, 0.0
        %v3595 = vrot.slane %v3594, 4
        %v3596 = vadd.f32 %v3594, %v3595
        %v3597 = vrot.slane %v3596, 2
        %v3598 = vadd.f32 %v3596, %v3597
        %v3599 = vrot.slane %v3598, 1
        %v3600 = vadd.f32 %v3598, %v3599
        %v3601 = vsel %vm1361, %v3591, 0.0
        %v3602 = vrot.slane %v3601, 4
        %v3603 = vadd.f32 %v3601, %v3602
        %v3604 = vrot.slane %v3603, 2
        %v3605 = vadd.f32 %v3603, %v3604
        %v3606 = vrot.slane %v3605, 1
        %v3607 = vadd.f32 %v3605, %v3606
        %v3608 = vrsqrt.pop %v3600
        %v3609 = vmul.f32 %v3600, %v3608
        %vm3610 = vcmp.eq.f32.partialorder %v3600, inf
        %v3611 = vsel %vm3610, %v3600, %v3609
        %vm3612 = vcmp.eq.f32.partialorder %v3600, 0.0
        %v3613 = vand.u32 %v3600, 2147483648
        %v3614 = vsel %vm3612, %v3613, %v3611
        %v3615 = vrsqrt.pop %v3607
        %v3616 = vmul.f32 %v3607, %v3615
        %vm3617 = vcmp.eq.f32.partialorder %v3607, inf
        %v3618 = vsel %vm3617, %v3607, %v3616
        %vm3619 = vcmp.eq.f32.partialorder %v3607, 0.0
        %v3620 = vand.u32 %v3607, 2147483648
        %v3621 = vsel %vm3619, %v3620, %v3618
        %v3622 = vsel %vm1506, %v3614, 0.0
        %v3623 = vsel %vm1506, %v3621, 0.0
        %v3624 = vadd.f32 %v3622, %v3623
        %3625 = vadd.xlane.f32.xlu0 %v3624
        %v3626 = vpop.xlane.xlu0 %3625
        %v3627 = vrot.slane %v3626, 4
        %v3628 = vadd.f32 %v3626, %v3627
        %v3629 = vrot.slane %v3628, 2
        %v3630 = vadd.f32 %v3628, %v3629
        %v3631 = vrot.slane %v3630, 1
        %v3632 = vadd.f32 %v3630, %v3631
        %s3633 = vtos %v3632
        %s3634 = sadd.f32 %s2489, %s3501
        %s3635 = sadd.f32 %s1518, %s3182
        %s3636 = sadd.f32 %s1994, %s3326
        %s3637 = sadd.f32 %s2465, %s3477
        %s3638 = sadd.f32 %s2519, %s3531
        %v3639 = vlaneseq
        %v3640 = vand.u32 %v3639, 127
        %vm3641 = vcmp.eq.s32.totalorder %v3640, 0
        %v3642 = vstv %s3634
        %v3643 = vsel %vm3641, %v3642, 0.0
        %vm3644 = vcmp.eq.s32.totalorder %v3640, 1
        %v3645 = vstv %s3635
        %v3646 = vsel %vm3644, %v3645, %v3643
        %vm3647 = vcmp.eq.s32.totalorder %v3640, 2
        %v3648 = vstv %s3636
        %v3649 = vsel %vm3647, %v3648, %v3646
        %vm3650 = vcmp.eq.s32.totalorder %v3640, 3
        %v3651 = vstv %s3637
        %v3652 = vsel %vm3650, %v3651, %v3649
        %vm3653 = vcmp.eq.s32.totalorder %v3640, 4
        %v3654 = vstv %s3638
        %v3655 = vsel %vm3653, %v3654, %v3652
        %vm3656 = vcmp.eq.s32.totalorder %v3640, 5
        %v3657 = vstv %s3580
        %v3658 = vsel %vm3656, %v3657, %v3655
        %vm3659 = vcmp.eq.s32.totalorder %v3640, 6
        %v3660 = vstv %s3633
        %v3661 = vsel %vm3659, %v3660, %v3658
        %3662 = vst [vmem:[%s678] sm:$0x1] %v3661
        %v3663 = vlaneseq
        %vm3664 = vcmp.ge.s32.totalorder %v3663, 0
        %vm3665 = vcmp.lt.s32.totalorder %v3663, 256
        %vm3666 = vmand %vm3664, %vm3665
        %3667 = vst.msk [vmem:[%s682] sm:$0x3] %vm3666, %v1452
        %3668 = vst.msk [vmem:[%s686] sm:$0x3] %vm3666, %v3118
        %p3669 = scmp.lt.s32.totalorder %s28, 1
        %s3670 = scalar_select %p3669, %s28, 1
        %s3671 = scalar_lea.vmem %s13, %s3670
        %p3672 = scmp.lt.s32.totalorder %s28, 1
        %s3673 = scalar_select %p3672, %s28, 1
        %s3674 = smul.addr %s3673, 2
        %s3675 = scalar_lea.vmem %s14, %s3674
        %p3676 = scmp.lt.s32.totalorder %s28, 1
        %s3677 = scalar_select %p3676, %s28, 1
        %s3678 = smul.addr %s3677, 2
        %s3679 = scalar_lea.vmem %s15, %s3678
        // Predicated region
        $region77: #{elbo_fb_forward.1} parent=71 // pred_check
          %p3680 = pneg %p364
        $region78: #{elbo_fb_forward.1} parent=71 // pred_check_branch
          %3682 = sbr.rel (%p3680) target = $region80
        $region79: #{elbo_fb_forward.1} parent=71 // pred_region
          _
        $region80: #{elbo_fb_forward.1} parent=71 // pred_fallthru
          _
        // Predicated region
        $region81: #{elbo_fb_forward.1} parent=71 // pred_check
          %p3683 = pneg %p390
        $region82: #{elbo_fb_forward.1} parent=71 // pred_check_branch
          %3685 = sbr.rel (%p3683) target = $region84
        $region83: #{elbo_fb_forward.1} parent=71 // pred_region
          _
        $region84: #{elbo_fb_forward.1} parent=71 // pred_fallthru
          _
        // Predicated region
        $region85: #{elbo_fb_forward.1} parent=71 // pred_check
          %p3686 = pneg %p416
        $region86: #{elbo_fb_forward.1} parent=71 // pred_check_branch
          %3688 = sbr.rel (%p3686) target = $region88
        $region87: #{elbo_fb_forward.1} parent=71 // pred_region
          _
        $region88: #{elbo_fb_forward.1} parent=71 // pred_fallthru
          _
      $region72: #{elbo_fb_forward.1} parent=5 // pred_fallthru
        _
      %p3689 = scmp.le.s32.totalorder 2, %s23
      // Predicated region
      $region89: #{elbo_fb_forward.1} parent=5 // pred_check
        %p3690 = pneg %p3689
      $region90: #{elbo_fb_forward.1} parent=5 // pred_check_branch
        %3692 = sbr.rel (%p3690) target = $region92
      $region91: #{elbo_fb_forward.1} parent=5 // pred_region
        %s3693 = ssub.s32 %s23, 2
        // Predicated region
        $region93: #{elbo_fb_forward.1} parent=91 // pred_check
          %p3694 = pneg %p370
        $region94: #{elbo_fb_forward.1} parent=91 // pred_check_branch
          %3696 = sbr.rel (%p3694) target = $region96
        $region95: #{elbo_fb_forward.1} parent=91 // pred_region
          %p3697 = scmp.lt.s32.totalorder %s29, 1
          %s3698 = scalar_select %p3697, %s29, 1
          %s3699 = scalar_lea.vmem %s13, %s3698
        $region96: #{elbo_fb_forward.1} parent=91 // pred_fallthru
          _
        // Predicated region
        $region97: #{elbo_fb_forward.1} parent=91 // pred_check
          %p3700 = pneg %p396
        $region98: #{elbo_fb_forward.1} parent=91 // pred_check_branch
          %3702 = sbr.rel (%p3700) target = $region100
        $region99: #{elbo_fb_forward.1} parent=91 // pred_region
          %p3703 = scmp.lt.s32.totalorder %s29, 1
          %s3704 = scalar_select %p3703, %s29, 1
          %s3705 = smul.addr %s3704, 2
          %s3706 = scalar_lea.vmem %s14, %s3705
        $region100: #{elbo_fb_forward.1} parent=91 // pred_fallthru
          _
        // Predicated region
        $region101: #{elbo_fb_forward.1} parent=91 // pred_check
          %p3707 = pneg %p422
        $region102: #{elbo_fb_forward.1} parent=91 // pred_check_branch
          %3709 = sbr.rel (%p3707) target = $region104
        $region103: #{elbo_fb_forward.1} parent=91 // pred_region
          %p3710 = scmp.lt.s32.totalorder %s29, 1
          %s3711 = scalar_select %p3710, %s29, 1
          %s3712 = smul.addr %s3711, 2
          %s3713 = scalar_lea.vmem %s15, %s3712
        $region104: #{elbo_fb_forward.1} parent=91 // pred_fallthru
          _
      $region92: #{elbo_fb_forward.1} parent=5 // pred_fallthru
        _
    $region6: #{elbo_fb_forward.1} parent=1 // loop_footer
      %s27 = sadd.s32 1, %s23
    $region7: #{elbo_fb_forward.1} parent=1 // loop_footer_branch
      %22 = sbr.rel target = $region3
    $region8: #{elbo_fb_forward.1} parent=1 // loop_exit
      _
    %3714 = vsyncpa [#allocation3], 1
    %s3715 = scalar_lea.sflag [#allocation3], 1
    %3716 = vsyncpa %s3715, 1

</llo_original>
